<compile_context>
chip_gen: v5e
topology: v5e:2x2
jax: 0.10.0
libtpu: 0.0.40
codegen_flags: <defaults>
</compile_context>

<pallas_src>
import functools
import math

import jax
import jax.numpy as jnp
import numpy as np
from jax import lax
from jax.experimental import pallas as pl
from jax.experimental.pallas import tpu as pltpu

_EPS = 1e-5                      # PyTorch InstanceNorm3d default
_INV_SQRT2 = 1.0 / math.sqrt(2.0)


def _round_up(v, m):
    return ((v + m - 1) // m) * m


def _norm_gelu_store(acc, m_ref, g_ref, b_ref, o_ref, inv_n):
    """InstanceNorm (masked single-pass stats) + affine + exact GELU, then store."""
    m = m_ref[...]                                        # (1, L_out)
    ym = acc * m
    s1 = jnp.sum(ym, axis=1, keepdims=True)               # (Cout, 1)
    s2 = jnp.sum(ym * acc, axis=1, keepdims=True)         # (Cout, 1) masked sum y^2
    mean = s1 * inv_n
    var = jnp.maximum(s2 * inv_n - mean * mean, 0.0)
    scale = lax.rsqrt(var + _EPS) * g_ref[...]            # (Cout, 1)
    shift = b_ref[...] - mean * scale
    z = acc * scale + shift
    o_ref[0] = 0.5 * z * (1.0 + lax.erf(z * _INV_SQRT2))  # exact GELU (erf form)


def _stacked_kernel(x_ref, w_ref, m_ref, g_ref, b_ref, o_ref, xstack_ref, *,
                    offsets, l_out, cin_p, inv_n):
    """One batch element; single big-contraction matmul.

    x_ref      : (1, Cin_p, L_in)       zero-padded input (padded-stride flat)
    w_ref      : (Cout, T*Cin_p)        conv taps, tap-major / channel-minor
    m_ref      : (1, L_out)             validity mask
    g_ref,b_ref: (Cout, 1)              InstanceNorm gamma / beta
    o_ref      : (1, Cout, L_out)
    xstack_ref : (T*Cin_p, L_out) VMEM  stacked shifted slices (scratch)
    """
    # Stack the k^3 shifted slices along the sublane (contraction) axis.
    for t, off in enumerate(offsets):                     # static unroll (27 taps)
        xstack_ref[pl.ds(t * cin_p, cin_p), :] = x_ref[0, :, pl.ds(off, l_out)]
    # One MXU pass: K = T*Cin_p instead of 27 passes with K = Cin_p.
    acc = jnp.dot(w_ref[...], xstack_ref[...], preferred_element_type=jnp.float32)
    _norm_gelu_store(acc, m_ref, g_ref, b_ref, o_ref, inv_n)


def _tapwise_kernel(x_ref, w_ref, m_ref, g_ref, b_ref, o_ref, *,
                    offsets, l_out, cin_p, inv_n):
    """Fallback: accumulate the k^3 shifted-slice matmuls (no stacking scratch)."""
    cout = o_ref.shape[1]
    acc = jnp.zeros((cout, l_out), dtype=jnp.float32)
    for t, off in enumerate(offsets):                     # static unroll (27 taps)
        w_t = w_ref[:, pl.ds(t * cin_p, cin_p)]           # (Cout, Cin_p)
        x_sl = x_ref[0, :, pl.ds(off, l_out)]             # (Cin_p, L_out)
        acc += jnp.dot(w_t, x_sl, preferred_element_type=jnp.float32)
    _norm_gelu_store(acc, m_ref, g_ref, b_ref, o_ref, inv_n)


def input_unit_forward(x_ncdhw, conv_w, gamma, beta, *, compute_dtype=jnp.float32):
    """x: (N, Cin, D, H, W) f32; conv_w: (Cout, Cin, k, k, k); gamma/beta: (Cout,).
    Returns (N, Cout, D, H, W) f32.  compute_dtype=jnp.bfloat16 halves conv-operand
    HBM bytes at ~1e-3 accuracy cost vs. the f32 reference."""
    N, Cin, D, H, W = x_ncdhw.shape
    Cout, _, k, _, _ = conv_w.shape
    pad = k // 2
    T = k * k * k

    Dp, Hp, Wp = D + 2 * pad, H + 2 * pad, W + 2 * pad
    Sp = Dp * Hp * Wp                       # padded-stride flat length
    S = D * H * W                           # number of real voxels
    Cin_p = _round_up(Cin, 8)               # sublane-friendly channel count

    # tap offsets in padded-stride flat coordinates (kd, kh, kw order)
    offsets = tuple(int(kd * Hp * Wp + kh * Wp + kw)
                    for kd in range(k) for kh in range(k) for kw in range(k))
    max_off = offsets[-1]
    L_out = _round_up(Sp, 128)              # lane-aligned output columns
    L_in = L_out + _round_up(max_off, 128)  # input columns (covers every tap slice)

    # ---- glue: zero pad (channels + spatial), flatten with padded strides ----
    xp = jnp.pad(x_ncdhw, ((0, 0), (0, Cin_p - Cin),
                           (pad, pad), (pad, pad), (pad, pad)))
    xf = xp.reshape(N, Cin_p, Sp)
    xf = jnp.pad(xf, ((0, 0), (0, 0), (0, L_in - Sp))).astype(compute_dtype)

    # conv weight -> (Cout, T*Cin_p), tap-major / channel-minor, matching `offsets`
    w = jnp.pad(conv_w, ((0, 0), (0, Cin_p - Cin), (0, 0), (0, 0), (0, 0)))
    w2 = jnp.transpose(w, (0, 2, 3, 4, 1)).reshape(Cout, T * Cin_p)
    w2 = w2.astype(compute_dtype)

    # validity mask over the padded-stride flat axis (halo/tail columns -> 0)
    sidx = np.arange(L_out)
    d_i = sidx // (Hp * Wp)
    h_i = (sidx % (Hp * Wp)) // Wp
    w_i = sidx % Wp
    mask = ((d_i < D) & (h_i < H) & (w_i < W)).astype(np.float32)
    mask = jnp.asarray(mask).reshape(1, L_out)

    g = gamma.reshape(Cout, 1).astype(jnp.float32)
    b = beta.reshape(Cout, 1).astype(jnp.float32)

    # ---- choose conv strategy: stacked contraction if the scratch is modest ----
    bpe = int(np.dtype(compute_dtype).itemsize)
    stack_bytes = T * Cin_p * L_out * bpe
    use_stacked = stack_bytes <= (12 << 20)

    common = dict(offsets=offsets, l_out=L_out, cin_p=Cin_p, inv_n=1.0 / S)
    if use_stacked:
        kernel = functools.partial(_stacked_kernel, **common)
        scratch_shapes = [pltpu.VMEM((T * Cin_p, L_out), compute_dtype)]
    else:
        kernel = functools.partial(_tapwise_kernel, **common)
        scratch_shapes = []

    # explicit VMEM budget: double-buffered in/out blocks + scratch + slack
    in_block = Cin_p * L_in * bpe
    out_block = Cout * L_out * 4
    vmem_budget = (2 * (in_block + out_block)
                   + (stack_bytes if use_stacked else 0)
                   + 8 * Cout * L_out * 4 + (1 << 20))
    vmem_limit = int(min(max(vmem_budget, 16 << 20), 64 << 20))

    out = pl.pallas_call(
        kernel,
        out_shape=jax.ShapeDtypeStruct((N, Cout, L_out), jnp.float32),
        grid_spec=pltpu.PrefetchScalarGridSpec(
            num_scalar_prefetch=0,
            grid=(N,),
            in_specs=[
                pl.BlockSpec((1, Cin_p, L_in), lambda n: (n, 0, 0)),
                pl.BlockSpec((Cout, T * Cin_p), lambda n: (0, 0)),
                pl.BlockSpec((1, L_out), lambda n: (0, 0)),
                pl.BlockSpec((Cout, 1), lambda n: (0, 0)),
                pl.BlockSpec((Cout, 1), lambda n: (0, 0)),
            ],
            out_specs=pl.BlockSpec((1, Cout, L_out), lambda n: (n, 0, 0)),
            scratch_shapes=scratch_shapes,
        ),
        compiler_params=pltpu.CompilerParams(
            dimension_semantics=("parallel",),
            vmem_limit_bytes=vmem_limit,
        ),
    )(xf, w2, mask, g, b)

    # drop halo/tail columns: flat (padded strides) -> (Dp,Hp,Wp) -> DxHxW corner
    y = out[:, :, :Sp].reshape(N, Cout, Dp, Hp, Wp)[:, :, :D, :H, :W]
    return y


def _reference(x, conv_w, gamma, beta):
    """Pure-JAX reference of the PyTorch module (f32, exact GELU)."""
    y = lax.conv_general_dilated(
        x, conv_w, window_strides=(1, 1, 1),
        padding=[(1, 1), (1, 1), (1, 1)],
        dimension_numbers=("NCDHW", "OIDHW", "NCDHW"))
    mean = y.mean(axis=(2, 3, 4), keepdims=True)
    var = ((y - mean) ** 2).mean(axis=(2, 3, 4), keepdims=True)
    y_hat = (y - mean) / jnp.sqrt(var + _EPS)
    z = y_hat * gamma.reshape(1, -1, 1, 1, 1) + beta.reshape(1, -1, 1, 1, 1)
    return 0.5 * z * (1.0 + lax.erf(z / jnp.sqrt(2.0)))


if __name__ == "__main__":
    # Small shapes consistent with InputUnit(inchannel=4, outchannel=8, kernel_size=3)
    N, Cin, Cout, D, H, W = 2, 4, 8, 8, 8, 8

    key = jax.random.PRNGKey(0)
    kx, kw = jax.random.split(key)
    x = jax.random.normal(kx, (N, Cin, D, H, W), dtype=jnp.float32)
    conv_w = 0.1 * jax.random.normal(kw, (Cout, Cin, 3, 3, 3), dtype=jnp.float32)
    # InstanceNorm3d(affine=True) default init: weight = 1, bias = 0
    gamma = jnp.ones((Cout,), dtype=jnp.float32)
    beta = jnp.zeros((Cout,), dtype=jnp.float32)

    out = jax.block_until_ready(input_unit_forward(x, conv_w, gamma, beta))
    ref = jax.block_until_ready(_reference(x, conv_w, gamma, beta))

    assert out.shape == (N, Cout, D, H, W)
    assert np.allclose(np.asarray(out), np.asarray(ref), atol=2e-4, rtol=2e-4)

    print("KERNEL_OK")
</pallas_src>

<mosaic_0001>
module attributes {stable_mosaic.version = 11 : i64} {
  func.func @_stacked_kernel(%arg0: i32, %arg1: memref<1x8x1280xf32, #tpu.memory_space<vmem>>, %arg2: memref<8x216xf32, #tpu.memory_space<vmem>>, %arg3: memref<1x1024xf32, #tpu.memory_space<vmem>>, %arg4: memref<8x1xf32, #tpu.memory_space<vmem>>, %arg5: memref<8x1xf32, #tpu.memory_space<vmem>>, %arg6: memref<1x8x1024xf32, #tpu.memory_space<vmem>>, %arg7: memref<216x1024xf32, #tpu.memory_space<vmem>>) attributes {dimension_semantics = [#tpu.dimension_semantics<parallel>], iteration_bounds = array<i64: 2>, scalar_prefetch = 0 : i64, scratch_operands = 1 : i64, tpu.core_type = #tpu.core_type<tc>, window_params = [{transform_indices = @transform_0, window_bounds = array<i64: 1, 8, 1280>}, {pipeline_mode = #tpu.pipeline_mode<synchronous>, transform_indices = @transform_1, window_bounds = array<i64: 8, 216>}, {pipeline_mode = #tpu.pipeline_mode<synchronous>, transform_indices = @transform_2, window_bounds = array<i64: 1, 1024>}, {pipeline_mode = #tpu.pipeline_mode<synchronous>, transform_indices = @transform_3, window_bounds = array<i64: 8, 1>}, {pipeline_mode = #tpu.pipeline_mode<synchronous>, transform_indices = @transform_4, window_bounds = array<i64: 8, 1>}, {transform_indices = @transform_5, window_bounds = array<i64: 1, 8, 1024>}]} {
    %c0 = arith.constant 0 : index
    %c0_0 = arith.constant 0 : index
    %c0_1 = arith.constant 0 : index
    %0 = vector.load %arg1[%c0, %c0_0, %c0_1] : memref<1x8x1280xf32, #tpu.memory_space<vmem>>, vector<1x8x1024xf32>
    %1 = vector.shape_cast %0 : vector<1x8x1024xf32> to vector<8x1024xf32>
    %c0_2 = arith.constant 0 : index
    %c0_3 = arith.constant 0 : index
    %2 = vector.load %arg7[%c0_2, %c0_3] : memref<216x1024xf32, #tpu.memory_space<vmem>>, vector<8x1024xf32>
    tpu.vector_store %arg7[%c0_2, %c0_3], %1 {strides = array<i32>} : memref<216x1024xf32, #tpu.memory_space<vmem>>, vector<8x1024xf32>,
    %c0_4 = arith.constant 0 : index
    %c0_5 = arith.constant 0 : index
    %c1 = arith.constant 1 : index
    %3 = vector.load %arg1[%c0_4, %c0_5, %c1] : memref<1x8x1280xf32, #tpu.memory_space<vmem>>, vector<1x8x1024xf32>
    %4 = vector.shape_cast %3 : vector<1x8x1024xf32> to vector<8x1024xf32>
    %c8 = arith.constant 8 : index
    %c0_6 = arith.constant 0 : index
    %5 = vector.load %arg7[%c8, %c0_6] : memref<216x1024xf32, #tpu.memory_space<vmem>>, vector<8x1024xf32>
    tpu.vector_store %arg7[%c8, %c0_6], %4 {strides = array<i32>} : memref<216x1024xf32, #tpu.memory_space<vmem>>, vector<8x1024xf32>,
    %c0_7 = arith.constant 0 : index
    %c0_8 = arith.constant 0 : index
    %c2 = arith.constant 2 : index
    %6 = vector.load %arg1[%c0_7, %c0_8, %c2] : memref<1x8x1280xf32, #tpu.memory_space<vmem>>, vector<1x8x1024xf32>
    %7 = vector.shape_cast %6 : vector<1x8x1024xf32> to vector<8x1024xf32>
    %c16 = arith.constant 16 : index
    %c0_9 = arith.constant 0 : index
    %8 = vector.load %arg7[%c16, %c0_9] : memref<216x1024xf32, #tpu.memory_space<vmem>>, vector<8x1024xf32>
    tpu.vector_store %arg7[%c16, %c0_9], %7 {strides = array<i32>} : memref<216x1024xf32, #tpu.memory_space<vmem>>, vector<8x1024xf32>,
    %c0_10 = arith.constant 0 : index
    %c0_11 = arith.constant 0 : index
    %c10 = arith.constant 10 : index
    %9 = vector.load %arg1[%c0_10, %c0_11, %c10] : memref<1x8x1280xf32, #tpu.memory_space<vmem>>, vector<1x8x1024xf32>
    %10 = vector.shape_cast %9 : vector<1x8x1024xf32> to vector<8x1024xf32>
    %c24 = arith.constant 24 : index
    %c0_12 = arith.constant 0 : index
    %11 = vector.load %arg7[%c24, %c0_12] : memref<216x1024xf32, #tpu.memory_space<vmem>>, vector<8x1024xf32>
    tpu.vector_store %arg7[%c24, %c0_12], %10 {strides = array<i32>} : memref<216x1024xf32, #tpu.memory_space<vmem>>, vector<8x1024xf32>,
    %c0_13 = arith.constant 0 : index
    %c0_14 = arith.constant 0 : index
    %c11 = arith.constant 11 : index
    %12 = vector.load %arg1[%c0_13, %c0_14, %c11] : memref<1x8x1280xf32, #tpu.memory_space<vmem>>, vector<1x8x1024xf32>
    %13 = vector.shape_cast %12 : vector<1x8x1024xf32> to vector<8x1024xf32>
    %c32 = arith.constant 32 : index
    %c0_15 = arith.constant 0 : index
    %14 = vector.load %arg7[%c32, %c0_15] : memref<216x1024xf32, #tpu.memory_space<vmem>>, vector<8x1024xf32>
    tpu.vector_store %arg7[%c32, %c0_15], %13 {strides = array<i32>} : memref<216x1024xf32, #tpu.memory_space<vmem>>, vector<8x1024xf32>,
    %c0_16 = arith.constant 0 : index
    %c0_17 = arith.constant 0 : index
    %c12 = arith.constant 12 : index
    %15 = vector.load %arg1[%c0_16, %c0_17, %c12] : memref<1x8x1280xf32, #tpu.memory_space<vmem>>, vector<1x8x1024xf32>
    %16 = vector.shape_cast %15 : vector<1x8x1024xf32> to vector<8x1024xf32>
    %c40 = arith.constant 40 : index
    %c0_18 = arith.constant 0 : index
    %17 = vector.load %arg7[%c40, %c0_18] : memref<216x1024xf32, #tpu.memory_space<vmem>>, vector<8x1024xf32>
    tpu.vector_store %arg7[%c40, %c0_18], %16 {strides = array<i32>} : memref<216x1024xf32, #tpu.memory_space<vmem>>, vector<8x1024xf32>,
    %c0_19 = arith.constant 0 : index
    %c0_20 = arith.constant 0 : index
    %c20 = arith.constant 20 : index
    %18 = vector.load %arg1[%c0_19, %c0_20, %c20] : memref<1x8x1280xf32, #tpu.memory_space<vmem>>, vector<1x8x1024xf32>
    %19 = vector.shape_cast %18 : vector<1x8x1024xf32> to vector<8x1024xf32>
    %c48 = arith.constant 48 : index
    %c0_21 = arith.constant 0 : index
    %20 = vector.load %arg7[%c48, %c0_21] : memref<216x1024xf32, #tpu.memory_space<vmem>>, vector<8x1024xf32>
    tpu.vector_store %arg7[%c48, %c0_21], %19 {strides = array<i32>} : memref<216x1024xf32, #tpu.memory_space<vmem>>, vector<8x1024xf32>,
    %c0_22 = arith.constant 0 : index
    %c0_23 = arith.constant 0 : index
    %c21 = arith.constant 21 : index
    %21 = vector.load %arg1[%c0_22, %c0_23, %c21] : memref<1x8x1280xf32, #tpu.memory_space<vmem>>, vector<1x8x1024xf32>
    %22 = vector.shape_cast %21 : vector<1x8x1024xf32> to vector<8x1024xf32>
    %c56 = arith.constant 56 : index
    %c0_24 = arith.constant 0 : index
    %23 = vector.load %arg7[%c56, %c0_24] : memref<216x1024xf32, #tpu.memory_space<vmem>>, vector<8x1024xf32>
    tpu.vector_store %arg7[%c56, %c0_24], %22 {strides = array<i32>} : memref<216x1024xf32, #tpu.memory_space<vmem>>, vector<8x1024xf32>,
    %c0_25 = arith.constant 0 : index
    %c0_26 = arith.constant 0 : index
    %c22 = arith.constant 22 : index
    %24 = vector.load %arg1[%c0_25, %c0_26, %c22] : memref<1x8x1280xf32, #tpu.memory_space<vmem>>, vector<1x8x1024xf32>
    %25 = vector.shape_cast %24 : vector<1x8x1024xf32> to vector<8x1024xf32>
    %c64 = arith.constant 64 : index
    %c0_27 = arith.constant 0 : index
    %26 = vector.load %arg7[%c64, %c0_27] : memref<216x1024xf32, #tpu.memory_space<vmem>>, vector<8x1024xf32>
    tpu.vector_store %arg7[%c64, %c0_27], %25 {strides = array<i32>} : memref<216x1024xf32, #tpu.memory_space<vmem>>, vector<8x1024xf32>,
    %c0_28 = arith.constant 0 : index
    %c0_29 = arith.constant 0 : index
    %c100 = arith.constant 100 : index
    %27 = vector.load %arg1[%c0_28, %c0_29, %c100] : memref<1x8x1280xf32, #tpu.memory_space<vmem>>, vector<1x8x1024xf32>
    %28 = vector.shape_cast %27 : vector<1x8x1024xf32> to vector<8x1024xf32>
    %c72 = arith.constant 72 : index
    %c0_30 = arith.constant 0 : index
    %29 = vector.load %arg7[%c72, %c0_30] : memref<216x1024xf32, #tpu.memory_space<vmem>>, vector<8x1024xf32>
    tpu.vector_store %arg7[%c72, %c0_30], %28 {strides = array<i32>} : memref<216x1024xf32, #tpu.memory_space<vmem>>, vector<8x1024xf32>,
    %c0_31 = arith.constant 0 : index
    %c0_32 = arith.constant 0 : index
    %c101 = arith.constant 101 : index
    %30 = vector.load %arg1[%c0_31, %c0_32, %c101] : memref<1x8x1280xf32, #tpu.memory_space<vmem>>, vector<1x8x1024xf32>
    %31 = vector.shape_cast %30 : vector<1x8x1024xf32> to vector<8x1024xf32>
    %c80 = arith.constant 80 : index
    %c0_33 = arith.constant 0 : index
    %32 = vector.load %arg7[%c80, %c0_33] : memref<216x1024xf32, #tpu.memory_space<vmem>>, vector<8x1024xf32>
    tpu.vector_store %arg7[%c80, %c0_33], %31 {strides = array<i32>} : memref<216x1024xf32, #tpu.memory_space<vmem>>, vector<8x1024xf32>,
    %c0_34 = arith.constant 0 : index
    %c0_35 = arith.constant 0 : index
    %c102 = arith.constant 102 : index
    %33 = vector.load %arg1[%c0_34, %c0_35, %c102] : memref<1x8x1280xf32, #tpu.memory_space<vmem>>, vector<1x8x1024xf32>
    %34 = vector.shape_cast %33 : vector<1x8x1024xf32> to vector<8x1024xf32>
    %c88 = arith.constant 88 : index
    %c0_36 = arith.constant 0 : index
    %35 = vector.load %arg7[%c88, %c0_36] : memref<216x1024xf32, #tpu.memory_space<vmem>>, vector<8x1024xf32>
    tpu.vector_store %arg7[%c88, %c0_36], %34 {strides = array<i32>} : memref<216x1024xf32, #tpu.memory_space<vmem>>, vector<8x1024xf32>,
    %c0_37 = arith.constant 0 : index
    %c0_38 = arith.constant 0 : index
    %c110 = arith.constant 110 : index
    %36 = vector.load %arg1[%c0_37, %c0_38, %c110] : memref<1x8x1280xf32, #tpu.memory_space<vmem>>, vector<1x8x1024xf32>
    %37 = vector.shape_cast %36 : vector<1x8x1024xf32> to vector<8x1024xf32>
    %c96 = arith.constant 96 : index
    %c0_39 = arith.constant 0 : index
    %38 = vector.load %arg7[%c96, %c0_39] : memref<216x1024xf32, #tpu.memory_space<vmem>>, vector<8x1024xf32>
    tpu.vector_store %arg7[%c96, %c0_39], %37 {strides = array<i32>} : memref<216x1024xf32, #tpu.memory_space<vmem>>, vector<8x1024xf32>,
    %c0_40 = arith.constant 0 : index
    %c0_41 = arith.constant 0 : index
    %c111 = arith.constant 111 : index
    %39 = vector.load %arg1[%c0_40, %c0_41, %c111] : memref<1x8x1280xf32, #tpu.memory_space<vmem>>, vector<1x8x1024xf32>
    %40 = vector.shape_cast %39 : vector<1x8x1024xf32> to vector<8x1024xf32>
    %c104 = arith.constant 104 : index
    %c0_42 = arith.constant 0 : index
    %41 = vector.load %arg7[%c104, %c0_42] : memref<216x1024xf32, #tpu.memory_space<vmem>>, vector<8x1024xf32>
    tpu.vector_store %arg7[%c104, %c0_42], %40 {strides = array<i32>} : memref<216x1024xf32, #tpu.memory_space<vmem>>, vector<8x1024xf32>,
    %c0_43 = arith.constant 0 : index
    %c0_44 = arith.constant 0 : index
    %c112 = arith.constant 112 : index
    %42 = vector.load %arg1[%c0_43, %c0_44, %c112] : memref<1x8x1280xf32, #tpu.memory_space<vmem>>, vector<1x8x1024xf32>
    %43 = vector.shape_cast %42 : vector<1x8x1024xf32> to vector<8x1024xf32>
    %c112_45 = arith.constant 112 : index
    %c0_46 = arith.constant 0 : index
    %44 = vector.load %arg7[%c112_45, %c0_46] : memref<216x1024xf32, #tpu.memory_space<vmem>>, vector<8x1024xf32>
    tpu.vector_store %arg7[%c112_45, %c0_46], %43 {strides = array<i32>} : memref<216x1024xf32, #tpu.memory_space<vmem>>, vector<8x1024xf32>,
    %c0_47 = arith.constant 0 : index
    %c0_48 = arith.constant 0 : index
    %c120 = arith.constant 120 : index
    %45 = vector.load %arg1[%c0_47, %c0_48, %c120] : memref<1x8x1280xf32, #tpu.memory_space<vmem>>, vector<1x8x1024xf32>
    %46 = vector.shape_cast %45 : vector<1x8x1024xf32> to vector<8x1024xf32>
    %c120_49 = arith.constant 120 : index
    %c0_50 = arith.constant 0 : index
    %47 = vector.load %arg7[%c120_49, %c0_50] : memref<216x1024xf32, #tpu.memory_space<vmem>>, vector<8x1024xf32>
    tpu.vector_store %arg7[%c120_49, %c0_50], %46 {strides = array<i32>} : memref<216x1024xf32, #tpu.memory_space<vmem>>, vector<8x1024xf32>,
    %c0_51 = arith.constant 0 : index
    %c0_52 = arith.constant 0 : index
    %c121 = arith.constant 121 : index
    %48 = vector.load %arg1[%c0_51, %c0_52, %c121] : memref<1x8x1280xf32, #tpu.memory_space<vmem>>, vector<1x8x1024xf32>
    %49 = vector.shape_cast %48 : vector<1x8x1024xf32> to vector<8x1024xf32>
    %c128 = arith.constant 128 : index
    %c0_53 = arith.constant 0 : index
    %50 = vector.load %arg7[%c128, %c0_53] : memref<216x1024xf32, #tpu.memory_space<vmem>>, vector<8x1024xf32>
    tpu.vector_store %arg7[%c128, %c0_53], %49 {strides = array<i32>} : memref<216x1024xf32, #tpu.memory_space<vmem>>, vector<8x1024xf32>,
    %c0_54 = arith.constant 0 : index
    %c0_55 = arith.constant 0 : index
    %c122 = arith.constant 122 : index
    %51 = vector.load %arg1[%c0_54, %c0_55, %c122] : memref<1x8x1280xf32, #tpu.memory_space<vmem>>, vector<1x8x1024xf32>
    %52 = vector.shape_cast %51 : vector<1x8x1024xf32> to vector<8x1024xf32>
    %c136 = arith.constant 136 : index
    %c0_56 = arith.constant 0 : index
    %53 = vector.load %arg7[%c136, %c0_56] : memref<216x1024xf32, #tpu.memory_space<vmem>>, vector<8x1024xf32>
    tpu.vector_store %arg7[%c136, %c0_56], %52 {strides = array<i32>} : memref<216x1024xf32, #tpu.memory_space<vmem>>, vector<8x1024xf32>,
    %c0_57 = arith.constant 0 : index
    %c0_58 = arith.constant 0 : index
    %c200 = arith.constant 200 : index
    %54 = vector.load %arg1[%c0_57, %c0_58, %c200] : memref<1x8x1280xf32, #tpu.memory_space<vmem>>, vector<1x8x1024xf32>
    %55 = vector.shape_cast %54 : vector<1x8x1024xf32> to vector<8x1024xf32>
    %c144 = arith.constant 144 : index
    %c0_59 = arith.constant 0 : index
    %56 = vector.load %arg7[%c144, %c0_59] : memref<216x1024xf32, #tpu.memory_space<vmem>>, vector<8x1024xf32>
    tpu.vector_store %arg7[%c144, %c0_59], %55 {strides = array<i32>} : memref<216x1024xf32, #tpu.memory_space<vmem>>, vector<8x1024xf32>,
    %c0_60 = arith.constant 0 : index
    %c0_61 = arith.constant 0 : index
    %c201 = arith.constant 201 : index
    %57 = vector.load %arg1[%c0_60, %c0_61, %c201] : memref<1x8x1280xf32, #tpu.memory_space<vmem>>, vector<1x8x1024xf32>
    %58 = vector.shape_cast %57 : vector<1x8x1024xf32> to vector<8x1024xf32>
    %c152 = arith.constant 152 : index
    %c0_62 = arith.constant 0 : index
    %59 = vector.load %arg7[%c152, %c0_62] : memref<216x1024xf32, #tpu.memory_space<vmem>>, vector<8x1024xf32>
    tpu.vector_store %arg7[%c152, %c0_62], %58 {strides = array<i32>} : memref<216x1024xf32, #tpu.memory_space<vmem>>, vector<8x1024xf32>,
    %c0_63 = arith.constant 0 : index
    %c0_64 = arith.constant 0 : index
    %c202 = arith.constant 202 : index
    %60 = vector.load %arg1[%c0_63, %c0_64, %c202] : memref<1x8x1280xf32, #tpu.memory_space<vmem>>, vector<1x8x1024xf32>
    %61 = vector.shape_cast %60 : vector<1x8x1024xf32> to vector<8x1024xf32>
    %c160 = arith.constant 160 : index
    %c0_65 = arith.constant 0 : index
    %62 = vector.load %arg7[%c160, %c0_65] : memref<216x1024xf32, #tpu.memory_space<vmem>>, vector<8x1024xf32>
    tpu.vector_store %arg7[%c160, %c0_65], %61 {strides = array<i32>} : memref<216x1024xf32, #tpu.memory_space<vmem>>, vector<8x1024xf32>,
    %c0_66 = arith.constant 0 : index
    %c0_67 = arith.constant 0 : index
    %c210 = arith.constant 210 : index
    %63 = vector.load %arg1[%c0_66, %c0_67, %c210] : memref<1x8x1280xf32, #tpu.memory_space<vmem>>, vector<1x8x1024xf32>
    %64 = vector.shape_cast %63 : vector<1x8x1024xf32> to vector<8x1024xf32>
    %c168 = arith.constant 168 : index
    %c0_68 = arith.constant 0 : index
    %65 = vector.load %arg7[%c168, %c0_68] : memref<216x1024xf32, #tpu.memory_space<vmem>>, vector<8x1024xf32>
    tpu.vector_store %arg7[%c168, %c0_68], %64 {strides = array<i32>} : memref<216x1024xf32, #tpu.memory_space<vmem>>, vector<8x1024xf32>,
    %c0_69 = arith.constant 0 : index
    %c0_70 = arith.constant 0 : index
    %c211 = arith.constant 211 : index
    %66 = vector.load %arg1[%c0_69, %c0_70, %c211] : memref<1x8x1280xf32, #tpu.memory_space<vmem>>, vector<1x8x1024xf32>
    %67 = vector.shape_cast %66 : vector<1x8x1024xf32> to vector<8x1024xf32>
    %c176 = arith.constant 176 : index
    %c0_71 = arith.constant 0 : index
    %68 = vector.load %arg7[%c176, %c0_71] : memref<216x1024xf32, #tpu.memory_space<vmem>>, vector<8x1024xf32>
    tpu.vector_store %arg7[%c176, %c0_71], %67 {strides = array<i32>} : memref<216x1024xf32, #tpu.memory_space<vmem>>, vector<8x1024xf32>,
    %c0_72 = arith.constant 0 : index
    %c0_73 = arith.constant 0 : index
    %c212 = arith.constant 212 : index
    %69 = vector.load %arg1[%c0_72, %c0_73, %c212] : memref<1x8x1280xf32, #tpu.memory_space<vmem>>, vector<1x8x1024xf32>
    %70 = vector.shape_cast %69 : vector<1x8x1024xf32> to vector<8x1024xf32>
    %c184 = arith.constant 184 : index
    %c0_74 = arith.constant 0 : index
    %71 = vector.load %arg7[%c184, %c0_74] : memref<216x1024xf32, #tpu.memory_space<vmem>>, vector<8x1024xf32>
    tpu.vector_store %arg7[%c184, %c0_74], %70 {strides = array<i32>} : memref<216x1024xf32, #tpu.memory_space<vmem>>, vector<8x1024xf32>,
    %c0_75 = arith.constant 0 : index
    %c0_76 = arith.constant 0 : index
    %c220 = arith.constant 220 : index
    %72 = vector.load %arg1[%c0_75, %c0_76, %c220] : memref<1x8x1280xf32, #tpu.memory_space<vmem>>, vector<1x8x1024xf32>
    %73 = vector.shape_cast %72 : vector<1x8x1024xf32> to vector<8x1024xf32>
    %c192 = arith.constant 192 : index
    %c0_77 = arith.constant 0 : index
    %74 = vector.load %arg7[%c192, %c0_77] : memref<216x1024xf32, #tpu.memory_space<vmem>>, vector<8x1024xf32>
    tpu.vector_store %arg7[%c192, %c0_77], %73 {strides = array<i32>} : memref<216x1024xf32, #tpu.memory_space<vmem>>, vector<8x1024xf32>,
    %c0_78 = arith.constant 0 : index
    %c0_79 = arith.constant 0 : index
    %c221 = arith.constant 221 : index
    %75 = vector.load %arg1[%c0_78, %c0_79, %c221] : memref<1x8x1280xf32, #tpu.memory_space<vmem>>, vector<1x8x1024xf32>
    %76 = vector.shape_cast %75 : vector<1x8x1024xf32> to vector<8x1024xf32>
    %c200_80 = arith.constant 200 : index
    %c0_81 = arith.constant 0 : index
    %77 = vector.load %arg7[%c200_80, %c0_81] : memref<216x1024xf32, #tpu.memory_space<vmem>>, vector<8x1024xf32>
    tpu.vector_store %arg7[%c200_80, %c0_81], %76 {strides = array<i32>} : memref<216x1024xf32, #tpu.memory_space<vmem>>, vector<8x1024xf32>,
    %c0_82 = arith.constant 0 : index
    %c0_83 = arith.constant 0 : index
    %c222 = arith.constant 222 : index
    %78 = vector.load %arg1[%c0_82, %c0_83, %c222] : memref<1x8x1280xf32, #tpu.memory_space<vmem>>, vector<1x8x1024xf32>
    %79 = vector.shape_cast %78 : vector<1x8x1024xf32> to vector<8x1024xf32>
    %c208 = arith.constant 208 : index
    %c0_84 = arith.constant 0 : index
    %80 = vector.load %arg7[%c208, %c0_84] : memref<216x1024xf32, #tpu.memory_space<vmem>>, vector<8x1024xf32>
    tpu.vector_store %arg7[%c208, %c0_84], %79 {strides = array<i32>} : memref<216x1024xf32, #tpu.memory_space<vmem>>, vector<8x1024xf32>,
    %c0_85 = arith.constant 0 : index
    %c0_86 = arith.constant 0 : index
    %81 = vector.load %arg2[%c0_85, %c0_86] : memref<8x216xf32, #tpu.memory_space<vmem>>, vector<8x216xf32>
    %c0_87 = arith.constant 0 : index
    %c0_88 = arith.constant 0 : index
    %82 = vector.load %arg7[%c0_87, %c0_88] : memref<216x1024xf32, #tpu.memory_space<vmem>>, vector<216x1024xf32>
    %cst = arith.constant dense<0.000000e+00> : vector<8x1024xf32>
    %83 = tpu.matmul %81, %82, %cst {dimension_numbers = #tpu.dot_dimension_numbers<[1], [0], [0], [1], [0, 0, 1, 1], [], []>} : vector<8x216xf32>, vector<216x1024xf32>, vector<8x1024xf32> -> vector<8x1024xf32>
    %c0_89 = arith.constant 0 : index
    %c0_90 = arith.constant 0 : index
    %84 = vector.load %arg3[%c0_89, %c0_90] : memref<1x1024xf32, #tpu.memory_space<vmem>>, vector<1x1024xf32>
    %85 = vector.broadcast %84 : vector<1x1024xf32> to vector<8x1024xf32>
    %86 = arith.mulf %83, %85 : vector<8x1024xf32>
    %cst_91 = arith.constant dense<0.000000e+00> : vector<8xf32>
    %87 = vector.multi_reduction <add>, %86, %cst_91 [1] : vector<8x1024xf32> to vector<8xf32>
    %88 = vector.shape_cast %87 : vector<8xf32> to vector<8x1xf32>
    %89 = arith.mulf %86, %83 : vector<8x1024xf32>
    %cst_92 = arith.constant dense<0.000000e+00> : vector<8xf32>
    %90 = vector.multi_reduction <add>, %89, %cst_92 [1] : vector<8x1024xf32> to vector<8xf32>
    %91 = vector.shape_cast %90 : vector<8xf32> to vector<8x1xf32>
    %cst_93 = arith.constant 0.001953125 : f32
    %92 = vector.broadcast %cst_93 : f32 to vector<8x1xf32>
    %93 = arith.mulf %88, %92 : vector<8x1xf32>
    %cst_94 = arith.constant 0.001953125 : f32
    %94 = vector.broadcast %cst_94 : f32 to vector<8x1xf32>
    %95 = arith.mulf %91, %94 : vector<8x1xf32>
    %96 = arith.mulf %93, %93 : vector<8x1xf32>
    %97 = arith.subf %95, %96 : vector<8x1xf32>
    %cst_95 = arith.constant 0.000000e+00 : f32
    %98 = vector.broadcast %cst_95 : f32 to vector<8x1xf32>
    %99 = arith.maximumf %97, %98 : vector<8x1xf32>
    %cst_96 = arith.constant 9.99999974E-6 : f32
    %100 = vector.broadcast %cst_96 : f32 to vector<8x1xf32>
    %101 = arith.addf %99, %100 : vector<8x1xf32>
    %102 = math.rsqrt %101 : vector<8x1xf32>
    %c0_97 = arith.constant 0 : index
    %c0_98 = arith.constant 0 : index
    %103 = vector.load %arg4[%c0_97, %c0_98] : memref<8x1xf32, #tpu.memory_space<vmem>>, vector<8x1xf32>
    %104 = arith.mulf %102, %103 : vector<8x1xf32>
    %c0_99 = arith.constant 0 : index
    %c0_100 = arith.constant 0 : index
    %105 = vector.load %arg5[%c0_99, %c0_100] : memref<8x1xf32, #tpu.memory_space<vmem>>, vector<8x1xf32>
    %106 = arith.mulf %93, %104 : vector<8x1xf32>
    %107 = arith.subf %105, %106 : vector<8x1xf32>
    %108 = vector.broadcast %104 : vector<8x1xf32> to vector<8x1024xf32>
    %109 = arith.mulf %83, %108 : vector<8x1024xf32>
    %110 = vector.broadcast %107 : vector<8x1xf32> to vector<8x1024xf32>
    %111 = arith.addf %109, %110 : vector<8x1024xf32>
    %cst_101 = arith.constant 5.000000e-01 : f32
    %112 = vector.broadcast %cst_101 : f32 to vector<8x1024xf32>
    %113 = arith.mulf %112, %111 : vector<8x1024xf32>
    %cst_102 = arith.constant 0.707106769 : f32
    %114 = vector.broadcast %cst_102 : f32 to vector<8x1024xf32>
    %115 = arith.mulf %111, %114 : vector<8x1024xf32>
    %116 = math.erf %115 : vector<8x1024xf32>
    %cst_103 = arith.constant 1.000000e+00 : f32
    %117 = vector.broadcast %cst_103 : f32 to vector<8x1024xf32>
    %118 = arith.addf %117, %116 : vector<8x1024xf32>
    %119 = arith.mulf %113, %118 : vector<8x1024xf32>
    %c0_104 = arith.constant 0 : index
    %c0_105 = arith.constant 0 : index
    %c0_106 = arith.constant 0 : index
    %120 = vector.load %arg6[%c0_104, %c0_105, %c0_106] : memref<1x8x1024xf32, #tpu.memory_space<vmem>>, vector<1x8x1024xf32>
    %121 = vector.shape_cast %120 : vector<1x8x1024xf32> to vector<8x1024xf32>
    %122 = vector.shape_cast %119 : vector<8x1024xf32> to vector<1x8x1024xf32>
    tpu.vector_store %arg6[%c0_104, %c0_105, %c0_106], %122 {strides = array<i32>} : memref<1x8x1024xf32, #tpu.memory_space<vmem>>, vector<1x8x1024xf32>,
    return
  }
  func.func @transform_0(%arg0: i32) -> (i32, i32, i32) {
    %c0_i32 = arith.constant 0 : i32
    %c0_i32_0 = arith.constant 0 : i32
    %c0_i32_1 = arith.constant 0 : i32
    return %arg0, %c0_i32, %c0_i32_0 : i32, i32, i32
  }
  func.func @transform_1(%arg0: i32) -> (i32, i32) {
    %c0_i32 = arith.constant 0 : i32
    %c0_i32_0 = arith.constant 0 : i32
    %c0_i32_1 = arith.constant 0 : i32
    return %c0_i32, %c0_i32_0 : i32, i32
  }
  func.func @transform_2(%arg0: i32) -> (i32, i32) {
    %c0_i32 = arith.constant 0 : i32
    %c0_i32_0 = arith.constant 0 : i32
    %c0_i32_1 = arith.constant 0 : i32
    return %c0_i32, %c0_i32_0 : i32, i32
  }
  func.func @transform_3(%arg0: i32) -> (i32, i32) {
    %c0_i32 = arith.constant 0 : i32
    %c0_i32_0 = arith.constant 0 : i32
    %c0_i32_1 = arith.constant 0 : i32
    return %c0_i32, %c0_i32_0 : i32, i32
  }
  func.func @transform_4(%arg0: i32) -> (i32, i32) {
    %c0_i32 = arith.constant 0 : i32
    %c0_i32_0 = arith.constant 0 : i32
    %c0_i32_1 = arith.constant 0 : i32
    return %c0_i32, %c0_i32_0 : i32, i32
  }
  func.func @transform_5(%arg0: i32) -> (i32, i32, i32) {
    %c0_i32 = arith.constant 0 : i32
    %c0_i32_0 = arith.constant 0 : i32
    %c0_i32_1 = arith.constant 0 : i32
    return %arg0, %c0_i32, %c0_i32_0 : i32, i32, i32
  }
}

</mosaic_0001>

<llo_original>
// kernel: tpu_custom_call.1
$region0: #{tpu_custom_call.1}
  #allocation0 [shape = 'u32[]', space=smem, size = 0x4, offset = 0x4, fixed_abs, tag = 'smem constant byte address 0x4 - core index']
  #allocation1 [shape = 'u32[72,128]{1,0:T(1,128)}', space=vmem, size = 0x9000, scoped, tag = 'internal scratch']
  #allocation2 [shape = 'f32[216,1024]{1,0:T(8,128)}', space=vmem, size = 0xd8000, scoped, tag = 'scratch operand']
  %s0 = inlined_call_operand.hbm [shape: f32[2,8,1280], index: 0, kind: input, shape index: {}]
  %s1 = inlined_call_operand.vmem [shape: f32[8,216], index: 1, kind: input, shape index: {}]
  %s2 = inlined_call_operand.hbm [shape: f32[1,1024], index: 2, kind: input, shape index: {}]
  %s3 = inlined_call_operand.vmem [shape: f32[8,1], index: 3, kind: input, shape index: {}]
  %s4 = inlined_call_operand.vmem [shape: f32[8,1], index: 4, kind: input, shape index: {}]
  %s5 = inlined_call_operand.hbm [shape: f32[2,8,1024], index: 5, kind: output, shape index: {}]
  %s6 = sld [smem:[#allocation0]]
  $region61: #{tpu_custom_call.1} parent=0
    _
  %s8 = ssub.s32 1, %s6
  %s9 = scalar_select 0, %s8, %s6
  $region1: #{tpu_custom_call.1} parent=0
    #allocation3 [shape = 'u8[81920]{0}', space=vmem, size = 0x14000, scoped, tag = 'input window, operand 0']
    #allocation4 [shape = 's32[2]{0}', space=sflag, size = 0x8, scoped, tag = 'scoped memory for tpu_custom_call.1']
    #allocation5 [shape = 's32[2]{0}', space=sflag, size = 0x8, scoped, tag = 'scoped memory for tpu_custom_call.1']
    #allocation6 [shape = 'u8[4096]{0}', space=vmem, size = 0x1000, scoped, tag = 'input window, operand 2, single buffered']
    #allocation7 [shape = 's32[1]{0}', space=sflag, size = 0x4, scoped, tag = 'scoped memory for tpu_custom_call.1']
    #allocation8 [shape = 'u8[65536]{0}', space=vmem, size = 0x10000, scoped, tag = 'output window, operand 0']
    %10 = vsyncpa [#allocation4], 0
    %s11 = scalar_lea.sflag [#allocation4], 1
    %12 = vsyncpa %s11, 0
    %13 = vsyncpa [#allocation7], 0
    %14 = vsyncpa [#allocation5], 0
    %s15 = scalar_lea.sflag [#allocation5], 1
    %16 = vsyncpa %s15, 0
    loop: start=0, step=1, limit=4
    $region2: #{tpu_custom_call.1} parent=1 // loop_pre_header
      _
    $region3: #{tpu_custom_call.1} parent=1 // loop_header
      %s18 = sphi 0, %s22
      %p19 = scmp.ge.s32.totalorder %s18, 4
      %s28 = sphi 0, %s30
      %s31 = sphi 0, %s28
      %s32 = sphi 0, %s31
      %s48 = sphi 0, %s32
      %s52 = sphi 0, %s52
      %s54 = sphi 0, %s52
      %s55 = sphi 0, %s54
      %s69 = sphi 0, %s55
      %s73 = sphi 0, %s73
      %s75 = sphi 0, %s73
      %s76 = sphi 0, %s75
      %s90 = sphi 0, %s76
      %s94 = sphi 0, %s94
      %s96 = sphi 0, %s94
      %s97 = sphi 0, %s96
      %s111 = sphi 0, %s97
      %s115 = sphi 0, %s115
      %s117 = sphi 0, %s115
      %s118 = sphi 0, %s117
      %s132 = sphi 0, %s118
      %s138 = sphi 0, %s140
      %s141 = sphi 0, %s138
      %s142 = sphi 0, %s141
      %s158 = sphi 0, %s142
    $region4: #{tpu_custom_call.1} parent=1 // loop_header_branch
      %21 = sbr.rel (%p19) target = $region8
    $region5: #{tpu_custom_call.1} parent=1 // loop_body
      %s23 = ssub.s32 %s18, 1
      %s24 = ssub.s32 %s18, 2
      %s25 = sadd.s32 %s18, 1
      %s26 = ssub.s32 %s18, %s25
      %p27 = scmp.eq.s32.totalorder %s26, 0
      %s29 = sadd.s32 %s28, 1
      %s30 = scalar_select %p27, %s28, %s29
      %p33 = pneg %p27
      %p34 = scmp.eq.s32.totalorder %s18, 1
      %p35 = por %p33, %p34
      %p36 = scmp.ne.s32.totalorder %s28, %s31
      %p37 = scmp.eq.s32.totalorder %s18, 0
      %p38 = por %p36, %p37
      %p39 = scmp.ne.s32.totalorder %s28, %s31
      %p40 = scmp.eq.s32.totalorder %s23, 1
      %p41 = por %p39, %p40
      %p42 = scmp.ne.s32.totalorder %s31, %s32
      %p43 = scmp.eq.s32.totalorder %s23, 0
      %p44 = por %p42, %p43
      %p45 = scmp.ne.s32.totalorder %s31, %s32
      %p46 = scmp.eq.s32.totalorder %s24, 1
      %p47 = por %p45, %p46
      %p49 = scmp.ne.s32.totalorder %s32, %s48
      %p50 = scmp.eq.s32.totalorder %s24, 0
      %p51 = por %p49, %p50
      %s53 = sadd.s32 %s52, 1
      %p56 = scmp.eq.s32.totalorder %s18, 1
      %p57 = scmp.ne.s32.totalorder %s52, %s54
      %p58 = scmp.eq.s32.totalorder %s18, 0
      %p59 = por %p57, %p58
      %p60 = scmp.ne.s32.totalorder %s52, %s54
      %p61 = scmp.eq.s32.totalorder %s23, 1
      %p62 = por %p60, %p61
      %p63 = scmp.ne.s32.totalorder %s54, %s55
      %p64 = scmp.eq.s32.totalorder %s23, 0
      %p65 = por %p63, %p64
      %p66 = scmp.ne.s32.totalorder %s54, %s55
      %p67 = scmp.eq.s32.totalorder %s24, 1
      %p68 = por %p66, %p67
      %p70 = scmp.ne.s32.totalorder %s55, %s69
      %p71 = scmp.eq.s32.totalorder %s24, 0
      %p72 = por %p70, %p71
      %s74 = sadd.s32 %s73, 1
      %p77 = scmp.eq.s32.totalorder %s18, 1
      %p78 = scmp.ne.s32.totalorder %s73, %s75
      %p79 = scmp.eq.s32.totalorder %s18, 0
      %p80 = por %p78, %p79
      %p81 = scmp.ne.s32.totalorder %s73, %s75
      %p82 = scmp.eq.s32.totalorder %s23, 1
      %p83 = por %p81, %p82
      %p84 = scmp.ne.s32.totalorder %s75, %s76
      %p85 = scmp.eq.s32.totalorder %s23, 0
      %p86 = por %p84, %p85
      %p87 = scmp.ne.s32.totalorder %s75, %s76
      %p88 = scmp.eq.s32.totalorder %s24, 1
      %p89 = por %p87, %p88
      %p91 = scmp.ne.s32.totalorder %s76, %s90
      %p92 = scmp.eq.s32.totalorder %s24, 0
      %p93 = por %p91, %p92
      %s95 = sadd.s32 %s94, 1
      %p98 = scmp.eq.s32.totalorder %s18, 1
      %p99 = scmp.ne.s32.totalorder %s94, %s96
      %p100 = scmp.eq.s32.totalorder %s18, 0
      %p101 = por %p99, %p100
      %p102 = scmp.ne.s32.totalorder %s94, %s96
      %p103 = scmp.eq.s32.totalorder %s23, 1
      %p104 = por %p102, %p103
      %p105 = scmp.ne.s32.totalorder %s96, %s97
      %p106 = scmp.eq.s32.totalorder %s23, 0
      %p107 = por %p105, %p106
      %p108 = scmp.ne.s32.totalorder %s96, %s97
      %p109 = scmp.eq.s32.totalorder %s24, 1
      %p110 = por %p108, %p109
      %p112 = scmp.ne.s32.totalorder %s97, %s111
      %p113 = scmp.eq.s32.totalorder %s24, 0
      %p114 = por %p112, %p113
      %s116 = sadd.s32 %s115, 1
      %p119 = scmp.eq.s32.totalorder %s18, 1
      %p120 = scmp.ne.s32.totalorder %s115, %s117
      %p121 = scmp.eq.s32.totalorder %s18, 0
      %p122 = por %p120, %p121
      %p123 = scmp.ne.s32.totalorder %s115, %s117
      %p124 = scmp.eq.s32.totalorder %s23, 1
      %p125 = por %p123, %p124
      %p126 = scmp.ne.s32.totalorder %s117, %s118
      %p127 = scmp.eq.s32.totalorder %s23, 0
      %p128 = por %p126, %p127
      %p129 = scmp.ne.s32.totalorder %s117, %s118
      %p130 = scmp.eq.s32.totalorder %s24, 1
      %p131 = por %p129, %p130
      %p133 = scmp.ne.s32.totalorder %s118, %s132
      %p134 = scmp.eq.s32.totalorder %s24, 0
      %p135 = por %p133, %p134
      %s136 = ssub.s32 %s18, %s25
      %p137 = scmp.eq.s32.totalorder %s136, 0
      %s139 = sadd.s32 %s138, 1
      %s140 = scalar_select %p137, %s138, %s139
      %p143 = pneg %p137
      %p144 = scmp.eq.s32.totalorder %s18, 1
      %p145 = por %p143, %p144
      %p146 = scmp.ne.s32.totalorder %s138, %s141
      %p147 = scmp.eq.s32.totalorder %s18, 0
      %p148 = por %p146, %p147
      %p149 = scmp.ne.s32.totalorder %s138, %s141
      %p150 = scmp.eq.s32.totalorder %s23, 1
      %p151 = por %p149, %p150
      %p152 = scmp.ne.s32.totalorder %s141, %s142
      %p153 = scmp.eq.s32.totalorder %s23, 0
      %p154 = por %p152, %p153
      %p155 = scmp.ne.s32.totalorder %s141, %s142
      %p156 = scmp.eq.s32.totalorder %s24, 1
      %p157 = por %p155, %p156
      %p159 = scmp.ne.s32.totalorder %s142, %s158
      %p160 = scmp.eq.s32.totalorder %s24, 0
      %p161 = por %p159, %p160
      %p162 = scmp.le.s32.totalorder 1, %s18
      %p163 = scmp.lt.s32.totalorder %s18, 3
      %p164 = pnand %p162, %p163
      %p165 = pneg %p164
      // Predicated region
      $region9: #{tpu_custom_call.1} parent=5 // pred_check
        _
      $region10: #{tpu_custom_call.1} parent=5 // pred_check_branch
        %167 = sbr.rel (%p164) target = $region12
      $region11: #{tpu_custom_call.1} parent=5 // pred_region
        %s168 = ssub.s32 %s18, 1
        // Predicated region
        $region13: #{tpu_custom_call.1} parent=11 // pred_check
          %p169 = pneg %p65
        $region14: #{tpu_custom_call.1} parent=11 // pred_check_branch
          %171 = sbr.rel (%p169) target = $region16
        $region15: #{tpu_custom_call.1} parent=11 // pred_region
          _
        $region16: #{tpu_custom_call.1} parent=11 // pred_fallthru
          _
        // Predicated region
        $region17: #{tpu_custom_call.1} parent=11 // pred_check
          %p172 = pneg %p86
        $region18: #{tpu_custom_call.1} parent=11 // pred_check_branch
          %174 = sbr.rel (%p172) target = $region20
        $region19: #{tpu_custom_call.1} parent=11 // pred_region
          %176 = vsyncadd [#allocation7], 0
          %s178 = sshll.u32 %s2, 4
          %s179 = int_to_ptr.hbm [resolvable:$true] %s178
          %s180 = sshll.u32 [#allocation6], 4
          %s181 = int_to_ptr.vmem [resolvable:$true] %s180
          %183 = dma.hbm_to_vmem [thread:$0]  %s179, 128, %s181, [#allocation7]
        $region20: #{tpu_custom_call.1} parent=11 // pred_fallthru
          _
        // Predicated region
        $region21: #{tpu_custom_call.1} parent=11 // pred_check
          %p184 = pneg %p107
        $region22: #{tpu_custom_call.1} parent=11 // pred_check_branch
          %186 = sbr.rel (%p184) target = $region24
        $region23: #{tpu_custom_call.1} parent=11 // pred_region
          _
        $region24: #{tpu_custom_call.1} parent=11 // pred_fallthru
          _
        // Predicated region
        $region25: #{tpu_custom_call.1} parent=11 // pred_check
          %p187 = pneg %p128
        $region26: #{tpu_custom_call.1} parent=11 // pred_check_branch
          %189 = sbr.rel (%p187) target = $region28
        $region27: #{tpu_custom_call.1} parent=11 // pred_region
          _
        $region28: #{tpu_custom_call.1} parent=11 // pred_fallthru
          _
      $region12: #{tpu_custom_call.1} parent=5 // pred_fallthru
        _
      %p190 = scmp.lt.s32.totalorder %s18, 2
      // Predicated region
      $region29: #{tpu_custom_call.1} parent=5 // pred_check
        %p191 = pneg %p190
      $region30: #{tpu_custom_call.1} parent=5 // pred_check_branch
        %193 = sbr.rel (%p191) target = $region32
      $region31: #{tpu_custom_call.1} parent=5 // pred_region
        // Predicated region
        $region33: #{tpu_custom_call.1} parent=31 // pred_check
          %p194 = pneg %p38
        $region34: #{tpu_custom_call.1} parent=31 // pred_check_branch
          %196 = sbr.rel (%p194) target = $region36
        $region35: #{tpu_custom_call.1} parent=31 // pred_region
          %s197 = sand.u32 %s28, 1
          %s198 = scalar_lea.sflag [#allocation4], %s197
          %s199 = sand.u32 %s28, 1
          %s200 = smul.addr %s199, 80
          %s201 = scalar_lea.vmem [#allocation3], %s200
          %203 = vsyncadd %s198, 0
          %s204 = smul.addr %s18, 10
          %s205 = smul.addr %s204, 8
          %s206 = scalar_lea.hbm %s0, %s205
          %s208 = sshll.u32 %s206, 4
          %s209 = int_to_ptr.hbm [resolvable:$true] %s208
          %s210 = sshll.u32 %s201, 4
          %s211 = int_to_ptr.vmem [resolvable:$true] %s210
          %213 = dma.hbm_to_vmem [thread:$0]  %s209, 1280, %s211, %s198
        $region36: #{tpu_custom_call.1} parent=31 // pred_fallthru
          _
      $region32: #{tpu_custom_call.1} parent=5 // pred_fallthru
        _
      %p214 = scmp.le.s32.totalorder 1, %s18
      %p215 = scmp.lt.s32.totalorder %s18, 3
      %p216 = pnand %p214, %p215
      %p217 = pneg %p216
      // Predicated region
      $region37: #{tpu_custom_call.1} parent=5 // pred_check
        _
      $region38: #{tpu_custom_call.1} parent=5 // pred_check_branch
        %219 = sbr.rel (%p216) target = $region40
      $region39: #{tpu_custom_call.1} parent=5 // pred_region
        %s220 = ssub.s32 %s18, 1
        %s221 = sand.u32 %s31, 1
        %s222 = scalar_lea.sflag [#allocation4], %s221
        %s223 = sand.u32 %s31, 1
        %s224 = smul.addr %s223, 80
        %s225 = scalar_lea.vmem [#allocation3], %s224
        // Predicated region
        $region41: #{tpu_custom_call.1} parent=39 // pred_check
          %p226 = pneg %p44
        $region42: #{tpu_custom_call.1} parent=39 // pred_check_branch
          %228 = sbr.rel (%p226) target = $region44
        $region43: #{tpu_custom_call.1} parent=39 // pred_region
          %230 = dma.done %s222, 1280
        $region44: #{tpu_custom_call.1} parent=39 // pred_fallthru
          _
        // Predicated region
        $region45: #{tpu_custom_call.1} parent=39 // pred_check
          %p231 = pneg %p86
        $region46: #{tpu_custom_call.1} parent=39 // pred_check_branch
          %233 = sbr.rel (%p231) target = $region48
        $region47: #{tpu_custom_call.1} parent=39 // pred_region
          %235 = dma.done [#allocation7], 128
        $region48: #{tpu_custom_call.1} parent=39 // pred_fallthru
          _
        %s236 = sand.u32 %s31, 1
        %s237 = scalar_lea.sflag [#allocation4], %s236
        %s238 = sand.u32 %s31, 1
        %s239 = smul.addr %s238, 80
        %s240 = scalar_lea.vmem [#allocation3], %s239
        %p241 = pneg %p44
        %p242 = pneg %p41
        %p243 = pneg %p65
        %p244 = pneg %p62
        %p245 = pneg %p86
        %p246 = pneg %p83
        %p247 = pneg %p107
        %p248 = pneg %p104
        %p249 = pneg %p128
        %p250 = pneg %p125
        %p251 = pneg %p154
        %p252 = pneg %p151
        %s253 = sand.u32 %s141, 1
        %s254 = scalar_lea.sflag [#allocation5], %s253
        %s255 = sand.u32 %s141, 1
        %s256 = smul.addr %s255, 64
        %s257 = scalar_lea.vmem [#allocation8], %s256
        %v258 = vld [vmem:[%s225] sm:$0xff]
        %v259 = vld [vmem:[%s225 + $0x8] sm:$0xff]
        %v260 = vld [vmem:[%s225 + $0x10] sm:$0xff]
        %v261 = vld [vmem:[%s225 + $0x18] sm:$0xff]
        %v262 = vld [vmem:[%s225 + $0x20] sm:$0xff]
        %v263 = vld [vmem:[%s225 + $0x28] sm:$0xff]
        %v264 = vld [vmem:[%s225 + $0x30] sm:$0xff]
        %v265 = vld [vmem:[%s225 + $0x38] sm:$0xff]
        %266 = vst [vmem:[#allocation2] sm:$0xff] %v258
        %267 = vst [vmem:[#allocation2 + $0x8] sm:$0xff] %v259
        %268 = vst [vmem:[#allocation2 + $0x10] sm:$0xff] %v260
        %269 = vst [vmem:[#allocation2 + $0x18] sm:$0xff] %v261
        %270 = vst [vmem:[#allocation2 + $0x20] sm:$0xff] %v262
        %271 = vst [vmem:[#allocation2 + $0x28] sm:$0xff] %v263
        %272 = vst [vmem:[#allocation2 + $0x30] sm:$0xff] %v264
        %273 = vst [vmem:[#allocation2 + $0x38] sm:$0xff] %v265
        %v274 = vld [vmem:[%s225] sm:$0xff]
        %v275 = vld [vmem:[%s225 + $0x8] sm:$0xff]
        %v276 = vld [vmem:[%s225 + $0x10] sm:$0xff]
        %v277 = vld [vmem:[%s225 + $0x18] sm:$0xff]
        %v278 = vld [vmem:[%s225 + $0x20] sm:$0xff]
        %v279 = vld [vmem:[%s225 + $0x28] sm:$0xff]
        %v280 = vld [vmem:[%s225 + $0x30] sm:$0xff]
        %v281 = vld [vmem:[%s225 + $0x38] sm:$0xff]
        %v282 = vld [vmem:[%s225 + $0x40] sm:$0xff]
        %292 = vrot.lane.b32.xlu0 %v274, 127
        %v293 = vpop.permute.xlu0 %292
        %294 = vrot.lane.b32.xlu0 %v275, 127
        %v295 = vpop.permute.xlu0 %294
        %296 = vrot.lane.b32.xlu0 %v276, 127
        %v297 = vpop.permute.xlu0 %296
        %298 = vrot.lane.b32.xlu0 %v277, 127
        %v299 = vpop.permute.xlu0 %298
        %300 = vrot.lane.b32.xlu0 %v278, 127
        %v301 = vpop.permute.xlu0 %300
        %302 = vrot.lane.b32.xlu0 %v279, 127
        %v303 = vpop.permute.xlu0 %302
        %304 = vrot.lane.b32.xlu0 %v280, 127
        %v305 = vpop.permute.xlu0 %304
        %306 = vrot.lane.b32.xlu0 %v281, 127
        %v307 = vpop.permute.xlu0 %306
        %308 = vrot.lane.b32.xlu0 %v282, 127
        %v309 = vpop.permute.xlu0 %308
        %vm310 = vcmask 1039360
        %v311 = vsel %vm310, %v293, %v295
        %v312 = vsel %vm310, %v295, %v297
        %v313 = vsel %vm310, %v297, %v299
        %v314 = vsel %vm310, %v299, %v301
        %v315 = vsel %vm310, %v301, %v303
        %v316 = vsel %vm310, %v303, %v305
        %v317 = vsel %vm310, %v305, %v307
        %v318 = vsel %vm310, %v307, %v309
        %327 = vst [vmem:[#allocation2 + $0x40] sm:$0xff] %v311
        %328 = vst [vmem:[#allocation2 + $0x48] sm:$0xff] %v312
        %329 = vst [vmem:[#allocation2 + $0x50] sm:$0xff] %v313
        %330 = vst [vmem:[#allocation2 + $0x58] sm:$0xff] %v314
        %331 = vst [vmem:[#allocation2 + $0x60] sm:$0xff] %v315
        %332 = vst [vmem:[#allocation2 + $0x68] sm:$0xff] %v316
        %333 = vst [vmem:[#allocation2 + $0x70] sm:$0xff] %v317
        %334 = vst [vmem:[#allocation2 + $0x78] sm:$0xff] %v318
        %v335 = vld [vmem:[%s225] sm:$0xff]
        %v336 = vld [vmem:[%s225 + $0x8] sm:$0xff]
        %v337 = vld [vmem:[%s225 + $0x10] sm:$0xff]
        %v338 = vld [vmem:[%s225 + $0x18] sm:$0xff]
        %v339 = vld [vmem:[%s225 + $0x20] sm:$0xff]
        %v340 = vld [vmem:[%s225 + $0x28] sm:$0xff]
        %v341 = vld [vmem:[%s225 + $0x30] sm:$0xff]
        %v342 = vld [vmem:[%s225 + $0x38] sm:$0xff]
        %v343 = vld [vmem:[%s225 + $0x40] sm:$0xff]
        %353 = vrot.lane.b32.xlu0 %v335, 126
        %v354 = vpop.permute.xlu0 %353
        %355 = vrot.lane.b32.xlu0 %v336, 126
        %v356 = vpop.permute.xlu0 %355
        %357 = vrot.lane.b32.xlu0 %v337, 126
        %v358 = vpop.permute.xlu0 %357
        %359 = vrot.lane.b32.xlu0 %v338, 126
        %v360 = vpop.permute.xlu0 %359
        %361 = vrot.lane.b32.xlu0 %v339, 126
        %v362 = vpop.permute.xlu0 %361
        %363 = vrot.lane.b32.xlu0 %v340, 126
        %v364 = vpop.permute.xlu0 %363
        %365 = vrot.lane.b32.xlu0 %v341, 126
        %v366 = vpop.permute.xlu0 %365
        %367 = vrot.lane.b32.xlu0 %v342, 126
        %v368 = vpop.permute.xlu0 %367
        %369 = vrot.lane.b32.xlu0 %v343, 126
        %v370 = vpop.permute.xlu0 %369
        %vm371 = vcmask 1031168
        %v372 = vsel %vm371, %v354, %v356
        %v373 = vsel %vm371, %v356, %v358
        %v374 = vsel %vm371, %v358, %v360
        %v375 = vsel %vm371, %v360, %v362
        %v376 = vsel %vm371, %v362, %v364
        %v377 = vsel %vm371, %v364, %v366
        %v378 = vsel %vm371, %v366, %v368
        %v379 = vsel %vm371, %v368, %v370
        %388 = vst [vmem:[#allocation2 + $0x80] sm:$0xff] %v372
        %389 = vst [vmem:[#allocation2 + $0x88] sm:$0xff] %v373
        %390 = vst [vmem:[#allocation2 + $0x90] sm:$0xff] %v374
        %391 = vst [vmem:[#allocation2 + $0x98] sm:$0xff] %v375
        %392 = vst [vmem:[#allocation2 + $0xa0] sm:$0xff] %v376
        %393 = vst [vmem:[#allocation2 + $0xa8] sm:$0xff] %v377
        %394 = vst [vmem:[#allocation2 + $0xb0] sm:$0xff] %v378
        %395 = vst [vmem:[#allocation2 + $0xb8] sm:$0xff] %v379
        %v396 = vld [vmem:[%s225] sm:$0xff]
        %v397 = vld [vmem:[%s225 + $0x8] sm:$0xff]
        %v398 = vld [vmem:[%s225 + $0x10] sm:$0xff]
        %v399 = vld [vmem:[%s225 + $0x18] sm:$0xff]
        %v400 = vld [vmem:[%s225 + $0x20] sm:$0xff]
        %v401 = vld [vmem:[%s225 + $0x28] sm:$0xff]
        %v402 = vld [vmem:[%s225 + $0x30] sm:$0xff]
        %v403 = vld [vmem:[%s225 + $0x38] sm:$0xff]
        %v404 = vld [vmem:[%s225 + $0x40] sm:$0xff]
        %414 = vrot.lane.b32.xlu0 %v396, 118
        %v415 = vpop.permute.xlu0 %414
        %416 = vrot.lane.b32.xlu0 %v397, 118
        %v417 = vpop.permute.xlu0 %416
        %418 = vrot.lane.b32.xlu0 %v398, 118
        %v419 = vpop.permute.xlu0 %418
        %420 = vrot.lane.b32.xlu0 %v399, 118
        %v421 = vpop.permute.xlu0 %420
        %422 = vrot.lane.b32.xlu0 %v400, 118
        %v423 = vpop.permute.xlu0 %422
        %424 = vrot.lane.b32.xlu0 %v401, 118
        %v425 = vpop.permute.xlu0 %424
        %426 = vrot.lane.b32.xlu0 %v402, 118
        %v427 = vpop.permute.xlu0 %426
        %428 = vrot.lane.b32.xlu0 %v403, 118
        %v429 = vpop.permute.xlu0 %428
        %430 = vrot.lane.b32.xlu0 %v404, 118
        %v431 = vpop.permute.xlu0 %430
        %vm432 = vcmask 965632
        %v433 = vsel %vm432, %v415, %v417
        %v434 = vsel %vm432, %v417, %v419
        %v435 = vsel %vm432, %v419, %v421
        %v436 = vsel %vm432, %v421, %v423
        %v437 = vsel %vm432, %v423, %v425
        %v438 = vsel %vm432, %v425, %v427
        %v439 = vsel %vm432, %v427, %v429
        %v440 = vsel %vm432, %v429, %v431
        %449 = vst [vmem:[#allocation2 + $0xc0] sm:$0xff] %v433
        %450 = vst [vmem:[#allocation2 + $0xc8] sm:$0xff] %v434
        %451 = vst [vmem:[#allocation2 + $0xd0] sm:$0xff] %v435
        %452 = vst [vmem:[#allocation2 + $0xd8] sm:$0xff] %v436
        %453 = vst [vmem:[#allocation2 + $0xe0] sm:$0xff] %v437
        %454 = vst [vmem:[#allocation2 + $0xe8] sm:$0xff] %v438
        %455 = vst [vmem:[#allocation2 + $0xf0] sm:$0xff] %v439
        %456 = vst [vmem:[#allocation2 + $0xf8] sm:$0xff] %v440
        %v457 = vld [vmem:[%s225] sm:$0xff]
        %v458 = vld [vmem:[%s225 + $0x8] sm:$0xff]
        %v459 = vld [vmem:[%s225 + $0x10] sm:$0xff]
        %v460 = vld [vmem:[%s225 + $0x18] sm:$0xff]
        %v461 = vld [vmem:[%s225 + $0x20] sm:$0xff]
        %v462 = vld [vmem:[%s225 + $0x28] sm:$0xff]
        %v463 = vld [vmem:[%s225 + $0x30] sm:$0xff]
        %v464 = vld [vmem:[%s225 + $0x38] sm:$0xff]
        %v465 = vld [vmem:[%s225 + $0x40] sm:$0xff]
        %475 = vrot.lane.b32.xlu0 %v457, 117
        %v476 = vpop.permute.xlu0 %475
        %477 = vrot.lane.b32.xlu0 %v458, 117
        %v478 = vpop.permute.xlu0 %477
        %479 = vrot.lane.b32.xlu0 %v459, 117
        %v480 = vpop.permute.xlu0 %479
        %481 = vrot.lane.b32.xlu0 %v460, 117
        %v482 = vpop.permute.xlu0 %481
        %483 = vrot.lane.b32.xlu0 %v461, 117
        %v484 = vpop.permute.xlu0 %483
        %485 = vrot.lane.b32.xlu0 %v462, 117
        %v486 = vpop.permute.xlu0 %485
        %487 = vrot.lane.b32.xlu0 %v463, 117
        %v488 = vpop.permute.xlu0 %487
        %489 = vrot.lane.b32.xlu0 %v464, 117
        %v490 = vpop.permute.xlu0 %489
        %491 = vrot.lane.b32.xlu0 %v465, 117
        %v492 = vpop.permute.xlu0 %491
        %vm493 = vcmask 957440
        %v494 = vsel %vm493, %v476, %v478
        %v495 = vsel %vm493, %v478, %v480
        %v496 = vsel %vm493, %v480, %v482
        %v497 = vsel %vm493, %v482, %v484
        %v498 = vsel %vm493, %v484, %v486
        %v499 = vsel %vm493, %v486, %v488
        %v500 = vsel %vm493, %v488, %v490
        %v501 = vsel %vm493, %v490, %v492
        %510 = vst [vmem:[#allocation2 + $0x100] sm:$0xff] %v494
        %511 = vst [vmem:[#allocation2 + $0x108] sm:$0xff] %v495
        %512 = vst [vmem:[#allocation2 + $0x110] sm:$0xff] %v496
        %513 = vst [vmem:[#allocation2 + $0x118] sm:$0xff] %v497
        %514 = vst [vmem:[#allocation2 + $0x120] sm:$0xff] %v498
        %515 = vst [vmem:[#allocation2 + $0x128] sm:$0xff] %v499
        %516 = vst [vmem:[#allocation2 + $0x130] sm:$0xff] %v500
        %517 = vst [vmem:[#allocation2 + $0x138] sm:$0xff] %v501
        %v518 = vld [vmem:[%s225] sm:$0xff]
        %v519 = vld [vmem:[%s225 + $0x8] sm:$0xff]
        %v520 = vld [vmem:[%s225 + $0x10] sm:$0xff]
        %v521 = vld [vmem:[%s225 + $0x18] sm:$0xff]
        %v522 = vld [vmem:[%s225 + $0x20] sm:$0xff]
        %v523 = vld [vmem:[%s225 + $0x28] sm:$0xff]
        %v524 = vld [vmem:[%s225 + $0x30] sm:$0xff]
        %v525 = vld [vmem:[%s225 + $0x38] sm:$0xff]
        %v526 = vld [vmem:[%s225 + $0x40] sm:$0xff]
        %536 = vrot.lane.b32.xlu0 %v518, 116
        %v537 = vpop.permute.xlu0 %536
        %538 = vrot.lane.b32.xlu0 %v519, 116
        %v539 = vpop.permute.xlu0 %538
        %540 = vrot.lane.b32.xlu0 %v520, 116
        %v541 = vpop.permute.xlu0 %540
        %542 = vrot.lane.b32.xlu0 %v521, 116
        %v543 = vpop.permute.xlu0 %542
        %544 = vrot.lane.b32.xlu0 %v522, 116
        %v545 = vpop.permute.xlu0 %544
        %546 = vrot.lane.b32.xlu0 %v523, 116
        %v547 = vpop.permute.xlu0 %546
        %548 = vrot.lane.b32.xlu0 %v524, 116
        %v549 = vpop.permute.xlu0 %548
        %550 = vrot.lane.b32.xlu0 %v525, 116
        %v551 = vpop.permute.xlu0 %550
        %552 = vrot.lane.b32.xlu0 %v526, 116
        %v553 = vpop.permute.xlu0 %552
        %vm554 = vcmask 949248
        %v555 = vsel %vm554, %v537, %v539
        %v556 = vsel %vm554, %v539, %v541
        %v557 = vsel %vm554, %v541, %v543
        %v558 = vsel %vm554, %v543, %v545
        %v559 = vsel %vm554, %v545, %v547
        %v560 = vsel %vm554, %v547, %v549
        %v561 = vsel %vm554, %v549, %v551
        %v562 = vsel %vm554, %v551, %v553
        %571 = vst [vmem:[#allocation2 + $0x140] sm:$0xff] %v555
        %572 = vst [vmem:[#allocation2 + $0x148] sm:$0xff] %v556
        %573 = vst [vmem:[#allocation2 + $0x150] sm:$0xff] %v557
        %574 = vst [vmem:[#allocation2 + $0x158] sm:$0xff] %v558
        %575 = vst [vmem:[#allocation2 + $0x160] sm:$0xff] %v559
        %576 = vst [vmem:[#allocation2 + $0x168] sm:$0xff] %v560
        %577 = vst [vmem:[#allocation2 + $0x170] sm:$0xff] %v561
        %578 = vst [vmem:[#allocation2 + $0x178] sm:$0xff] %v562
        %v579 = vld [vmem:[%s225] sm:$0xff]
        %v580 = vld [vmem:[%s225 + $0x8] sm:$0xff]
        %v581 = vld [vmem:[%s225 + $0x10] sm:$0xff]
        %v582 = vld [vmem:[%s225 + $0x18] sm:$0xff]
        %v583 = vld [vmem:[%s225 + $0x20] sm:$0xff]
        %v584 = vld [vmem:[%s225 + $0x28] sm:$0xff]
        %v585 = vld [vmem:[%s225 + $0x30] sm:$0xff]
        %v586 = vld [vmem:[%s225 + $0x38] sm:$0xff]
        %v587 = vld [vmem:[%s225 + $0x40] sm:$0xff]
        %597 = vrot.lane.b32.xlu0 %v579, 108
        %v598 = vpop.permute.xlu0 %597
        %599 = vrot.lane.b32.xlu0 %v580, 108
        %v600 = vpop.permute.xlu0 %599
        %601 = vrot.lane.b32.xlu0 %v581, 108
        %v602 = vpop.permute.xlu0 %601
        %603 = vrot.lane.b32.xlu0 %v582, 108
        %v604 = vpop.permute.xlu0 %603
        %605 = vrot.lane.b32.xlu0 %v583, 108
        %v606 = vpop.permute.xlu0 %605
        %607 = vrot.lane.b32.xlu0 %v584, 108
        %v608 = vpop.permute.xlu0 %607
        %609 = vrot.lane.b32.xlu0 %v585, 108
        %v610 = vpop.permute.xlu0 %609
        %611 = vrot.lane.b32.xlu0 %v586, 108
        %v612 = vpop.permute.xlu0 %611
        %613 = vrot.lane.b32.xlu0 %v587, 108
        %v614 = vpop.permute.xlu0 %613
        %vm615 = vcmask 883712
        %v616 = vsel %vm615, %v598, %v600
        %v617 = vsel %vm615, %v600, %v602
        %v618 = vsel %vm615, %v602, %v604
        %v619 = vsel %vm615, %v604, %v606
        %v620 = vsel %vm615, %v606, %v608
        %v621 = vsel %vm615, %v608, %v610
        %v622 = vsel %vm615, %v610, %v612
        %v623 = vsel %vm615, %v612, %v614
        %632 = vst [vmem:[#allocation2 + $0x180] sm:$0xff] %v616
        %633 = vst [vmem:[#allocation2 + $0x188] sm:$0xff] %v617
        %634 = vst [vmem:[#allocation2 + $0x190] sm:$0xff] %v618
        %635 = vst [vmem:[#allocation2 + $0x198] sm:$0xff] %v619
        %636 = vst [vmem:[#allocation2 + $0x1a0] sm:$0xff] %v620
        %637 = vst [vmem:[#allocation2 + $0x1a8] sm:$0xff] %v621
        %638 = vst [vmem:[#allocation2 + $0x1b0] sm:$0xff] %v622
        %639 = vst [vmem:[#allocation2 + $0x1b8] sm:$0xff] %v623
        %v640 = vld [vmem:[%s225] sm:$0xff]
        %v641 = vld [vmem:[%s225 + $0x8] sm:$0xff]
        %v642 = vld [vmem:[%s225 + $0x10] sm:$0xff]
        %v643 = vld [vmem:[%s225 + $0x18] sm:$0xff]
        %v644 = vld [vmem:[%s225 + $0x20] sm:$0xff]
        %v645 = vld [vmem:[%s225 + $0x28] sm:$0xff]
        %v646 = vld [vmem:[%s225 + $0x30] sm:$0xff]
        %v647 = vld [vmem:[%s225 + $0x38] sm:$0xff]
        %v648 = vld [vmem:[%s225 + $0x40] sm:$0xff]
        %658 = vrot.lane.b32.xlu0 %v640, 107
        %v659 = vpop.permute.xlu0 %658
        %660 = vrot.lane.b32.xlu0 %v641, 107
        %v661 = vpop.permute.xlu0 %660
        %662 = vrot.lane.b32.xlu0 %v642, 107
        %v663 = vpop.permute.xlu0 %662
        %664 = vrot.lane.b32.xlu0 %v643, 107
        %v665 = vpop.permute.xlu0 %664
        %666 = vrot.lane.b32.xlu0 %v644, 107
        %v667 = vpop.permute.xlu0 %666
        %668 = vrot.lane.b32.xlu0 %v645, 107
        %v669 = vpop.permute.xlu0 %668
        %670 = vrot.lane.b32.xlu0 %v646, 107
        %v671 = vpop.permute.xlu0 %670
        %672 = vrot.lane.b32.xlu0 %v647, 107
        %v673 = vpop.permute.xlu0 %672
        %674 = vrot.lane.b32.xlu0 %v648, 107
        %v675 = vpop.permute.xlu0 %674
        %vm676 = vcmask 875520
        %v677 = vsel %vm676, %v659, %v661
        %v678 = vsel %vm676, %v661, %v663
        %v679 = vsel %vm676, %v663, %v665
        %v680 = vsel %vm676, %v665, %v667
        %v681 = vsel %vm676, %v667, %v669
        %v682 = vsel %vm676, %v669, %v671
        %v683 = vsel %vm676, %v671, %v673
        %v684 = vsel %vm676, %v673, %v675
        %693 = vst [vmem:[#allocation2 + $0x1c0] sm:$0xff] %v677
        %694 = vst [vmem:[#allocation2 + $0x1c8] sm:$0xff] %v678
        %695 = vst [vmem:[#allocation2 + $0x1d0] sm:$0xff] %v679
        %696 = vst [vmem:[#allocation2 + $0x1d8] sm:$0xff] %v680
        %697 = vst [vmem:[#allocation2 + $0x1e0] sm:$0xff] %v681
        %698 = vst [vmem:[#allocation2 + $0x1e8] sm:$0xff] %v682
        %699 = vst [vmem:[#allocation2 + $0x1f0] sm:$0xff] %v683
        %700 = vst [vmem:[#allocation2 + $0x1f8] sm:$0xff] %v684
        %v701 = vld [vmem:[%s225] sm:$0xff]
        %v702 = vld [vmem:[%s225 + $0x8] sm:$0xff]
        %v703 = vld [vmem:[%s225 + $0x10] sm:$0xff]
        %v704 = vld [vmem:[%s225 + $0x18] sm:$0xff]
        %v705 = vld [vmem:[%s225 + $0x20] sm:$0xff]
        %v706 = vld [vmem:[%s225 + $0x28] sm:$0xff]
        %v707 = vld [vmem:[%s225 + $0x30] sm:$0xff]
        %v708 = vld [vmem:[%s225 + $0x38] sm:$0xff]
        %v709 = vld [vmem:[%s225 + $0x40] sm:$0xff]
        %719 = vrot.lane.b32.xlu0 %v701, 106
        %v720 = vpop.permute.xlu0 %719
        %721 = vrot.lane.b32.xlu0 %v702, 106
        %v722 = vpop.permute.xlu0 %721
        %723 = vrot.lane.b32.xlu0 %v703, 106
        %v724 = vpop.permute.xlu0 %723
        %725 = vrot.lane.b32.xlu0 %v704, 106
        %v726 = vpop.permute.xlu0 %725
        %727 = vrot.lane.b32.xlu0 %v705, 106
        %v728 = vpop.permute.xlu0 %727
        %729 = vrot.lane.b32.xlu0 %v706, 106
        %v730 = vpop.permute.xlu0 %729
        %731 = vrot.lane.b32.xlu0 %v707, 106
        %v732 = vpop.permute.xlu0 %731
        %733 = vrot.lane.b32.xlu0 %v708, 106
        %v734 = vpop.permute.xlu0 %733
        %735 = vrot.lane.b32.xlu0 %v709, 106
        %v736 = vpop.permute.xlu0 %735
        %vm737 = vcmask 867328
        %v738 = vsel %vm737, %v720, %v722
        %v739 = vsel %vm737, %v722, %v724
        %v740 = vsel %vm737, %v724, %v726
        %v741 = vsel %vm737, %v726, %v728
        %v742 = vsel %vm737, %v728, %v730
        %v743 = vsel %vm737, %v730, %v732
        %v744 = vsel %vm737, %v732, %v734
        %v745 = vsel %vm737, %v734, %v736
        %754 = vst [vmem:[#allocation2 + $0x200] sm:$0xff] %v738
        %755 = vst [vmem:[#allocation2 + $0x208] sm:$0xff] %v739
        %756 = vst [vmem:[#allocation2 + $0x210] sm:$0xff] %v740
        %757 = vst [vmem:[#allocation2 + $0x218] sm:$0xff] %v741
        %758 = vst [vmem:[#allocation2 + $0x220] sm:$0xff] %v742
        %759 = vst [vmem:[#allocation2 + $0x228] sm:$0xff] %v743
        %760 = vst [vmem:[#allocation2 + $0x230] sm:$0xff] %v744
        %761 = vst [vmem:[#allocation2 + $0x238] sm:$0xff] %v745
        %v762 = vld [vmem:[%s225] sm:$0xff]
        %v763 = vld [vmem:[%s225 + $0x8] sm:$0xff]
        %v764 = vld [vmem:[%s225 + $0x10] sm:$0xff]
        %v765 = vld [vmem:[%s225 + $0x18] sm:$0xff]
        %v766 = vld [vmem:[%s225 + $0x20] sm:$0xff]
        %v767 = vld [vmem:[%s225 + $0x28] sm:$0xff]
        %v768 = vld [vmem:[%s225 + $0x30] sm:$0xff]
        %v769 = vld [vmem:[%s225 + $0x38] sm:$0xff]
        %v770 = vld [vmem:[%s225 + $0x40] sm:$0xff]
        %780 = vrot.lane.b32.xlu0 %v762, 28
        %v781 = vpop.permute.xlu0 %780
        %782 = vrot.lane.b32.xlu0 %v763, 28
        %v783 = vpop.permute.xlu0 %782
        %784 = vrot.lane.b32.xlu0 %v764, 28
        %v785 = vpop.permute.xlu0 %784
        %786 = vrot.lane.b32.xlu0 %v765, 28
        %v787 = vpop.permute.xlu0 %786
        %788 = vrot.lane.b32.xlu0 %v766, 28
        %v789 = vpop.permute.xlu0 %788
        %790 = vrot.lane.b32.xlu0 %v767, 28
        %v791 = vpop.permute.xlu0 %790
        %792 = vrot.lane.b32.xlu0 %v768, 28
        %v793 = vpop.permute.xlu0 %792
        %794 = vrot.lane.b32.xlu0 %v769, 28
        %v795 = vpop.permute.xlu0 %794
        %796 = vrot.lane.b32.xlu0 %v770, 28
        %v797 = vpop.permute.xlu0 %796
        %vm798 = vcmask 228352
        %v799 = vsel %vm798, %v781, %v783
        %v800 = vsel %vm798, %v783, %v785
        %v801 = vsel %vm798, %v785, %v787
        %v802 = vsel %vm798, %v787, %v789
        %v803 = vsel %vm798, %v789, %v791
        %v804 = vsel %vm798, %v791, %v793
        %v805 = vsel %vm798, %v793, %v795
        %v806 = vsel %vm798, %v795, %v797
        %815 = vst [vmem:[#allocation2 + $0x240] sm:$0xff] %v799
        %816 = vst [vmem:[#allocation2 + $0x248] sm:$0xff] %v800
        %817 = vst [vmem:[#allocation2 + $0x250] sm:$0xff] %v801
        %818 = vst [vmem:[#allocation2 + $0x258] sm:$0xff] %v802
        %819 = vst [vmem:[#allocation2 + $0x260] sm:$0xff] %v803
        %820 = vst [vmem:[#allocation2 + $0x268] sm:$0xff] %v804
        %821 = vst [vmem:[#allocation2 + $0x270] sm:$0xff] %v805
        %822 = vst [vmem:[#allocation2 + $0x278] sm:$0xff] %v806
        %v823 = vld [vmem:[%s225] sm:$0xff]
        %v824 = vld [vmem:[%s225 + $0x8] sm:$0xff]
        %v825 = vld [vmem:[%s225 + $0x10] sm:$0xff]
        %v826 = vld [vmem:[%s225 + $0x18] sm:$0xff]
        %v827 = vld [vmem:[%s225 + $0x20] sm:$0xff]
        %v828 = vld [vmem:[%s225 + $0x28] sm:$0xff]
        %v829 = vld [vmem:[%s225 + $0x30] sm:$0xff]
        %v830 = vld [vmem:[%s225 + $0x38] sm:$0xff]
        %v831 = vld [vmem:[%s225 + $0x40] sm:$0xff]
        %841 = vrot.lane.b32.xlu0 %v823, 27
        %v842 = vpop.permute.xlu0 %841
        %843 = vrot.lane.b32.xlu0 %v824, 27
        %v844 = vpop.permute.xlu0 %843
        %845 = vrot.lane.b32.xlu0 %v825, 27
        %v846 = vpop.permute.xlu0 %845
        %847 = vrot.lane.b32.xlu0 %v826, 27
        %v848 = vpop.permute.xlu0 %847
        %849 = vrot.lane.b32.xlu0 %v827, 27
        %v850 = vpop.permute.xlu0 %849
        %851 = vrot.lane.b32.xlu0 %v828, 27
        %v852 = vpop.permute.xlu0 %851
        %853 = vrot.lane.b32.xlu0 %v829, 27
        %v854 = vpop.permute.xlu0 %853
        %855 = vrot.lane.b32.xlu0 %v830, 27
        %v856 = vpop.permute.xlu0 %855
        %857 = vrot.lane.b32.xlu0 %v831, 27
        %v858 = vpop.permute.xlu0 %857
        %vm859 = vcmask 220160
        %v860 = vsel %vm859, %v842, %v844
        %v861 = vsel %vm859, %v844, %v846
        %v862 = vsel %vm859, %v846, %v848
        %v863 = vsel %vm859, %v848, %v850
        %v864 = vsel %vm859, %v850, %v852
        %v865 = vsel %vm859, %v852, %v854
        %v866 = vsel %vm859, %v854, %v856
        %v867 = vsel %vm859, %v856, %v858
        %876 = vst [vmem:[#allocation2 + $0x280] sm:$0xff] %v860
        %877 = vst [vmem:[#allocation2 + $0x288] sm:$0xff] %v861
        %878 = vst [vmem:[#allocation2 + $0x290] sm:$0xff] %v862
        %879 = vst [vmem:[#allocation2 + $0x298] sm:$0xff] %v863
        %880 = vst [vmem:[#allocation2 + $0x2a0] sm:$0xff] %v864
        %881 = vst [vmem:[#allocation2 + $0x2a8] sm:$0xff] %v865
        %882 = vst [vmem:[#allocation2 + $0x2b0] sm:$0xff] %v866
        %883 = vst [vmem:[#allocation2 + $0x2b8] sm:$0xff] %v867
        %v884 = vld [vmem:[%s225] sm:$0xff]
        %v885 = vld [vmem:[%s225 + $0x8] sm:$0xff]
        %v886 = vld [vmem:[%s225 + $0x10] sm:$0xff]
        %v887 = vld [vmem:[%s225 + $0x18] sm:$0xff]
        %v888 = vld [vmem:[%s225 + $0x20] sm:$0xff]
        %v889 = vld [vmem:[%s225 + $0x28] sm:$0xff]
        %v890 = vld [vmem:[%s225 + $0x30] sm:$0xff]
        %v891 = vld [vmem:[%s225 + $0x38] sm:$0xff]
        %v892 = vld [vmem:[%s225 + $0x40] sm:$0xff]
        %902 = vrot.lane.b32.xlu0 %v884, 26
        %v903 = vpop.permute.xlu0 %902
        %904 = vrot.lane.b32.xlu0 %v885, 26
        %v905 = vpop.permute.xlu0 %904
        %906 = vrot.lane.b32.xlu0 %v886, 26
        %v907 = vpop.permute.xlu0 %906
        %908 = vrot.lane.b32.xlu0 %v887, 26
        %v909 = vpop.permute.xlu0 %908
        %910 = vrot.lane.b32.xlu0 %v888, 26
        %v911 = vpop.permute.xlu0 %910
        %912 = vrot.lane.b32.xlu0 %v889, 26
        %v913 = vpop.permute.xlu0 %912
        %914 = vrot.lane.b32.xlu0 %v890, 26
        %v915 = vpop.permute.xlu0 %914
        %916 = vrot.lane.b32.xlu0 %v891, 26
        %v917 = vpop.permute.xlu0 %916
        %918 = vrot.lane.b32.xlu0 %v892, 26
        %v919 = vpop.permute.xlu0 %918
        %vm920 = vcmask 211968
        %v921 = vsel %vm920, %v903, %v905
        %v922 = vsel %vm920, %v905, %v907
        %v923 = vsel %vm920, %v907, %v909
        %v924 = vsel %vm920, %v909, %v911
        %v925 = vsel %vm920, %v911, %v913
        %v926 = vsel %vm920, %v913, %v915
        %v927 = vsel %vm920, %v915, %v917
        %v928 = vsel %vm920, %v917, %v919
        %937 = vst [vmem:[#allocation2 + $0x2c0] sm:$0xff] %v921
        %938 = vst [vmem:[#allocation2 + $0x2c8] sm:$0xff] %v922
        %939 = vst [vmem:[#allocation2 + $0x2d0] sm:$0xff] %v923
        %940 = vst [vmem:[#allocation2 + $0x2d8] sm:$0xff] %v924
        %941 = vst [vmem:[#allocation2 + $0x2e0] sm:$0xff] %v925
        %942 = vst [vmem:[#allocation2 + $0x2e8] sm:$0xff] %v926
        %943 = vst [vmem:[#allocation2 + $0x2f0] sm:$0xff] %v927
        %944 = vst [vmem:[#allocation2 + $0x2f8] sm:$0xff] %v928
        %v945 = vld [vmem:[%s225] sm:$0xff]
        %v946 = vld [vmem:[%s225 + $0x8] sm:$0xff]
        %v947 = vld [vmem:[%s225 + $0x10] sm:$0xff]
        %v948 = vld [vmem:[%s225 + $0x18] sm:$0xff]
        %v949 = vld [vmem:[%s225 + $0x20] sm:$0xff]
        %v950 = vld [vmem:[%s225 + $0x28] sm:$0xff]
        %v951 = vld [vmem:[%s225 + $0x30] sm:$0xff]
        %v952 = vld [vmem:[%s225 + $0x38] sm:$0xff]
        %v953 = vld [vmem:[%s225 + $0x40] sm:$0xff]
        %963 = vrot.lane.b32.xlu0 %v945, 18
        %v964 = vpop.permute.xlu0 %963
        %965 = vrot.lane.b32.xlu0 %v946, 18
        %v966 = vpop.permute.xlu0 %965
        %967 = vrot.lane.b32.xlu0 %v947, 18
        %v968 = vpop.permute.xlu0 %967
        %969 = vrot.lane.b32.xlu0 %v948, 18
        %v970 = vpop.permute.xlu0 %969
        %971 = vrot.lane.b32.xlu0 %v949, 18
        %v972 = vpop.permute.xlu0 %971
        %973 = vrot.lane.b32.xlu0 %v950, 18
        %v974 = vpop.permute.xlu0 %973
        %975 = vrot.lane.b32.xlu0 %v951, 18
        %v976 = vpop.permute.xlu0 %975
        %977 = vrot.lane.b32.xlu0 %v952, 18
        %v978 = vpop.permute.xlu0 %977
        %979 = vrot.lane.b32.xlu0 %v953, 18
        %v980 = vpop.permute.xlu0 %979
        %vm981 = vcmask 146432
        %v982 = vsel %vm981, %v964, %v966
        %v983 = vsel %vm981, %v966, %v968
        %v984 = vsel %vm981, %v968, %v970
        %v985 = vsel %vm981, %v970, %v972
        %v986 = vsel %vm981, %v972, %v974
        %v987 = vsel %vm981, %v974, %v976
        %v988 = vsel %vm981, %v976, %v978
        %v989 = vsel %vm981, %v978, %v980
        %998 = vst [vmem:[#allocation2 + $0x300] sm:$0xff] %v982
        %999 = vst [vmem:[#allocation2 + $0x308] sm:$0xff] %v983
        %1000 = vst [vmem:[#allocation2 + $0x310] sm:$0xff] %v984
        %1001 = vst [vmem:[#allocation2 + $0x318] sm:$0xff] %v985
        %1002 = vst [vmem:[#allocation2 + $0x320] sm:$0xff] %v986
        %1003 = vst [vmem:[#allocation2 + $0x328] sm:$0xff] %v987
        %1004 = vst [vmem:[#allocation2 + $0x330] sm:$0xff] %v988
        %1005 = vst [vmem:[#allocation2 + $0x338] sm:$0xff] %v989
        %v1006 = vld [vmem:[%s225] sm:$0xff]
        %v1007 = vld [vmem:[%s225 + $0x8] sm:$0xff]
        %v1008 = vld [vmem:[%s225 + $0x10] sm:$0xff]
        %v1009 = vld [vmem:[%s225 + $0x18] sm:$0xff]
        %v1010 = vld [vmem:[%s225 + $0x20] sm:$0xff]
        %v1011 = vld [vmem:[%s225 + $0x28] sm:$0xff]
        %v1012 = vld [vmem:[%s225 + $0x30] sm:$0xff]
        %v1013 = vld [vmem:[%s225 + $0x38] sm:$0xff]
        %v1014 = vld [vmem:[%s225 + $0x40] sm:$0xff]
        %1024 = vrot.lane.b32.xlu0 %v1006, 17
        %v1025 = vpop.permute.xlu0 %1024
        %1026 = vrot.lane.b32.xlu0 %v1007, 17
        %v1027 = vpop.permute.xlu0 %1026
        %1028 = vrot.lane.b32.xlu0 %v1008, 17
        %v1029 = vpop.permute.xlu0 %1028
        %1030 = vrot.lane.b32.xlu0 %v1009, 17
        %v1031 = vpop.permute.xlu0 %1030
        %1032 = vrot.lane.b32.xlu0 %v1010, 17
        %v1033 = vpop.permute.xlu0 %1032
        %1034 = vrot.lane.b32.xlu0 %v1011, 17
        %v1035 = vpop.permute.xlu0 %1034
        %1036 = vrot.lane.b32.xlu0 %v1012, 17
        %v1037 = vpop.permute.xlu0 %1036
        %1038 = vrot.lane.b32.xlu0 %v1013, 17
        %v1039 = vpop.permute.xlu0 %1038
        %1040 = vrot.lane.b32.xlu0 %v1014, 17
        %v1041 = vpop.permute.xlu0 %1040
        %vm1042 = vcmask 138240
        %v1043 = vsel %vm1042, %v1025, %v1027
        %v1044 = vsel %vm1042, %v1027, %v1029
        %v1045 = vsel %vm1042, %v1029, %v1031
        %v1046 = vsel %vm1042, %v1031, %v1033
        %v1047 = vsel %vm1042, %v1033, %v1035
        %v1048 = vsel %vm1042, %v1035, %v1037
        %v1049 = vsel %vm1042, %v1037, %v1039
        %v1050 = vsel %vm1042, %v1039, %v1041
        %1059 = vst [vmem:[#allocation2 + $0x340] sm:$0xff] %v1043
        %1060 = vst [vmem:[#allocation2 + $0x348] sm:$0xff] %v1044
        %1061 = vst [vmem:[#allocation2 + $0x350] sm:$0xff] %v1045
        %1062 = vst [vmem:[#allocation2 + $0x358] sm:$0xff] %v1046
        %1063 = vst [vmem:[#allocation2 + $0x360] sm:$0xff] %v1047
        %1064 = vst [vmem:[#allocation2 + $0x368] sm:$0xff] %v1048
        %1065 = vst [vmem:[#allocation2 + $0x370] sm:$0xff] %v1049
        %1066 = vst [vmem:[#allocation2 + $0x378] sm:$0xff] %v1050
        %v1067 = vld [vmem:[%s225] sm:$0xff]
        %v1068 = vld [vmem:[%s225 + $0x8] sm:$0xff]
        %v1069 = vld [vmem:[%s225 + $0x10] sm:$0xff]
        %v1070 = vld [vmem:[%s225 + $0x18] sm:$0xff]
        %v1071 = vld [vmem:[%s225 + $0x20] sm:$0xff]
        %v1072 = vld [vmem:[%s225 + $0x28] sm:$0xff]
        %v1073 = vld [vmem:[%s225 + $0x30] sm:$0xff]
        %v1074 = vld [vmem:[%s225 + $0x38] sm:$0xff]
        %v1075 = vld [vmem:[%s225 + $0x40] sm:$0xff]
        %1085 = vrot.lane.b32.xlu0 %v1067, 16
        %v1086 = vpop.permute.xlu0 %1085
        %1087 = vrot.lane.b32.xlu0 %v1068, 16
        %v1088 = vpop.permute.xlu0 %1087
        %1089 = vrot.lane.b32.xlu0 %v1069, 16
        %v1090 = vpop.permute.xlu0 %1089
        %1091 = vrot.lane.b32.xlu0 %v1070, 16
        %v1092 = vpop.permute.xlu0 %1091
        %1093 = vrot.lane.b32.xlu0 %v1071, 16
        %v1094 = vpop.permute.xlu0 %1093
        %1095 = vrot.lane.b32.xlu0 %v1072, 16
        %v1096 = vpop.permute.xlu0 %1095
        %1097 = vrot.lane.b32.xlu0 %v1073, 16
        %v1098 = vpop.permute.xlu0 %1097
        %1099 = vrot.lane.b32.xlu0 %v1074, 16
        %v1100 = vpop.permute.xlu0 %1099
        %1101 = vrot.lane.b32.xlu0 %v1075, 16
        %v1102 = vpop.permute.xlu0 %1101
        %vm1103 = vcmask 130048
        %v1104 = vsel %vm1103, %v1086, %v1088
        %v1105 = vsel %vm1103, %v1088, %v1090
        %v1106 = vsel %vm1103, %v1090, %v1092
        %v1107 = vsel %vm1103, %v1092, %v1094
        %v1108 = vsel %vm1103, %v1094, %v1096
        %v1109 = vsel %vm1103, %v1096, %v1098
        %v1110 = vsel %vm1103, %v1098, %v1100
        %v1111 = vsel %vm1103, %v1100, %v1102
        %1120 = vst [vmem:[#allocation2 + $0x380] sm:$0xff] %v1104
        %1121 = vst [vmem:[#allocation2 + $0x388] sm:$0xff] %v1105
        %1122 = vst [vmem:[#allocation2 + $0x390] sm:$0xff] %v1106
        %1123 = vst [vmem:[#allocation2 + $0x398] sm:$0xff] %v1107
        %1124 = vst [vmem:[#allocation2 + $0x3a0] sm:$0xff] %v1108
        %1125 = vst [vmem:[#allocation2 + $0x3a8] sm:$0xff] %v1109
        %1126 = vst [vmem:[#allocation2 + $0x3b0] sm:$0xff] %v1110
        %1127 = vst [vmem:[#allocation2 + $0x3b8] sm:$0xff] %v1111
        %v1128 = vld [vmem:[%s225] sm:$0xff]
        %v1129 = vld [vmem:[%s225 + $0x8] sm:$0xff]
        %v1130 = vld [vmem:[%s225 + $0x10] sm:$0xff]
        %v1131 = vld [vmem:[%s225 + $0x18] sm:$0xff]
        %v1132 = vld [vmem:[%s225 + $0x20] sm:$0xff]
        %v1133 = vld [vmem:[%s225 + $0x28] sm:$0xff]
        %v1134 = vld [vmem:[%s225 + $0x30] sm:$0xff]
        %v1135 = vld [vmem:[%s225 + $0x38] sm:$0xff]
        %v1136 = vld [vmem:[%s225 + $0x40] sm:$0xff]
        %1146 = vrot.lane.b32.xlu0 %v1128, 8
        %v1147 = vpop.permute.xlu0 %1146
        %1148 = vrot.lane.b32.xlu0 %v1129, 8
        %v1149 = vpop.permute.xlu0 %1148
        %1150 = vrot.lane.b32.xlu0 %v1130, 8
        %v1151 = vpop.permute.xlu0 %1150
        %1152 = vrot.lane.b32.xlu0 %v1131, 8
        %v1153 = vpop.permute.xlu0 %1152
        %1154 = vrot.lane.b32.xlu0 %v1132, 8
        %v1155 = vpop.permute.xlu0 %1154
        %1156 = vrot.lane.b32.xlu0 %v1133, 8
        %v1157 = vpop.permute.xlu0 %1156
        %1158 = vrot.lane.b32.xlu0 %v1134, 8
        %v1159 = vpop.permute.xlu0 %1158
        %1160 = vrot.lane.b32.xlu0 %v1135, 8
        %v1161 = vpop.permute.xlu0 %1160
        %1162 = vrot.lane.b32.xlu0 %v1136, 8
        %v1163 = vpop.permute.xlu0 %1162
        %vm1164 = vcmask 64512
        %v1165 = vsel %vm1164, %v1147, %v1149
        %v1166 = vsel %vm1164, %v1149, %v1151
        %v1167 = vsel %vm1164, %v1151, %v1153
        %v1168 = vsel %vm1164, %v1153, %v1155
        %v1169 = vsel %vm1164, %v1155, %v1157
        %v1170 = vsel %vm1164, %v1157, %v1159
        %v1171 = vsel %vm1164, %v1159, %v1161
        %v1172 = vsel %vm1164, %v1161, %v1163
        %1181 = vst [vmem:[#allocation2 + $0x3c0] sm:$0xff] %v1165
        %1182 = vst [vmem:[#allocation2 + $0x3c8] sm:$0xff] %v1166
        %1183 = vst [vmem:[#allocation2 + $0x3d0] sm:$0xff] %v1167
        %1184 = vst [vmem:[#allocation2 + $0x3d8] sm:$0xff] %v1168
        %1185 = vst [vmem:[#allocation2 + $0x3e0] sm:$0xff] %v1169
        %1186 = vst [vmem:[#allocation2 + $0x3e8] sm:$0xff] %v1170
        %1187 = vst [vmem:[#allocation2 + $0x3f0] sm:$0xff] %v1171
        %1188 = vst [vmem:[#allocation2 + $0x3f8] sm:$0xff] %v1172
        %v1189 = vld [vmem:[%s225] sm:$0xff]
        %v1190 = vld [vmem:[%s225 + $0x8] sm:$0xff]
        %v1191 = vld [vmem:[%s225 + $0x10] sm:$0xff]
        %v1192 = vld [vmem:[%s225 + $0x18] sm:$0xff]
        %v1193 = vld [vmem:[%s225 + $0x20] sm:$0xff]
        %v1194 = vld [vmem:[%s225 + $0x28] sm:$0xff]
        %v1195 = vld [vmem:[%s225 + $0x30] sm:$0xff]
        %v1196 = vld [vmem:[%s225 + $0x38] sm:$0xff]
        %v1197 = vld [vmem:[%s225 + $0x40] sm:$0xff]
        %1207 = vrot.lane.b32.xlu0 %v1189, 7
        %v1208 = vpop.permute.xlu0 %1207
        %1209 = vrot.lane.b32.xlu0 %v1190, 7
        %v1210 = vpop.permute.xlu0 %1209
        %1211 = vrot.lane.b32.xlu0 %v1191, 7
        %v1212 = vpop.permute.xlu0 %1211
        %1213 = vrot.lane.b32.xlu0 %v1192, 7
        %v1214 = vpop.permute.xlu0 %1213
        %1215 = vrot.lane.b32.xlu0 %v1193, 7
        %v1216 = vpop.permute.xlu0 %1215
        %1217 = vrot.lane.b32.xlu0 %v1194, 7
        %v1218 = vpop.permute.xlu0 %1217
        %1219 = vrot.lane.b32.xlu0 %v1195, 7
        %v1220 = vpop.permute.xlu0 %1219
        %1221 = vrot.lane.b32.xlu0 %v1196, 7
        %v1222 = vpop.permute.xlu0 %1221
        %1223 = vrot.lane.b32.xlu0 %v1197, 7
        %v1224 = vpop.permute.xlu0 %1223
        %vm1225 = vcmask 56320
        %v1226 = vsel %vm1225, %v1208, %v1210
        %v1227 = vsel %vm1225, %v1210, %v1212
        %v1228 = vsel %vm1225, %v1212, %v1214
        %v1229 = vsel %vm1225, %v1214, %v1216
        %v1230 = vsel %vm1225, %v1216, %v1218
        %v1231 = vsel %vm1225, %v1218, %v1220
        %v1232 = vsel %vm1225, %v1220, %v1222
        %v1233 = vsel %vm1225, %v1222, %v1224
        %1242 = vst [vmem:[#allocation2 + $0x400] sm:$0xff] %v1226
        %1243 = vst [vmem:[#allocation2 + $0x408] sm:$0xff] %v1227
        %1244 = vst [vmem:[#allocation2 + $0x410] sm:$0xff] %v1228
        %1245 = vst [vmem:[#allocation2 + $0x418] sm:$0xff] %v1229
        %1246 = vst [vmem:[#allocation2 + $0x420] sm:$0xff] %v1230
        %1247 = vst [vmem:[#allocation2 + $0x428] sm:$0xff] %v1231
        %1248 = vst [vmem:[#allocation2 + $0x430] sm:$0xff] %v1232
        %1249 = vst [vmem:[#allocation2 + $0x438] sm:$0xff] %v1233
        %v1250 = vld [vmem:[%s225] sm:$0xff]
        %v1251 = vld [vmem:[%s225 + $0x8] sm:$0xff]
        %v1252 = vld [vmem:[%s225 + $0x10] sm:$0xff]
        %v1253 = vld [vmem:[%s225 + $0x18] sm:$0xff]
        %v1254 = vld [vmem:[%s225 + $0x20] sm:$0xff]
        %v1255 = vld [vmem:[%s225 + $0x28] sm:$0xff]
        %v1256 = vld [vmem:[%s225 + $0x30] sm:$0xff]
        %v1257 = vld [vmem:[%s225 + $0x38] sm:$0xff]
        %v1258 = vld [vmem:[%s225 + $0x40] sm:$0xff]
        %1268 = vrot.lane.b32.xlu0 %v1250, 6
        %v1269 = vpop.permute.xlu0 %1268
        %1270 = vrot.lane.b32.xlu0 %v1251, 6
        %v1271 = vpop.permute.xlu0 %1270
        %1272 = vrot.lane.b32.xlu0 %v1252, 6
        %v1273 = vpop.permute.xlu0 %1272
        %1274 = vrot.lane.b32.xlu0 %v1253, 6
        %v1275 = vpop.permute.xlu0 %1274
        %1276 = vrot.lane.b32.xlu0 %v1254, 6
        %v1277 = vpop.permute.xlu0 %1276
        %1278 = vrot.lane.b32.xlu0 %v1255, 6
        %v1279 = vpop.permute.xlu0 %1278
        %1280 = vrot.lane.b32.xlu0 %v1256, 6
        %v1281 = vpop.permute.xlu0 %1280
        %1282 = vrot.lane.b32.xlu0 %v1257, 6
        %v1283 = vpop.permute.xlu0 %1282
        %1284 = vrot.lane.b32.xlu0 %v1258, 6
        %v1285 = vpop.permute.xlu0 %1284
        %vm1286 = vcmask 48128
        %v1287 = vsel %vm1286, %v1269, %v1271
        %v1288 = vsel %vm1286, %v1271, %v1273
        %v1289 = vsel %vm1286, %v1273, %v1275
        %v1290 = vsel %vm1286, %v1275, %v1277
        %v1291 = vsel %vm1286, %v1277, %v1279
        %v1292 = vsel %vm1286, %v1279, %v1281
        %v1293 = vsel %vm1286, %v1281, %v1283
        %v1294 = vsel %vm1286, %v1283, %v1285
        %1303 = vst [vmem:[#allocation2 + $0x440] sm:$0xff] %v1287
        %1304 = vst [vmem:[#allocation2 + $0x448] sm:$0xff] %v1288
        %1305 = vst [vmem:[#allocation2 + $0x450] sm:$0xff] %v1289
        %1306 = vst [vmem:[#allocation2 + $0x458] sm:$0xff] %v1290
        %1307 = vst [vmem:[#allocation2 + $0x460] sm:$0xff] %v1291
        %1308 = vst [vmem:[#allocation2 + $0x468] sm:$0xff] %v1292
        %1309 = vst [vmem:[#allocation2 + $0x470] sm:$0xff] %v1293
        %1310 = vst [vmem:[#allocation2 + $0x478] sm:$0xff] %v1294
        %v1311 = vld [vmem:[%s225 + $0x8] sm:$0xff]
        %v1312 = vld [vmem:[%s225 + $0x10] sm:$0xff]
        %v1313 = vld [vmem:[%s225 + $0x18] sm:$0xff]
        %v1314 = vld [vmem:[%s225 + $0x20] sm:$0xff]
        %v1315 = vld [vmem:[%s225 + $0x28] sm:$0xff]
        %v1316 = vld [vmem:[%s225 + $0x30] sm:$0xff]
        %v1317 = vld [vmem:[%s225 + $0x38] sm:$0xff]
        %v1318 = vld [vmem:[%s225 + $0x40] sm:$0xff]
        %v1319 = vld [vmem:[%s225 + $0x48] sm:$0xff]
        %1329 = vrot.lane.b32.xlu0 %v1311, 56
        %v1330 = vpop.permute.xlu0 %1329
        %1331 = vrot.lane.b32.xlu0 %v1312, 56
        %v1332 = vpop.permute.xlu0 %1331
        %1333 = vrot.lane.b32.xlu0 %v1313, 56
        %v1334 = vpop.permute.xlu0 %1333
        %1335 = vrot.lane.b32.xlu0 %v1314, 56
        %v1336 = vpop.permute.xlu0 %1335
        %1337 = vrot.lane.b32.xlu0 %v1315, 56
        %v1338 = vpop.permute.xlu0 %1337
        %1339 = vrot.lane.b32.xlu0 %v1316, 56
        %v1340 = vpop.permute.xlu0 %1339
        %1341 = vrot.lane.b32.xlu0 %v1317, 56
        %v1342 = vpop.permute.xlu0 %1341
        %1343 = vrot.lane.b32.xlu0 %v1318, 56
        %v1344 = vpop.permute.xlu0 %1343
        %1345 = vrot.lane.b32.xlu0 %v1319, 56
        %v1346 = vpop.permute.xlu0 %1345
        %vm1347 = vcmask 457728
        %v1348 = vsel %vm1347, %v1330, %v1332
        %v1349 = vsel %vm1347, %v1332, %v1334
        %v1350 = vsel %vm1347, %v1334, %v1336
        %v1351 = vsel %vm1347, %v1336, %v1338
        %v1352 = vsel %vm1347, %v1338, %v1340
        %v1353 = vsel %vm1347, %v1340, %v1342
        %v1354 = vsel %vm1347, %v1342, %v1344
        %v1355 = vsel %vm1347, %v1344, %v1346
        %1364 = vst [vmem:[#allocation2 + $0x480] sm:$0xff] %v1348
        %1365 = vst [vmem:[#allocation2 + $0x488] sm:$0xff] %v1349
        %1366 = vst [vmem:[#allocation2 + $0x490] sm:$0xff] %v1350
        %1367 = vst [vmem:[#allocation2 + $0x498] sm:$0xff] %v1351
        %1368 = vst [vmem:[#allocation2 + $0x4a0] sm:$0xff] %v1352
        %1369 = vst [vmem:[#allocation2 + $0x4a8] sm:$0xff] %v1353
        %1370 = vst [vmem:[#allocation2 + $0x4b0] sm:$0xff] %v1354
        %1371 = vst [vmem:[#allocation2 + $0x4b8] sm:$0xff] %v1355
        %v1372 = vld [vmem:[%s225 + $0x8] sm:$0xff]
        %v1373 = vld [vmem:[%s225 + $0x10] sm:$0xff]
        %v1374 = vld [vmem:[%s225 + $0x18] sm:$0xff]
        %v1375 = vld [vmem:[%s225 + $0x20] sm:$0xff]
        %v1376 = vld [vmem:[%s225 + $0x28] sm:$0xff]
        %v1377 = vld [vmem:[%s225 + $0x30] sm:$0xff]
        %v1378 = vld [vmem:[%s225 + $0x38] sm:$0xff]
        %v1379 = vld [vmem:[%s225 + $0x40] sm:$0xff]
        %v1380 = vld [vmem:[%s225 + $0x48] sm:$0xff]
        %1390 = vrot.lane.b32.xlu0 %v1372, 55
        %v1391 = vpop.permute.xlu0 %1390
        %1392 = vrot.lane.b32.xlu0 %v1373, 55
        %v1393 = vpop.permute.xlu0 %1392
        %1394 = vrot.lane.b32.xlu0 %v1374, 55
        %v1395 = vpop.permute.xlu0 %1394
        %1396 = vrot.lane.b32.xlu0 %v1375, 55
        %v1397 = vpop.permute.xlu0 %1396
        %1398 = vrot.lane.b32.xlu0 %v1376, 55
        %v1399 = vpop.permute.xlu0 %1398
        %1400 = vrot.lane.b32.xlu0 %v1377, 55
        %v1401 = vpop.permute.xlu0 %1400
        %1402 = vrot.lane.b32.xlu0 %v1378, 55
        %v1403 = vpop.permute.xlu0 %1402
        %1404 = vrot.lane.b32.xlu0 %v1379, 55
        %v1405 = vpop.permute.xlu0 %1404
        %1406 = vrot.lane.b32.xlu0 %v1380, 55
        %v1407 = vpop.permute.xlu0 %1406
        %vm1408 = vcmask 449536
        %v1409 = vsel %vm1408, %v1391, %v1393
        %v1410 = vsel %vm1408, %v1393, %v1395
        %v1411 = vsel %vm1408, %v1395, %v1397
        %v1412 = vsel %vm1408, %v1397, %v1399
        %v1413 = vsel %vm1408, %v1399, %v1401
        %v1414 = vsel %vm1408, %v1401, %v1403
        %v1415 = vsel %vm1408, %v1403, %v1405
        %v1416 = vsel %vm1408, %v1405, %v1407
        %1425 = vst [vmem:[#allocation2 + $0x4c0] sm:$0xff] %v1409
        %1426 = vst [vmem:[#allocation2 + $0x4c8] sm:$0xff] %v1410
        %1427 = vst [vmem:[#allocation2 + $0x4d0] sm:$0xff] %v1411
        %1428 = vst [vmem:[#allocation2 + $0x4d8] sm:$0xff] %v1412
        %1429 = vst [vmem:[#allocation2 + $0x4e0] sm:$0xff] %v1413
        %1430 = vst [vmem:[#allocation2 + $0x4e8] sm:$0xff] %v1414
        %1431 = vst [vmem:[#allocation2 + $0x4f0] sm:$0xff] %v1415
        %1432 = vst [vmem:[#allocation2 + $0x4f8] sm:$0xff] %v1416
        %v1433 = vld [vmem:[%s225 + $0x8] sm:$0xff]
        %v1434 = vld [vmem:[%s225 + $0x10] sm:$0xff]
        %v1435 = vld [vmem:[%s225 + $0x18] sm:$0xff]
        %v1436 = vld [vmem:[%s225 + $0x20] sm:$0xff]
        %v1437 = vld [vmem:[%s225 + $0x28] sm:$0xff]
        %v1438 = vld [vmem:[%s225 + $0x30] sm:$0xff]
        %v1439 = vld [vmem:[%s225 + $0x38] sm:$0xff]
        %v1440 = vld [vmem:[%s225 + $0x40] sm:$0xff]
        %v1441 = vld [vmem:[%s225 + $0x48] sm:$0xff]
        %1451 = vrot.lane.b32.xlu0 %v1433, 54
        %v1452 = vpop.permute.xlu0 %1451
        %1453 = vrot.lane.b32.xlu0 %v1434, 54
        %v1454 = vpop.permute.xlu0 %1453
        %1455 = vrot.lane.b32.xlu0 %v1435, 54
        %v1456 = vpop.permute.xlu0 %1455
        %1457 = vrot.lane.b32.xlu0 %v1436, 54
        %v1458 = vpop.permute.xlu0 %1457
        %1459 = vrot.lane.b32.xlu0 %v1437, 54
        %v1460 = vpop.permute.xlu0 %1459
        %1461 = vrot.lane.b32.xlu0 %v1438, 54
        %v1462 = vpop.permute.xlu0 %1461
        %1463 = vrot.lane.b32.xlu0 %v1439, 54
        %v1464 = vpop.permute.xlu0 %1463
        %1465 = vrot.lane.b32.xlu0 %v1440, 54
        %v1466 = vpop.permute.xlu0 %1465
        %1467 = vrot.lane.b32.xlu0 %v1441, 54
        %v1468 = vpop.permute.xlu0 %1467
        %vm1469 = vcmask 441344
        %v1470 = vsel %vm1469, %v1452, %v1454
        %v1471 = vsel %vm1469, %v1454, %v1456
        %v1472 = vsel %vm1469, %v1456, %v1458
        %v1473 = vsel %vm1469, %v1458, %v1460
        %v1474 = vsel %vm1469, %v1460, %v1462
        %v1475 = vsel %vm1469, %v1462, %v1464
        %v1476 = vsel %vm1469, %v1464, %v1466
        %v1477 = vsel %vm1469, %v1466, %v1468
        %1486 = vst [vmem:[#allocation2 + $0x500] sm:$0xff] %v1470
        %1487 = vst [vmem:[#allocation2 + $0x508] sm:$0xff] %v1471
        %1488 = vst [vmem:[#allocation2 + $0x510] sm:$0xff] %v1472
        %1489 = vst [vmem:[#allocation2 + $0x518] sm:$0xff] %v1473
        %1490 = vst [vmem:[#allocation2 + $0x520] sm:$0xff] %v1474
        %1491 = vst [vmem:[#allocation2 + $0x528] sm:$0xff] %v1475
        %1492 = vst [vmem:[#allocation2 + $0x530] sm:$0xff] %v1476
        %1493 = vst [vmem:[#allocation2 + $0x538] sm:$0xff] %v1477
        %v1494 = vld [vmem:[%s225 + $0x8] sm:$0xff]
        %v1495 = vld [vmem:[%s225 + $0x10] sm:$0xff]
        %v1496 = vld [vmem:[%s225 + $0x18] sm:$0xff]
        %v1497 = vld [vmem:[%s225 + $0x20] sm:$0xff]
        %v1498 = vld [vmem:[%s225 + $0x28] sm:$0xff]
        %v1499 = vld [vmem:[%s225 + $0x30] sm:$0xff]
        %v1500 = vld [vmem:[%s225 + $0x38] sm:$0xff]
        %v1501 = vld [vmem:[%s225 + $0x40] sm:$0xff]
        %v1502 = vld [vmem:[%s225 + $0x48] sm:$0xff]
        %1512 = vrot.lane.b32.xlu0 %v1494, 46
        %v1513 = vpop.permute.xlu0 %1512
        %1514 = vrot.lane.b32.xlu0 %v1495, 46
        %v1515 = vpop.permute.xlu0 %1514
        %1516 = vrot.lane.b32.xlu0 %v1496, 46
        %v1517 = vpop.permute.xlu0 %1516
        %1518 = vrot.lane.b32.xlu0 %v1497, 46
        %v1519 = vpop.permute.xlu0 %1518
        %1520 = vrot.lane.b32.xlu0 %v1498, 46
        %v1521 = vpop.permute.xlu0 %1520
        %1522 = vrot.lane.b32.xlu0 %v1499, 46
        %v1523 = vpop.permute.xlu0 %1522
        %1524 = vrot.lane.b32.xlu0 %v1500, 46
        %v1525 = vpop.permute.xlu0 %1524
        %1526 = vrot.lane.b32.xlu0 %v1501, 46
        %v1527 = vpop.permute.xlu0 %1526
        %1528 = vrot.lane.b32.xlu0 %v1502, 46
        %v1529 = vpop.permute.xlu0 %1528
        %vm1530 = vcmask 375808
        %v1531 = vsel %vm1530, %v1513, %v1515
        %v1532 = vsel %vm1530, %v1515, %v1517
        %v1533 = vsel %vm1530, %v1517, %v1519
        %v1534 = vsel %vm1530, %v1519, %v1521
        %v1535 = vsel %vm1530, %v1521, %v1523
        %v1536 = vsel %vm1530, %v1523, %v1525
        %v1537 = vsel %vm1530, %v1525, %v1527
        %v1538 = vsel %vm1530, %v1527, %v1529
        %1547 = vst [vmem:[#allocation2 + $0x540] sm:$0xff] %v1531
        %1548 = vst [vmem:[#allocation2 + $0x548] sm:$0xff] %v1532
        %1549 = vst [vmem:[#allocation2 + $0x550] sm:$0xff] %v1533
        %1550 = vst [vmem:[#allocation2 + $0x558] sm:$0xff] %v1534
        %1551 = vst [vmem:[#allocation2 + $0x560] sm:$0xff] %v1535
        %1552 = vst [vmem:[#allocation2 + $0x568] sm:$0xff] %v1536
        %1553 = vst [vmem:[#allocation2 + $0x570] sm:$0xff] %v1537
        %1554 = vst [vmem:[#allocation2 + $0x578] sm:$0xff] %v1538
        %v1555 = vld [vmem:[%s225 + $0x8] sm:$0xff]
        %v1556 = vld [vmem:[%s225 + $0x10] sm:$0xff]
        %v1557 = vld [vmem:[%s225 + $0x18] sm:$0xff]
        %v1558 = vld [vmem:[%s225 + $0x20] sm:$0xff]
        %v1559 = vld [vmem:[%s225 + $0x28] sm:$0xff]
        %v1560 = vld [vmem:[%s225 + $0x30] sm:$0xff]
        %v1561 = vld [vmem:[%s225 + $0x38] sm:$0xff]
        %v1562 = vld [vmem:[%s225 + $0x40] sm:$0xff]
        %v1563 = vld [vmem:[%s225 + $0x48] sm:$0xff]
        %1573 = vrot.lane.b32.xlu0 %v1555, 45
        %v1574 = vpop.permute.xlu0 %1573
        %1575 = vrot.lane.b32.xlu0 %v1556, 45
        %v1576 = vpop.permute.xlu0 %1575
        %1577 = vrot.lane.b32.xlu0 %v1557, 45
        %v1578 = vpop.permute.xlu0 %1577
        %1579 = vrot.lane.b32.xlu0 %v1558, 45
        %v1580 = vpop.permute.xlu0 %1579
        %1581 = vrot.lane.b32.xlu0 %v1559, 45
        %v1582 = vpop.permute.xlu0 %1581
        %1583 = vrot.lane.b32.xlu0 %v1560, 45
        %v1584 = vpop.permute.xlu0 %1583
        %1585 = vrot.lane.b32.xlu0 %v1561, 45
        %v1586 = vpop.permute.xlu0 %1585
        %1587 = vrot.lane.b32.xlu0 %v1562, 45
        %v1588 = vpop.permute.xlu0 %1587
        %1589 = vrot.lane.b32.xlu0 %v1563, 45
        %v1590 = vpop.permute.xlu0 %1589
        %vm1591 = vcmask 367616
        %v1592 = vsel %vm1591, %v1574, %v1576
        %v1593 = vsel %vm1591, %v1576, %v1578
        %v1594 = vsel %vm1591, %v1578, %v1580
        %v1595 = vsel %vm1591, %v1580, %v1582
        %v1596 = vsel %vm1591, %v1582, %v1584
        %v1597 = vsel %vm1591, %v1584, %v1586
        %v1598 = vsel %vm1591, %v1586, %v1588
        %v1599 = vsel %vm1591, %v1588, %v1590
        %1608 = vst [vmem:[#allocation2 + $0x580] sm:$0xff] %v1592
        %1609 = vst [vmem:[#allocation2 + $0x588] sm:$0xff] %v1593
        %1610 = vst [vmem:[#allocation2 + $0x590] sm:$0xff] %v1594
        %1611 = vst [vmem:[#allocation2 + $0x598] sm:$0xff] %v1595
        %1612 = vst [vmem:[#allocation2 + $0x5a0] sm:$0xff] %v1596
        %1613 = vst [vmem:[#allocation2 + $0x5a8] sm:$0xff] %v1597
        %1614 = vst [vmem:[#allocation2 + $0x5b0] sm:$0xff] %v1598
        %1615 = vst [vmem:[#allocation2 + $0x5b8] sm:$0xff] %v1599
        %v1616 = vld [vmem:[%s225 + $0x8] sm:$0xff]
        %v1617 = vld [vmem:[%s225 + $0x10] sm:$0xff]
        %v1618 = vld [vmem:[%s225 + $0x18] sm:$0xff]
        %v1619 = vld [vmem:[%s225 + $0x20] sm:$0xff]
        %v1620 = vld [vmem:[%s225 + $0x28] sm:$0xff]
        %v1621 = vld [vmem:[%s225 + $0x30] sm:$0xff]
        %v1622 = vld [vmem:[%s225 + $0x38] sm:$0xff]
        %v1623 = vld [vmem:[%s225 + $0x40] sm:$0xff]
        %v1624 = vld [vmem:[%s225 + $0x48] sm:$0xff]
        %1634 = vrot.lane.b32.xlu0 %v1616, 44
        %v1635 = vpop.permute.xlu0 %1634
        %1636 = vrot.lane.b32.xlu0 %v1617, 44
        %v1637 = vpop.permute.xlu0 %1636
        %1638 = vrot.lane.b32.xlu0 %v1618, 44
        %v1639 = vpop.permute.xlu0 %1638
        %1640 = vrot.lane.b32.xlu0 %v1619, 44
        %v1641 = vpop.permute.xlu0 %1640
        %1642 = vrot.lane.b32.xlu0 %v1620, 44
        %v1643 = vpop.permute.xlu0 %1642
        %1644 = vrot.lane.b32.xlu0 %v1621, 44
        %v1645 = vpop.permute.xlu0 %1644
        %1646 = vrot.lane.b32.xlu0 %v1622, 44
        %v1647 = vpop.permute.xlu0 %1646
        %1648 = vrot.lane.b32.xlu0 %v1623, 44
        %v1649 = vpop.permute.xlu0 %1648
        %1650 = vrot.lane.b32.xlu0 %v1624, 44
        %v1651 = vpop.permute.xlu0 %1650
        %vm1652 = vcmask 359424
        %v1653 = vsel %vm1652, %v1635, %v1637
        %v1654 = vsel %vm1652, %v1637, %v1639
        %v1655 = vsel %vm1652, %v1639, %v1641
        %v1656 = vsel %vm1652, %v1641, %v1643
        %v1657 = vsel %vm1652, %v1643, %v1645
        %v1658 = vsel %vm1652, %v1645, %v1647
        %v1659 = vsel %vm1652, %v1647, %v1649
        %v1660 = vsel %vm1652, %v1649, %v1651
        %1669 = vst [vmem:[#allocation2 + $0x5c0] sm:$0xff] %v1653
        %1670 = vst [vmem:[#allocation2 + $0x5c8] sm:$0xff] %v1654
        %1671 = vst [vmem:[#allocation2 + $0x5d0] sm:$0xff] %v1655
        %1672 = vst [vmem:[#allocation2 + $0x5d8] sm:$0xff] %v1656
        %1673 = vst [vmem:[#allocation2 + $0x5e0] sm:$0xff] %v1657
        %1674 = vst [vmem:[#allocation2 + $0x5e8] sm:$0xff] %v1658
        %1675 = vst [vmem:[#allocation2 + $0x5f0] sm:$0xff] %v1659
        %1676 = vst [vmem:[#allocation2 + $0x5f8] sm:$0xff] %v1660
        %v1677 = vld [vmem:[%s225 + $0x8] sm:$0xff]
        %v1678 = vld [vmem:[%s225 + $0x10] sm:$0xff]
        %v1679 = vld [vmem:[%s225 + $0x18] sm:$0xff]
        %v1680 = vld [vmem:[%s225 + $0x20] sm:$0xff]
        %v1681 = vld [vmem:[%s225 + $0x28] sm:$0xff]
        %v1682 = vld [vmem:[%s225 + $0x30] sm:$0xff]
        %v1683 = vld [vmem:[%s225 + $0x38] sm:$0xff]
        %v1684 = vld [vmem:[%s225 + $0x40] sm:$0xff]
        %v1685 = vld [vmem:[%s225 + $0x48] sm:$0xff]
        %1695 = vrot.lane.b32.xlu0 %v1677, 36
        %v1696 = vpop.permute.xlu0 %1695
        %1697 = vrot.lane.b32.xlu0 %v1678, 36
        %v1698 = vpop.permute.xlu0 %1697
        %1699 = vrot.lane.b32.xlu0 %v1679, 36
        %v1700 = vpop.permute.xlu0 %1699
        %1701 = vrot.lane.b32.xlu0 %v1680, 36
        %v1702 = vpop.permute.xlu0 %1701
        %1703 = vrot.lane.b32.xlu0 %v1681, 36
        %v1704 = vpop.permute.xlu0 %1703
        %1705 = vrot.lane.b32.xlu0 %v1682, 36
        %v1706 = vpop.permute.xlu0 %1705
        %1707 = vrot.lane.b32.xlu0 %v1683, 36
        %v1708 = vpop.permute.xlu0 %1707
        %1709 = vrot.lane.b32.xlu0 %v1684, 36
        %v1710 = vpop.permute.xlu0 %1709
        %1711 = vrot.lane.b32.xlu0 %v1685, 36
        %v1712 = vpop.permute.xlu0 %1711
        %vm1713 = vcmask 293888
        %v1714 = vsel %vm1713, %v1696, %v1698
        %v1715 = vsel %vm1713, %v1698, %v1700
        %v1716 = vsel %vm1713, %v1700, %v1702
        %v1717 = vsel %vm1713, %v1702, %v1704
        %v1718 = vsel %vm1713, %v1704, %v1706
        %v1719 = vsel %vm1713, %v1706, %v1708
        %v1720 = vsel %vm1713, %v1708, %v1710
        %v1721 = vsel %vm1713, %v1710, %v1712
        %1730 = vst [vmem:[#allocation2 + $0x600] sm:$0xff] %v1714
        %1731 = vst [vmem:[#allocation2 + $0x608] sm:$0xff] %v1715
        %1732 = vst [vmem:[#allocation2 + $0x610] sm:$0xff] %v1716
        %1733 = vst [vmem:[#allocation2 + $0x618] sm:$0xff] %v1717
        %1734 = vst [vmem:[#allocation2 + $0x620] sm:$0xff] %v1718
        %1735 = vst [vmem:[#allocation2 + $0x628] sm:$0xff] %v1719
        %1736 = vst [vmem:[#allocation2 + $0x630] sm:$0xff] %v1720
        %1737 = vst [vmem:[#allocation2 + $0x638] sm:$0xff] %v1721
        %v1738 = vld [vmem:[%s225 + $0x8] sm:$0xff]
        %v1739 = vld [vmem:[%s225 + $0x10] sm:$0xff]
        %v1740 = vld [vmem:[%s225 + $0x18] sm:$0xff]
        %v1741 = vld [vmem:[%s225 + $0x20] sm:$0xff]
        %v1742 = vld [vmem:[%s225 + $0x28] sm:$0xff]
        %v1743 = vld [vmem:[%s225 + $0x30] sm:$0xff]
        %v1744 = vld [vmem:[%s225 + $0x38] sm:$0xff]
        %v1745 = vld [vmem:[%s225 + $0x40] sm:$0xff]
        %v1746 = vld [vmem:[%s225 + $0x48] sm:$0xff]
        %1756 = vrot.lane.b32.xlu0 %v1738, 35
        %v1757 = vpop.permute.xlu0 %1756
        %1758 = vrot.lane.b32.xlu0 %v1739, 35
        %v1759 = vpop.permute.xlu0 %1758
        %1760 = vrot.lane.b32.xlu0 %v1740, 35
        %v1761 = vpop.permute.xlu0 %1760
        %1762 = vrot.lane.b32.xlu0 %v1741, 35
        %v1763 = vpop.permute.xlu0 %1762
        %1764 = vrot.lane.b32.xlu0 %v1742, 35
        %v1765 = vpop.permute.xlu0 %1764
        %1766 = vrot.lane.b32.xlu0 %v1743, 35
        %v1767 = vpop.permute.xlu0 %1766
        %1768 = vrot.lane.b32.xlu0 %v1744, 35
        %v1769 = vpop.permute.xlu0 %1768
        %1770 = vrot.lane.b32.xlu0 %v1745, 35
        %v1771 = vpop.permute.xlu0 %1770
        %1772 = vrot.lane.b32.xlu0 %v1746, 35
        %v1773 = vpop.permute.xlu0 %1772
        %vm1774 = vcmask 285696
        %v1775 = vsel %vm1774, %v1757, %v1759
        %v1776 = vsel %vm1774, %v1759, %v1761
        %v1777 = vsel %vm1774, %v1761, %v1763
        %v1778 = vsel %vm1774, %v1763, %v1765
        %v1779 = vsel %vm1774, %v1765, %v1767
        %v1780 = vsel %vm1774, %v1767, %v1769
        %v1781 = vsel %vm1774, %v1769, %v1771
        %v1782 = vsel %vm1774, %v1771, %v1773
        %1791 = vst [vmem:[#allocation2 + $0x640] sm:$0xff] %v1775
        %1792 = vst [vmem:[#allocation2 + $0x648] sm:$0xff] %v1776
        %1793 = vst [vmem:[#allocation2 + $0x650] sm:$0xff] %v1777
        %1794 = vst [vmem:[#allocation2 + $0x658] sm:$0xff] %v1778
        %1795 = vst [vmem:[#allocation2 + $0x660] sm:$0xff] %v1779
        %1796 = vst [vmem:[#allocation2 + $0x668] sm:$0xff] %v1780
        %1797 = vst [vmem:[#allocation2 + $0x670] sm:$0xff] %v1781
        %1798 = vst [vmem:[#allocation2 + $0x678] sm:$0xff] %v1782
        %v1799 = vld [vmem:[%s225 + $0x8] sm:$0xff]
        %v1800 = vld [vmem:[%s225 + $0x10] sm:$0xff]
        %v1801 = vld [vmem:[%s225 + $0x18] sm:$0xff]
        %v1802 = vld [vmem:[%s225 + $0x20] sm:$0xff]
        %v1803 = vld [vmem:[%s225 + $0x28] sm:$0xff]
        %v1804 = vld [vmem:[%s225 + $0x30] sm:$0xff]
        %v1805 = vld [vmem:[%s225 + $0x38] sm:$0xff]
        %v1806 = vld [vmem:[%s225 + $0x40] sm:$0xff]
        %v1807 = vld [vmem:[%s225 + $0x48] sm:$0xff]
        %1817 = vrot.lane.b32.xlu0 %v1799, 34
        %v1818 = vpop.permute.xlu0 %1817
        %1819 = vrot.lane.b32.xlu0 %v1800, 34
        %v1820 = vpop.permute.xlu0 %1819
        %1821 = vrot.lane.b32.xlu0 %v1801, 34
        %v1822 = vpop.permute.xlu0 %1821
        %1823 = vrot.lane.b32.xlu0 %v1802, 34
        %v1824 = vpop.permute.xlu0 %1823
        %1825 = vrot.lane.b32.xlu0 %v1803, 34
        %v1826 = vpop.permute.xlu0 %1825
        %1827 = vrot.lane.b32.xlu0 %v1804, 34
        %v1828 = vpop.permute.xlu0 %1827
        %1829 = vrot.lane.b32.xlu0 %v1805, 34
        %v1830 = vpop.permute.xlu0 %1829
        %1831 = vrot.lane.b32.xlu0 %v1806, 34
        %v1832 = vpop.permute.xlu0 %1831
        %1833 = vrot.lane.b32.xlu0 %v1807, 34
        %v1834 = vpop.permute.xlu0 %1833
        %vm1835 = vcmask 277504
        %v1836 = vsel %vm1835, %v1818, %v1820
        %v1837 = vsel %vm1835, %v1820, %v1822
        %v1838 = vsel %vm1835, %v1822, %v1824
        %v1839 = vsel %vm1835, %v1824, %v1826
        %v1840 = vsel %vm1835, %v1826, %v1828
        %v1841 = vsel %vm1835, %v1828, %v1830
        %v1842 = vsel %vm1835, %v1830, %v1832
        %v1843 = vsel %vm1835, %v1832, %v1834
        %1852 = vst [vmem:[#allocation2 + $0x680] sm:$0xff] %v1836
        %1853 = vst [vmem:[#allocation2 + $0x688] sm:$0xff] %v1837
        %1854 = vst [vmem:[#allocation2 + $0x690] sm:$0xff] %v1838
        %1855 = vst [vmem:[#allocation2 + $0x698] sm:$0xff] %v1839
        %1856 = vst [vmem:[#allocation2 + $0x6a0] sm:$0xff] %v1840
        %1857 = vst [vmem:[#allocation2 + $0x6a8] sm:$0xff] %v1841
        %1858 = vst [vmem:[#allocation2 + $0x6b0] sm:$0xff] %v1842
        %1859 = vst [vmem:[#allocation2 + $0x6b8] sm:$0xff] %v1843
        %v1860 = vld [vmem:[%s1] sm:$0xff]
        %v1861 = vld [vmem:[%s1 + $0x8] sm:$0xff]
        %v1862 = vld [vmem:[#allocation2] sm:$0xff]
        %v1863 = vld [vmem:[#allocation2 + $0x8] sm:$0xff]
        %v1864 = vld [vmem:[#allocation2 + $0x10] sm:$0xff]
        %v1865 = vld [vmem:[#allocation2 + $0x18] sm:$0xff]
        %v1866 = vld [vmem:[#allocation2 + $0x20] sm:$0xff]
        %v1867 = vld [vmem:[#allocation2 + $0x28] sm:$0xff]
        %v1868 = vld [vmem:[#allocation2 + $0x30] sm:$0xff]
        %v1869 = vld [vmem:[#allocation2 + $0x38] sm:$0xff]
        %v1870 = vld [vmem:[#allocation2 + $0x40] sm:$0xff]
        %v1871 = vld [vmem:[#allocation2 + $0x48] sm:$0xff]
        %v1872 = vld [vmem:[#allocation2 + $0x50] sm:$0xff]
        %v1873 = vld [vmem:[#allocation2 + $0x58] sm:$0xff]
        %v1874 = vld [vmem:[#allocation2 + $0x60] sm:$0xff]
        %v1875 = vld [vmem:[#allocation2 + $0x68] sm:$0xff]
        %v1876 = vld [vmem:[#allocation2 + $0x70] sm:$0xff]
        %v1877 = vld [vmem:[#allocation2 + $0x78] sm:$0xff]
        %v1878 = vld [vmem:[#allocation2 + $0x80] sm:$0xff]
        %v1879 = vld [vmem:[#allocation2 + $0x88] sm:$0xff]
        %v1880 = vld [vmem:[#allocation2 + $0x90] sm:$0xff]
        %v1881 = vld [vmem:[#allocation2 + $0x98] sm:$0xff]
        %v1882 = vld [vmem:[#allocation2 + $0xa0] sm:$0xff]
        %v1883 = vld [vmem:[#allocation2 + $0xa8] sm:$0xff]
        %v1884 = vld [vmem:[#allocation2 + $0xb0] sm:$0xff]
        %v1885 = vld [vmem:[#allocation2 + $0xb8] sm:$0xff]
        %v1886 = vld [vmem:[#allocation2 + $0xc0] sm:$0xff]
        %v1887 = vld [vmem:[#allocation2 + $0xc8] sm:$0xff]
        %v1888 = vld [vmem:[#allocation2 + $0xd0] sm:$0xff]
        %v1889 = vld [vmem:[#allocation2 + $0xd8] sm:$0xff]
        %v1890 = vld [vmem:[#allocation2 + $0xe0] sm:$0xff]
        %v1891 = vld [vmem:[#allocation2 + $0xe8] sm:$0xff]
        %v1892 = vld [vmem:[#allocation2 + $0xf0] sm:$0xff]
        %v1893 = vld [vmem:[#allocation2 + $0xf8] sm:$0xff]
        %v1894 = vld [vmem:[#allocation2 + $0x100] sm:$0xff]
        %v1895 = vld [vmem:[#allocation2 + $0x108] sm:$0xff]
        %v1896 = vld [vmem:[#allocation2 + $0x110] sm:$0xff]
        %v1897 = vld [vmem:[#allocation2 + $0x118] sm:$0xff]
        %v1898 = vld [vmem:[#allocation2 + $0x120] sm:$0xff]
        %v1899 = vld [vmem:[#allocation2 + $0x128] sm:$0xff]
        %v1900 = vld [vmem:[#allocation2 + $0x130] sm:$0xff]
        %v1901 = vld [vmem:[#allocation2 + $0x138] sm:$0xff]
        %v1902 = vld [vmem:[#allocation2 + $0x140] sm:$0xff]
        %v1903 = vld [vmem:[#allocation2 + $0x148] sm:$0xff]
        %v1904 = vld [vmem:[#allocation2 + $0x150] sm:$0xff]
        %v1905 = vld [vmem:[#allocation2 + $0x158] sm:$0xff]
        %v1906 = vld [vmem:[#allocation2 + $0x160] sm:$0xff]
        %v1907 = vld [vmem:[#allocation2 + $0x168] sm:$0xff]
        %v1908 = vld [vmem:[#allocation2 + $0x170] sm:$0xff]
        %v1909 = vld [vmem:[#allocation2 + $0x178] sm:$0xff]
        %v1910 = vld [vmem:[#allocation2 + $0x180] sm:$0xff]
        %v1911 = vld [vmem:[#allocation2 + $0x188] sm:$0xff]
        %v1912 = vld [vmem:[#allocation2 + $0x190] sm:$0xff]
        %v1913 = vld [vmem:[#allocation2 + $0x198] sm:$0xff]
        %v1914 = vld [vmem:[#allocation2 + $0x1a0] sm:$0xff]
        %v1915 = vld [vmem:[#allocation2 + $0x1a8] sm:$0xff]
        %v1916 = vld [vmem:[#allocation2 + $0x1b0] sm:$0xff]
        %v1917 = vld [vmem:[#allocation2 + $0x1b8] sm:$0xff]
        %v1918 = vld [vmem:[#allocation2 + $0x1c0] sm:$0xff]
        %v1919 = vld [vmem:[#allocation2 + $0x1c8] sm:$0xff]
        %v1920 = vld [vmem:[#allocation2 + $0x1d0] sm:$0xff]
        %v1921 = vld [vmem:[#allocation2 + $0x1d8] sm:$0xff]
        %v1922 = vld [vmem:[#allocation2 + $0x1e0] sm:$0xff]
        %v1923 = vld [vmem:[#allocation2 + $0x1e8] sm:$0xff]
        %v1924 = vld [vmem:[#allocation2 + $0x1f0] sm:$0xff]
        %v1925 = vld [vmem:[#allocation2 + $0x1f8] sm:$0xff]
        %v1926 = vld [vmem:[#allocation2 + $0x200] sm:$0xff]
        %v1927 = vld [vmem:[#allocation2 + $0x208] sm:$0xff]
        %v1928 = vld [vmem:[#allocation2 + $0x210] sm:$0xff]
        %v1929 = vld [vmem:[#allocation2 + $0x218] sm:$0xff]
        %v1930 = vld [vmem:[#allocation2 + $0x220] sm:$0xff]
        %v1931 = vld [vmem:[#allocation2 + $0x228] sm:$0xff]
        %v1932 = vld [vmem:[#allocation2 + $0x230] sm:$0xff]
        %v1933 = vld [vmem:[#allocation2 + $0x238] sm:$0xff]
        %v1934 = vld [vmem:[#allocation2 + $0x240] sm:$0xff]
        %v1935 = vld [vmem:[#allocation2 + $0x248] sm:$0xff]
        %v1936 = vld [vmem:[#allocation2 + $0x250] sm:$0xff]
        %v1937 = vld [vmem:[#allocation2 + $0x258] sm:$0xff]
        %v1938 = vld [vmem:[#allocation2 + $0x260] sm:$0xff]
        %v1939 = vld [vmem:[#allocation2 + $0x268] sm:$0xff]
        %v1940 = vld [vmem:[#allocation2 + $0x270] sm:$0xff]
        %v1941 = vld [vmem:[#allocation2 + $0x278] sm:$0xff]
        %v1942 = vld [vmem:[#allocation2 + $0x280] sm:$0xff]
        %v1943 = vld [vmem:[#allocation2 + $0x288] sm:$0xff]
        %v1944 = vld [vmem:[#allocation2 + $0x290] sm:$0xff]
        %v1945 = vld [vmem:[#allocation2 + $0x298] sm:$0xff]
        %v1946 = vld [vmem:[#allocation2 + $0x2a0] sm:$0xff]
        %v1947 = vld [vmem:[#allocation2 + $0x2a8] sm:$0xff]
        %v1948 = vld [vmem:[#allocation2 + $0x2b0] sm:$0xff]
        %v1949 = vld [vmem:[#allocation2 + $0x2b8] sm:$0xff]
        %v1950 = vld [vmem:[#allocation2 + $0x2c0] sm:$0xff]
        %v1951 = vld [vmem:[#allocation2 + $0x2c8] sm:$0xff]
        %v1952 = vld [vmem:[#allocation2 + $0x2d0] sm:$0xff]
        %v1953 = vld [vmem:[#allocation2 + $0x2d8] sm:$0xff]
        %v1954 = vld [vmem:[#allocation2 + $0x2e0] sm:$0xff]
        %v1955 = vld [vmem:[#allocation2 + $0x2e8] sm:$0xff]
        %v1956 = vld [vmem:[#allocation2 + $0x2f0] sm:$0xff]
        %v1957 = vld [vmem:[#allocation2 + $0x2f8] sm:$0xff]
        %v1958 = vld [vmem:[#allocation2 + $0x300] sm:$0xff]
        %v1959 = vld [vmem:[#allocation2 + $0x308] sm:$0xff]
        %v1960 = vld [vmem:[#allocation2 + $0x310] sm:$0xff]
        %v1961 = vld [vmem:[#allocation2 + $0x318] sm:$0xff]
        %v1962 = vld [vmem:[#allocation2 + $0x320] sm:$0xff]
        %v1963 = vld [vmem:[#allocation2 + $0x328] sm:$0xff]
        %v1964 = vld [vmem:[#allocation2 + $0x330] sm:$0xff]
        %v1965 = vld [vmem:[#allocation2 + $0x338] sm:$0xff]
        %v1966 = vld [vmem:[#allocation2 + $0x340] sm:$0xff]
        %v1967 = vld [vmem:[#allocation2 + $0x348] sm:$0xff]
        %v1968 = vld [vmem:[#allocation2 + $0x350] sm:$0xff]
        %v1969 = vld [vmem:[#allocation2 + $0x358] sm:$0xff]
        %v1970 = vld [vmem:[#allocation2 + $0x360] sm:$0xff]
        %v1971 = vld [vmem:[#allocation2 + $0x368] sm:$0xff]
        %v1972 = vld [vmem:[#allocation2 + $0x370] sm:$0xff]
        %v1973 = vld [vmem:[#allocation2 + $0x378] sm:$0xff]
        %v1974 = vld [vmem:[#allocation2 + $0x380] sm:$0xff]
        %v1975 = vld [vmem:[#allocation2 + $0x388] sm:$0xff]
        %v1976 = vld [vmem:[#allocation2 + $0x390] sm:$0xff]
        %v1977 = vld [vmem:[#allocation2 + $0x398] sm:$0xff]
        %v1978 = vld [vmem:[#allocation2 + $0x3a0] sm:$0xff]
        %v1979 = vld [vmem:[#allocation2 + $0x3a8] sm:$0xff]
        %v1980 = vld [vmem:[#allocation2 + $0x3b0] sm:$0xff]
        %v1981 = vld [vmem:[#allocation2 + $0x3b8] sm:$0xff]
        %v1982 = vld [vmem:[#allocation2 + $0x3c0] sm:$0xff]
        %v1983 = vld [vmem:[#allocation2 + $0x3c8] sm:$0xff]
        %v1984 = vld [vmem:[#allocation2 + $0x3d0] sm:$0xff]
        %v1985 = vld [vmem:[#allocation2 + $0x3d8] sm:$0xff]
        %v1986 = vld [vmem:[#allocation2 + $0x3e0] sm:$0xff]
        %v1987 = vld [vmem:[#allocation2 + $0x3e8] sm:$0xff]
        %v1988 = vld [vmem:[#allocation2 + $0x3f0] sm:$0xff]
        %v1989 = vld [vmem:[#allocation2 + $0x3f8] sm:$0xff]
        %v1990 = vld [vmem:[#allocation2 + $0x400] sm:$0xff]
        %v1991 = vld [vmem:[#allocation2 + $0x408] sm:$0xff]
        %v1992 = vld [vmem:[#allocation2 + $0x410] sm:$0xff]
        %v1993 = vld [vmem:[#allocation2 + $0x418] sm:$0xff]
        %v1994 = vld [vmem:[#allocation2 + $0x420] sm:$0xff]
        %v1995 = vld [vmem:[#allocation2 + $0x428] sm:$0xff]
        %v1996 = vld [vmem:[#allocation2 + $0x430] sm:$0xff]
        %v1997 = vld [vmem:[#allocation2 + $0x438] sm:$0xff]
        %v1998 = vld [vmem:[#allocation2 + $0x440] sm:$0xff]
        %v1999 = vld [vmem:[#allocation2 + $0x448] sm:$0xff]
        %v2000 = vld [vmem:[#allocation2 + $0x450] sm:$0xff]
        %v2001 = vld [vmem:[#allocation2 + $0x458] sm:$0xff]
        %v2002 = vld [vmem:[#allocation2 + $0x460] sm:$0xff]
        %v2003 = vld [vmem:[#allocation2 + $0x468] sm:$0xff]
        %v2004 = vld [vmem:[#allocation2 + $0x470] sm:$0xff]
        %v2005 = vld [vmem:[#allocation2 + $0x478] sm:$0xff]
        %v2006 = vld [vmem:[#allocation2 + $0x480] sm:$0xff]
        %v2007 = vld [vmem:[#allocation2 + $0x488] sm:$0xff]
        %v2008 = vld [vmem:[#allocation2 + $0x490] sm:$0xff]
        %v2009 = vld [vmem:[#allocation2 + $0x498] sm:$0xff]
        %v2010 = vld [vmem:[#allocation2 + $0x4a0] sm:$0xff]
        %v2011 = vld [vmem:[#allocation2 + $0x4a8] sm:$0xff]
        %v2012 = vld [vmem:[#allocation2 + $0x4b0] sm:$0xff]
        %v2013 = vld [vmem:[#allocation2 + $0x4b8] sm:$0xff]
        %v2014 = vld [vmem:[#allocation2 + $0x4c0] sm:$0xff]
        %v2015 = vld [vmem:[#allocation2 + $0x4c8] sm:$0xff]
        %v2016 = vld [vmem:[#allocation2 + $0x4d0] sm:$0xff]
        %v2017 = vld [vmem:[#allocation2 + $0x4d8] sm:$0xff]
        %v2018 = vld [vmem:[#allocation2 + $0x4e0] sm:$0xff]
        %v2019 = vld [vmem:[#allocation2 + $0x4e8] sm:$0xff]
        %v2020 = vld [vmem:[#allocation2 + $0x4f0] sm:$0xff]
        %v2021 = vld [vmem:[#allocation2 + $0x4f8] sm:$0xff]
        %v2022 = vld [vmem:[#allocation2 + $0x500] sm:$0xff]
        %v2023 = vld [vmem:[#allocation2 + $0x508] sm:$0xff]
        %v2024 = vld [vmem:[#allocation2 + $0x510] sm:$0xff]
        %v2025 = vld [vmem:[#allocation2 + $0x518] sm:$0xff]
        %v2026 = vld [vmem:[#allocation2 + $0x520] sm:$0xff]
        %v2027 = vld [vmem:[#allocation2 + $0x528] sm:$0xff]
        %v2028 = vld [vmem:[#allocation2 + $0x530] sm:$0xff]
        %v2029 = vld [vmem:[#allocation2 + $0x538] sm:$0xff]
        %v2030 = vld [vmem:[#allocation2 + $0x540] sm:$0xff]
        %v2031 = vld [vmem:[#allocation2 + $0x548] sm:$0xff]
        %v2032 = vld [vmem:[#allocation2 + $0x550] sm:$0xff]
        %v2033 = vld [vmem:[#allocation2 + $0x558] sm:$0xff]
        %v2034 = vld [vmem:[#allocation2 + $0x560] sm:$0xff]
        %v2035 = vld [vmem:[#allocation2 + $0x568] sm:$0xff]
        %v2036 = vld [vmem:[#allocation2 + $0x570] sm:$0xff]
        %v2037 = vld [vmem:[#allocation2 + $0x578] sm:$0xff]
        %v2038 = vld [vmem:[#allocation2 + $0x580] sm:$0xff]
        %v2039 = vld [vmem:[#allocation2 + $0x588] sm:$0xff]
        %v2040 = vld [vmem:[#allocation2 + $0x590] sm:$0xff]
        %v2041 = vld [vmem:[#allocation2 + $0x598] sm:$0xff]
        %v2042 = vld [vmem:[#allocation2 + $0x5a0] sm:$0xff]
        %v2043 = vld [vmem:[#allocation2 + $0x5a8] sm:$0xff]
        %v2044 = vld [vmem:[#allocation2 + $0x5b0] sm:$0xff]
        %v2045 = vld [vmem:[#allocation2 + $0x5b8] sm:$0xff]
        %v2046 = vld [vmem:[#allocation2 + $0x5c0] sm:$0xff]
        %v2047 = vld [vmem:[#allocation2 + $0x5c8] sm:$0xff]
        %v2048 = vld [vmem:[#allocation2 + $0x5d0] sm:$0xff]
        %v2049 = vld [vmem:[#allocation2 + $0x5d8] sm:$0xff]
        %v2050 = vld [vmem:[#allocation2 + $0x5e0] sm:$0xff]
        %v2051 = vld [vmem:[#allocation2 + $0x5e8] sm:$0xff]
        %v2052 = vld [vmem:[#allocation2 + $0x5f0] sm:$0xff]
        %v2053 = vld [vmem:[#allocation2 + $0x5f8] sm:$0xff]
        %v2054 = vld [vmem:[#allocation2 + $0x600] sm:$0xff]
        %v2055 = vld [vmem:[#allocation2 + $0x608] sm:$0xff]
        %v2056 = vld [vmem:[#allocation2 + $0x610] sm:$0xff]
        %v2057 = vld [vmem:[#allocation2 + $0x618] sm:$0xff]
        %v2058 = vld [vmem:[#allocation2 + $0x620] sm:$0xff]
        %v2059 = vld [vmem:[#allocation2 + $0x628] sm:$0xff]
        %v2060 = vld [vmem:[#allocation2 + $0x630] sm:$0xff]
        %v2061 = vld [vmem:[#allocation2 + $0x638] sm:$0xff]
        %v2062 = vld [vmem:[#allocation2 + $0x640] sm:$0xff]
        %v2063 = vld [vmem:[#allocation2 + $0x648] sm:$0xff]
        %v2064 = vld [vmem:[#allocation2 + $0x650] sm:$0xff]
        %v2065 = vld [vmem:[#allocation2 + $0x658] sm:$0xff]
        %v2066 = vld [vmem:[#allocation2 + $0x660] sm:$0xff]
        %v2067 = vld [vmem:[#allocation2 + $0x668] sm:$0xff]
        %v2068 = vld [vmem:[#allocation2 + $0x670] sm:$0xff]
        %v2069 = vld [vmem:[#allocation2 + $0x678] sm:$0xff]
        %v2070 = vld [vmem:[#allocation2 + $0x680] sm:$0xff]
        %v2071 = vld [vmem:[#allocation2 + $0x688] sm:$0xff]
        %v2072 = vld [vmem:[#allocation2 + $0x690] sm:$0xff]
        %v2073 = vld [vmem:[#allocation2 + $0x698] sm:$0xff]
        %v2074 = vld [vmem:[#allocation2 + $0x6a0] sm:$0xff]
        %v2075 = vld [vmem:[#allocation2 + $0x6a8] sm:$0xff]
        %v2076 = vld [vmem:[#allocation2 + $0x6b0] sm:$0xff]
        %v2077 = vld [vmem:[#allocation2 + $0x6b8] sm:$0xff]
        %vm2078 = vcmask 719872
        %v2080 = vsel %vm2078, %v1861, 0
        %2082 = vmatpush.msra.mxu0 %v1982
        %2083 = vmatpush.msra.mxu0 %v1974
        %2084 = vmatpush.msra.mxu0 %v1966
        %2085 = vmatpush.msra.mxu0 %v1958
        %2086 = vmatpush.msra.mxu0 %v1950
        %2087 = vmatpush.msra.mxu0 %v1942
        %2088 = vmatpush.msra.mxu0 %v1934
        %2089 = vmatpush.msra.mxu0 %v1926
        %2090 = vmatpush.msra.mxu0 %v1918
        %2091 = vmatpush.msra.mxu0 %v1910
        %2092 = vmatpush.msra.mxu0 %v1902
        %2093 = vmatpush.msra.mxu0 %v1894
        %2094 = vmatpush.msra.mxu0 %v1886
        %2095 = vmatpush.msra.mxu0 %v1878
        %2096 = vmatpush.msra.mxu0 %v1870
        %2097 = vmatpush.msra.mxu0 %v1862
        %2098 = vmatmul.f32.gmra.mxu0 %v1860
        %v2099 = vpop.f32.mrf.mxu0
        %v2100 = vadd.f32 0.0, %v2099
        %2101 = vdwg.mxu0
        %2102 = vmatpush.msra.mxu0 0.0
        %2103 = vmatpush.msra.mxu0 0.0
        %2104 = vmatpush.msra.mxu0 0.0
        %2105 = vmatpush.msra.mxu0 0.0
        %2106 = vmatpush.msra.mxu0 0.0
        %2107 = vmatpush.msra.mxu0 %v2070
        %2108 = vmatpush.msra.mxu0 %v2062
        %2109 = vmatpush.msra.mxu0 %v2054
        %2110 = vmatpush.msra.mxu0 %v2046
        %2111 = vmatpush.msra.mxu0 %v2038
        %2112 = vmatpush.msra.mxu0 %v2030
        %2113 = vmatpush.msra.mxu0 %v2022
        %2114 = vmatpush.msra.mxu0 %v2014
        %2115 = vmatpush.msra.mxu0 %v2006
        %2116 = vmatpush.msra.mxu0 %v1998
        %2117 = vmatpush.msra.mxu0 %v1990
        %2118 = vmatmul.f32.gmra.mxu0 %v2080
        %v2119 = vpop.f32.mrf.mxu0
        %v2120 = vadd.f32 %v2100, %v2119
        %2121 = vdwg.mxu0
        %2122 = vmatpush.msra.mxu0 %v1983
        %2123 = vmatpush.msra.mxu0 %v1975
        %2124 = vmatpush.msra.mxu0 %v1967
        %2125 = vmatpush.msra.mxu0 %v1959
        %2126 = vmatpush.msra.mxu0 %v1951
        %2127 = vmatpush.msra.mxu0 %v1943
        %2128 = vmatpush.msra.mxu0 %v1935
        %2129 = vmatpush.msra.mxu0 %v1927
        %2130 = vmatpush.msra.mxu0 %v1919
        %2131 = vmatpush.msra.mxu0 %v1911
        %2132 = vmatpush.msra.mxu0 %v1903
        %2133 = vmatpush.msra.mxu0 %v1895
        %2134 = vmatpush.msra.mxu0 %v1887
        %2135 = vmatpush.msra.mxu0 %v1879
        %2136 = vmatpush.msra.mxu0 %v1871
        %2137 = vmatpush.msra.mxu0 %v1863
        %2138 = vmatmul.f32.gmra.mxu0 %v1860
        %v2139 = vpop.f32.mrf.mxu0
        %v2140 = vadd.f32 0.0, %v2139
        %2141 = vdwg.mxu0
        %2142 = vmatpush.msra.mxu0 0.0
        %2143 = vmatpush.msra.mxu0 0.0
        %2144 = vmatpush.msra.mxu0 0.0
        %2145 = vmatpush.msra.mxu0 0.0
        %2146 = vmatpush.msra.mxu0 0.0
        %2147 = vmatpush.msra.mxu0 %v2071
        %2148 = vmatpush.msra.mxu0 %v2063
        %2149 = vmatpush.msra.mxu0 %v2055
        %2150 = vmatpush.msra.mxu0 %v2047
        %2151 = vmatpush.msra.mxu0 %v2039
        %2152 = vmatpush.msra.mxu0 %v2031
        %2153 = vmatpush.msra.mxu0 %v2023
        %2154 = vmatpush.msra.mxu0 %v2015
        %2155 = vmatpush.msra.mxu0 %v2007
        %2156 = vmatpush.msra.mxu0 %v1999
        %2157 = vmatpush.msra.mxu0 %v1991
        %2158 = vmatmul.f32.gmra.mxu0 %v2080
        %v2159 = vpop.f32.mrf.mxu0
        %v2160 = vadd.f32 %v2140, %v2159
        %2161 = vdwg.mxu0
        %2162 = vmatpush.msra.mxu0 %v1984
        %2163 = vmatpush.msra.mxu0 %v1976
        %2164 = vmatpush.msra.mxu0 %v1968
        %2165 = vmatpush.msra.mxu0 %v1960
        %2166 = vmatpush.msra.mxu0 %v1952
        %2167 = vmatpush.msra.mxu0 %v1944
        %2168 = vmatpush.msra.mxu0 %v1936
        %2169 = vmatpush.msra.mxu0 %v1928
        %2170 = vmatpush.msra.mxu0 %v1920
        %2171 = vmatpush.msra.mxu0 %v1912
        %2172 = vmatpush.msra.mxu0 %v1904
        %2173 = vmatpush.msra.mxu0 %v1896
        %2174 = vmatpush.msra.mxu0 %v1888
        %2175 = vmatpush.msra.mxu0 %v1880
        %2176 = vmatpush.msra.mxu0 %v1872
        %2177 = vmatpush.msra.mxu0 %v1864
        %2178 = vmatmul.f32.gmra.mxu0 %v1860
        %v2179 = vpop.f32.mrf.mxu0
        %v2180 = vadd.f32 0.0, %v2179
        %2181 = vdwg.mxu0
        %2182 = vmatpush.msra.mxu0 0.0
        %2183 = vmatpush.msra.mxu0 0.0
        %2184 = vmatpush.msra.mxu0 0.0
        %2185 = vmatpush.msra.mxu0 0.0
        %2186 = vmatpush.msra.mxu0 0.0
        %2187 = vmatpush.msra.mxu0 %v2072
        %2188 = vmatpush.msra.mxu0 %v2064
        %2189 = vmatpush.msra.mxu0 %v2056
        %2190 = vmatpush.msra.mxu0 %v2048
        %2191 = vmatpush.msra.mxu0 %v2040
        %2192 = vmatpush.msra.mxu0 %v2032
        %2193 = vmatpush.msra.mxu0 %v2024
        %2194 = vmatpush.msra.mxu0 %v2016
        %2195 = vmatpush.msra.mxu0 %v2008
        %2196 = vmatpush.msra.mxu0 %v2000
        %2197 = vmatpush.msra.mxu0 %v1992
        %2198 = vmatmul.f32.gmra.mxu0 %v2080
        %v2199 = vpop.f32.mrf.mxu0
        %v2200 = vadd.f32 %v2180, %v2199
        %2201 = vdwg.mxu0
        %2202 = vmatpush.msra.mxu0 %v1985
        %2203 = vmatpush.msra.mxu0 %v1977
        %2204 = vmatpush.msra.mxu0 %v1969
        %2205 = vmatpush.msra.mxu0 %v1961
        %2206 = vmatpush.msra.mxu0 %v1953
        %2207 = vmatpush.msra.mxu0 %v1945
        %2208 = vmatpush.msra.mxu0 %v1937
        %2209 = vmatpush.msra.mxu0 %v1929
        %2210 = vmatpush.msra.mxu0 %v1921
        %2211 = vmatpush.msra.mxu0 %v1913
        %2212 = vmatpush.msra.mxu0 %v1905
        %2213 = vmatpush.msra.mxu0 %v1897
        %2214 = vmatpush.msra.mxu0 %v1889
        %2215 = vmatpush.msra.mxu0 %v1881
        %2216 = vmatpush.msra.mxu0 %v1873
        %2217 = vmatpush.msra.mxu0 %v1865
        %2218 = vmatmul.f32.gmra.mxu0 %v1860
        %v2219 = vpop.f32.mrf.mxu0
        %v2220 = vadd.f32 0.0, %v2219
        %2221 = vdwg.mxu0
        %2222 = vmatpush.msra.mxu0 0.0
        %2223 = vmatpush.msra.mxu0 0.0
        %2224 = vmatpush.msra.mxu0 0.0
        %2225 = vmatpush.msra.mxu0 0.0
        %2226 = vmatpush.msra.mxu0 0.0
        %2227 = vmatpush.msra.mxu0 %v2073
        %2228 = vmatpush.msra.mxu0 %v2065
        %2229 = vmatpush.msra.mxu0 %v2057
        %2230 = vmatpush.msra.mxu0 %v2049
        %2231 = vmatpush.msra.mxu0 %v2041
        %2232 = vmatpush.msra.mxu0 %v2033
        %2233 = vmatpush.msra.mxu0 %v2025
        %2234 = vmatpush.msra.mxu0 %v2017
        %2235 = vmatpush.msra.mxu0 %v2009
        %2236 = vmatpush.msra.mxu0 %v2001
        %2237 = vmatpush.msra.mxu0 %v1993
        %2238 = vmatmul.f32.gmra.mxu0 %v2080
        %v2239 = vpop.f32.mrf.mxu0
        %v2240 = vadd.f32 %v2220, %v2239
        %2241 = vdwg.mxu0
        %2242 = vmatpush.msra.mxu0 %v1986
        %2243 = vmatpush.msra.mxu0 %v1978
        %2244 = vmatpush.msra.mxu0 %v1970
        %2245 = vmatpush.msra.mxu0 %v1962
        %2246 = vmatpush.msra.mxu0 %v1954
        %2247 = vmatpush.msra.mxu0 %v1946
        %2248 = vmatpush.msra.mxu0 %v1938
        %2249 = vmatpush.msra.mxu0 %v1930
        %2250 = vmatpush.msra.mxu0 %v1922
        %2251 = vmatpush.msra.mxu0 %v1914
        %2252 = vmatpush.msra.mxu0 %v1906
        %2253 = vmatpush.msra.mxu0 %v1898
        %2254 = vmatpush.msra.mxu0 %v1890
        %2255 = vmatpush.msra.mxu0 %v1882
        %2256 = vmatpush.msra.mxu0 %v1874
        %2257 = vmatpush.msra.mxu0 %v1866
        %2258 = vmatmul.f32.gmra.mxu0 %v1860
        %v2259 = vpop.f32.mrf.mxu0
        %v2260 = vadd.f32 0.0, %v2259
        %2261 = vdwg.mxu0
        %2262 = vmatpush.msra.mxu0 0.0
        %2263 = vmatpush.msra.mxu0 0.0
        %2264 = vmatpush.msra.mxu0 0.0
        %2265 = vmatpush.msra.mxu0 0.0
        %2266 = vmatpush.msra.mxu0 0.0
        %2267 = vmatpush.msra.mxu0 %v2074
        %2268 = vmatpush.msra.mxu0 %v2066
        %2269 = vmatpush.msra.mxu0 %v2058
        %2270 = vmatpush.msra.mxu0 %v2050
        %2271 = vmatpush.msra.mxu0 %v2042
        %2272 = vmatpush.msra.mxu0 %v2034
        %2273 = vmatpush.msra.mxu0 %v2026
        %2274 = vmatpush.msra.mxu0 %v2018
        %2275 = vmatpush.msra.mxu0 %v2010
        %2276 = vmatpush.msra.mxu0 %v2002
        %2277 = vmatpush.msra.mxu0 %v1994
        %2278 = vmatmul.f32.gmra.mxu0 %v2080
        %v2279 = vpop.f32.mrf.mxu0
        %v2280 = vadd.f32 %v2260, %v2279
        %2281 = vdwg.mxu0
        %2282 = vmatpush.msra.mxu0 %v1987
        %2283 = vmatpush.msra.mxu0 %v1979
        %2284 = vmatpush.msra.mxu0 %v1971
        %2285 = vmatpush.msra.mxu0 %v1963
        %2286 = vmatpush.msra.mxu0 %v1955
        %2287 = vmatpush.msra.mxu0 %v1947
        %2288 = vmatpush.msra.mxu0 %v1939
        %2289 = vmatpush.msra.mxu0 %v1931
        %2290 = vmatpush.msra.mxu0 %v1923
        %2291 = vmatpush.msra.mxu0 %v1915
        %2292 = vmatpush.msra.mxu0 %v1907
        %2293 = vmatpush.msra.mxu0 %v1899
        %2294 = vmatpush.msra.mxu0 %v1891
        %2295 = vmatpush.msra.mxu0 %v1883
        %2296 = vmatpush.msra.mxu0 %v1875
        %2297 = vmatpush.msra.mxu0 %v1867
        %2298 = vmatmul.f32.gmra.mxu0 %v1860
        %v2299 = vpop.f32.mrf.mxu0
        %v2300 = vadd.f32 0.0, %v2299
        %2301 = vdwg.mxu0
        %2302 = vmatpush.msra.mxu0 0.0
        %2303 = vmatpush.msra.mxu0 0.0
        %2304 = vmatpush.msra.mxu0 0.0
        %2305 = vmatpush.msra.mxu0 0.0
        %2306 = vmatpush.msra.mxu0 0.0
        %2307 = vmatpush.msra.mxu0 %v2075
        %2308 = vmatpush.msra.mxu0 %v2067
        %2309 = vmatpush.msra.mxu0 %v2059
        %2310 = vmatpush.msra.mxu0 %v2051
        %2311 = vmatpush.msra.mxu0 %v2043
        %2312 = vmatpush.msra.mxu0 %v2035
        %2313 = vmatpush.msra.mxu0 %v2027
        %2314 = vmatpush.msra.mxu0 %v2019
        %2315 = vmatpush.msra.mxu0 %v2011
        %2316 = vmatpush.msra.mxu0 %v2003
        %2317 = vmatpush.msra.mxu0 %v1995
        %2318 = vmatmul.f32.gmra.mxu0 %v2080
        %v2319 = vpop.f32.mrf.mxu0
        %v2320 = vadd.f32 %v2300, %v2319
        %2321 = vdwg.mxu0
        %2322 = vmatpush.msra.mxu0 %v1988
        %2323 = vmatpush.msra.mxu0 %v1980
        %2324 = vmatpush.msra.mxu0 %v1972
        %2325 = vmatpush.msra.mxu0 %v1964
        %2326 = vmatpush.msra.mxu0 %v1956
        %2327 = vmatpush.msra.mxu0 %v1948
        %2328 = vmatpush.msra.mxu0 %v1940
        %2329 = vmatpush.msra.mxu0 %v1932
        %2330 = vmatpush.msra.mxu0 %v1924
        %2331 = vmatpush.msra.mxu0 %v1916
        %2332 = vmatpush.msra.mxu0 %v1908
        %2333 = vmatpush.msra.mxu0 %v1900
        %2334 = vmatpush.msra.mxu0 %v1892
        %2335 = vmatpush.msra.mxu0 %v1884
        %2336 = vmatpush.msra.mxu0 %v1876
        %2337 = vmatpush.msra.mxu0 %v1868
        %2338 = vmatmul.f32.gmra.mxu0 %v1860
        %v2339 = vpop.f32.mrf.mxu0
        %v2340 = vadd.f32 0.0, %v2339
        %2341 = vdwg.mxu0
        %2342 = vmatpush.msra.mxu0 0.0
        %2343 = vmatpush.msra.mxu0 0.0
        %2344 = vmatpush.msra.mxu0 0.0
        %2345 = vmatpush.msra.mxu0 0.0
        %2346 = vmatpush.msra.mxu0 0.0
        %2347 = vmatpush.msra.mxu0 %v2076
        %2348 = vmatpush.msra.mxu0 %v2068
        %2349 = vmatpush.msra.mxu0 %v2060
        %2350 = vmatpush.msra.mxu0 %v2052
        %2351 = vmatpush.msra.mxu0 %v2044
        %2352 = vmatpush.msra.mxu0 %v2036
        %2353 = vmatpush.msra.mxu0 %v2028
        %2354 = vmatpush.msra.mxu0 %v2020
        %2355 = vmatpush.msra.mxu0 %v2012
        %2356 = vmatpush.msra.mxu0 %v2004
        %2357 = vmatpush.msra.mxu0 %v1996
        %2358 = vmatmul.f32.gmra.mxu0 %v2080
        %v2359 = vpop.f32.mrf.mxu0
        %v2360 = vadd.f32 %v2340, %v2359
        %2361 = vdwg.mxu0
        %2362 = vmatpush.msra.mxu0 %v1989
        %2363 = vmatpush.msra.mxu0 %v1981
        %2364 = vmatpush.msra.mxu0 %v1973
        %2365 = vmatpush.msra.mxu0 %v1965
        %2366 = vmatpush.msra.mxu0 %v1957
        %2367 = vmatpush.msra.mxu0 %v1949
        %2368 = vmatpush.msra.mxu0 %v1941
        %2369 = vmatpush.msra.mxu0 %v1933
        %2370 = vmatpush.msra.mxu0 %v1925
        %2371 = vmatpush.msra.mxu0 %v1917
        %2372 = vmatpush.msra.mxu0 %v1909
        %2373 = vmatpush.msra.mxu0 %v1901
        %2374 = vmatpush.msra.mxu0 %v1893
        %2375 = vmatpush.msra.mxu0 %v1885
        %2376 = vmatpush.msra.mxu0 %v1877
        %2377 = vmatpush.msra.mxu0 %v1869
        %2378 = vmatmul.f32.gmra.mxu0 %v1860
        %v2379 = vpop.f32.mrf.mxu0
        %v2380 = vadd.f32 0.0, %v2379
        %2381 = vdwg.mxu0
        %2382 = vmatpush.msra.mxu0 0.0
        %2383 = vmatpush.msra.mxu0 0.0
        %2384 = vmatpush.msra.mxu0 0.0
        %2385 = vmatpush.msra.mxu0 0.0
        %2386 = vmatpush.msra.mxu0 0.0
        %2387 = vmatpush.msra.mxu0 %v2077
        %2388 = vmatpush.msra.mxu0 %v2069
        %2389 = vmatpush.msra.mxu0 %v2061
        %2390 = vmatpush.msra.mxu0 %v2053
        %2391 = vmatpush.msra.mxu0 %v2045
        %2392 = vmatpush.msra.mxu0 %v2037
        %2393 = vmatpush.msra.mxu0 %v2029
        %2394 = vmatpush.msra.mxu0 %v2021
        %2395 = vmatpush.msra.mxu0 %v2013
        %2396 = vmatpush.msra.mxu0 %v2005
        %2397 = vmatpush.msra.mxu0 %v1997
        %2398 = vmatmul.f32.gmra.mxu0 %v2080
        %v2399 = vpop.f32.mrf.mxu0
        %v2400 = vadd.f32 %v2380, %v2399
        %2401 = vdwg.mxu0
        %v2402 = vld [vmem:[#allocation6] sm:$0xff]
        %v2404 = vperm.slane %v2402, 0
        %v2405 = vperm.slane %v2402, 1
        %v2406 = vperm.slane %v2402, 2
        %v2407 = vperm.slane %v2402, 3
        %v2408 = vperm.slane %v2402, 4
        %v2409 = vperm.slane %v2402, 5
        %v2410 = vperm.slane %v2402, 6
        %v2411 = vperm.slane %v2402, 7
        %v2420 = vmul.f32 %v2120, %v2404
        %v2421 = vmul.f32 %v2160, %v2405
        %v2422 = vmul.f32 %v2200, %v2406
        %v2423 = vmul.f32 %v2240, %v2407
        %v2424 = vmul.f32 %v2280, %v2408
        %v2425 = vmul.f32 %v2320, %v2409
        %v2426 = vmul.f32 %v2360, %v2410
        %v2427 = vmul.f32 %v2400, %v2411
        %v2428 = vadd.f32 %v2420, %v2421
        %v2429 = vadd.f32 %v2428, %v2422
        %v2430 = vadd.f32 %v2429, %v2423
        %v2431 = vadd.f32 %v2430, %v2424
        %v2432 = vadd.f32 %v2431, %v2425
        %v2433 = vadd.f32 %v2432, %v2426
        %v2434 = vadd.f32 %v2433, %v2427
        %2435 = vadd.xlane.f32.xlu0 %v2434
        %v2436 = vpop.xlane.xlu0 %2435
        %v2437 = vmul.f32 %v2420, %v2120
        %v2438 = vmul.f32 %v2421, %v2160
        %v2439 = vmul.f32 %v2422, %v2200
        %v2440 = vmul.f32 %v2423, %v2240
        %v2441 = vmul.f32 %v2424, %v2280
        %v2442 = vmul.f32 %v2425, %v2320
        %v2443 = vmul.f32 %v2426, %v2360
        %v2444 = vmul.f32 %v2427, %v2400
        %v2445 = vadd.f32 %v2437, %v2438
        %v2446 = vadd.f32 %v2445, %v2439
        %v2447 = vadd.f32 %v2446, %v2440
        %v2448 = vadd.f32 %v2447, %v2441
        %v2449 = vadd.f32 %v2448, %v2442
        %v2450 = vadd.f32 %v2449, %v2443
        %v2451 = vadd.f32 %v2450, %v2444
        %2452 = vadd.xlane.f32.xlu0 %v2451
        %v2453 = vpop.xlane.xlu0 %2452
        %v2454 = vmul.f32 %v2436, 0.001953125
        %v2455 = vmul.f32 %v2453, 0.001953125
        %v2456 = vmul.f32 %v2454, %v2454
        %v2457 = vsub.f32 %v2455, %v2456
        %v2458 = vmax.f32 %v2457, 0.0
        %v2459 = vadd.f32 %v2458, 1e-05
        %v2460 = vrsqrt.pop %v2459
        %v2461 = vmul.f32 %v2460, %v2459
        %v2462 = vmul.f32 %v2461, %v2460
        %v2463 = vmul.f32 0.5, %v2462
        %v2464 = vsub.f32 1.5, %v2463
        %v2465 = vmul.f32 %v2460, %v2464
        %vm2466 = vweird.f32 %v2459
        %vm2467 = vweird.f32 %v2460
        %vm2468 = vmor %vm2466, %vm2467
        %v2469 = vsel %vm2468, %v2460, %v2465
        %v2470 = vld [vmem:[%s3] sm:$0xff]
        %v2471 = vmul.f32 %v2469, %v2470
        %v2472 = vld [vmem:[%s4] sm:$0xff]
        %v2473 = vmul.f32 %v2454, %v2471
        %v2474 = vsub.f32 %v2472, %v2473
        %2476 = vset.pattern.permute.xlu0 0
        %2477 = vperm.xlu0 %2476, %v2471
        %v2478 = vpop.permute.xlu0 %2477
        %v2480 = vmul.f32 %v2120, %v2478
        %v2481 = vmul.f32 %v2160, %v2478
        %v2482 = vmul.f32 %v2200, %v2478
        %v2483 = vmul.f32 %v2240, %v2478
        %v2484 = vmul.f32 %v2280, %v2478
        %v2485 = vmul.f32 %v2320, %v2478
        %v2486 = vmul.f32 %v2360, %v2478
        %v2487 = vmul.f32 %v2400, %v2478
        %2489 = vset.pattern.permute.xlu0 0
        %2490 = vperm.xlu0 %2489, %v2474
        %v2491 = vpop.permute.xlu0 %2490
        %v2493 = vadd.f32 %v2480, %v2491
        %v2494 = vadd.f32 %v2481, %v2491
        %v2495 = vadd.f32 %v2482, %v2491
        %v2496 = vadd.f32 %v2483, %v2491
        %v2497 = vadd.f32 %v2484, %v2491
        %v2498 = vadd.f32 %v2485, %v2491
        %v2499 = vadd.f32 %v2486, %v2491
        %v2500 = vadd.f32 %v2487, %v2491
        %v2501 = vmul.f32 %v2493, 0.5
        %v2502 = vmul.f32 %v2494, 0.5
        %v2503 = vmul.f32 %v2495, 0.5
        %v2504 = vmul.f32 %v2496, 0.5
        %v2505 = vmul.f32 %v2497, 0.5
        %v2506 = vmul.f32 %v2498, 0.5
        %v2507 = vmul.f32 %v2499, 0.5
        %v2508 = vmul.f32 %v2500, 0.5
        %v2509 = vmul.f32 %v2493, 0.70710677
        %v2510 = vmul.f32 %v2494, 0.70710677
        %v2511 = vmul.f32 %v2495, 0.70710677
        %v2512 = vmul.f32 %v2496, 0.70710677
        %v2513 = vmul.f32 %v2497, 0.70710677
        %v2514 = vmul.f32 %v2498, 0.70710677
        %v2515 = vmul.f32 %v2499, 0.70710677
        %v2516 = vmul.f32 %v2500, 0.70710677
        %v2517 = vmul.f32 %v2509, %v2509
        %v2518 = vmin.f32 16.0, %v2517
        %v2519 = vmul.f32 %v2518, 2.1237322e-06
        %v2520 = vadd.f32 %v2519, 0.00028619796
        %v2521 = vmul.f32 %v2518, %v2520
        %v2522 = vadd.f32 %v2521, 0.0036580483
        %v2523 = vmul.f32 %v2518, %v2522
        %v2524 = vadd.f32 %v2523, 0.05243302
        %v2525 = vmul.f32 %v2518, %v2524
        %v2526 = vadd.f32 %v2525, 0.18741608
        %v2527 = vmul.f32 %v2518, %v2526
        %v2528 = vadd.f32 %v2527, 1.1283791
        %v2529 = vmul.f32 %v2509, %v2528
        %v2530 = vmul.f32 %v2518, 3.8918573e-05
        %v2531 = vadd.f32 %v2530, 0.001143296
        %v2532 = vmul.f32 %v2518, %v2531
        %v2533 = vadd.f32 %v2532, 0.014752088
        %v2534 = vmul.f32 %v2518, %v2533
        %v2535 = vadd.f32 %v2534, 0.112945676
        %v2536 = vmul.f32 %v2518, %v2535
        %v2537 = vadd.f32 %v2536, 0.4994258
        %v2538 = vmul.f32 %v2518, %v2537
        %v2539 = vadd.f32 %v2538, 1.0
        %v2540 = vrcp.pop %v2539
        %v2541 = vmul.f32 %v2539, %v2540
        %v2542 = vsub.f32 1.0, %v2541
        %v2543 = vmul.f32 %v2540, %v2542
        %v2544 = vadd.f32 %v2540, %v2543
        %vm2545 = vweird.f32 %v2539
        %vm2546 = vweird.f32 %v2540
        %vm2547 = vmor %vm2545, %vm2546
        %v2548 = vsel %vm2547, %v2540, %v2544
        %v2549 = vand.u32 2147483647, %v2539
        %vm2550 = vcmp.eq.f32.partialorder %v2549, 8.507059e+37
        %v2551 = vand.u32 %v2539, 2147483648
        %v2552 = vor.u32 1.1754944e-38, %v2551
        %v2553 = vsel %vm2550, %v2552, %v2548
        %v2554 = vmul.f32 %v2529, %v2553
        %v2555 = vmin.f32 %v2554, 1.0
        %v2556 = vmax.f32 %v2555, -1.0
        %v2557 = vmul.f32 %v2510, %v2510
        %v2558 = vmin.f32 16.0, %v2557
        %v2559 = vmul.f32 %v2558, 2.1237322e-06
        %v2560 = vadd.f32 %v2559, 0.00028619796
        %v2561 = vmul.f32 %v2558, %v2560
        %v2562 = vadd.f32 %v2561, 0.0036580483
        %v2563 = vmul.f32 %v2558, %v2562
        %v2564 = vadd.f32 %v2563, 0.05243302
        %v2565 = vmul.f32 %v2558, %v2564
        %v2566 = vadd.f32 %v2565, 0.18741608
        %v2567 = vmul.f32 %v2558, %v2566
        %v2568 = vadd.f32 %v2567, 1.1283791
        %v2569 = vmul.f32 %v2510, %v2568
        %v2570 = vmul.f32 %v2558, 3.8918573e-05
        %v2571 = vadd.f32 %v2570, 0.001143296
        %v2572 = vmul.f32 %v2558, %v2571
        %v2573 = vadd.f32 %v2572, 0.014752088
        %v2574 = vmul.f32 %v2558, %v2573
        %v2575 = vadd.f32 %v2574, 0.112945676
        %v2576 = vmul.f32 %v2558, %v2575
        %v2577 = vadd.f32 %v2576, 0.4994258
        %v2578 = vmul.f32 %v2558, %v2577
        %v2579 = vadd.f32 %v2578, 1.0
        %v2580 = vrcp.pop %v2579
        %v2581 = vmul.f32 %v2579, %v2580
        %v2582 = vsub.f32 1.0, %v2581
        %v2583 = vmul.f32 %v2580, %v2582
        %v2584 = vadd.f32 %v2580, %v2583
        %vm2585 = vweird.f32 %v2579
        %vm2586 = vweird.f32 %v2580
        %vm2587 = vmor %vm2585, %vm2586
        %v2588 = vsel %vm2587, %v2580, %v2584
        %v2589 = vand.u32 2147483647, %v2579
        %vm2590 = vcmp.eq.f32.partialorder %v2589, 8.507059e+37
        %v2591 = vand.u32 %v2579, 2147483648
        %v2592 = vor.u32 1.1754944e-38, %v2591
        %v2593 = vsel %vm2590, %v2592, %v2588
        %v2594 = vmul.f32 %v2569, %v2593
        %v2595 = vmin.f32 %v2594, 1.0
        %v2596 = vmax.f32 %v2595, -1.0
        %v2597 = vmul.f32 %v2511, %v2511
        %v2598 = vmin.f32 16.0, %v2597
        %v2599 = vmul.f32 %v2598, 2.1237322e-06
        %v2600 = vadd.f32 %v2599, 0.00028619796
        %v2601 = vmul.f32 %v2598, %v2600
        %v2602 = vadd.f32 %v2601, 0.0036580483
        %v2603 = vmul.f32 %v2598, %v2602
        %v2604 = vadd.f32 %v2603, 0.05243302
        %v2605 = vmul.f32 %v2598, %v2604
        %v2606 = vadd.f32 %v2605, 0.18741608
        %v2607 = vmul.f32 %v2598, %v2606
        %v2608 = vadd.f32 %v2607, 1.1283791
        %v2609 = vmul.f32 %v2511, %v2608
        %v2610 = vmul.f32 %v2598, 3.8918573e-05
        %v2611 = vadd.f32 %v2610, 0.001143296
        %v2612 = vmul.f32 %v2598, %v2611
        %v2613 = vadd.f32 %v2612, 0.014752088
        %v2614 = vmul.f32 %v2598, %v2613
        %v2615 = vadd.f32 %v2614, 0.112945676
        %v2616 = vmul.f32 %v2598, %v2615
        %v2617 = vadd.f32 %v2616, 0.4994258
        %v2618 = vmul.f32 %v2598, %v2617
        %v2619 = vadd.f32 %v2618, 1.0
        %v2620 = vrcp.pop %v2619
        %v2621 = vmul.f32 %v2619, %v2620
        %v2622 = vsub.f32 1.0, %v2621
        %v2623 = vmul.f32 %v2620, %v2622
        %v2624 = vadd.f32 %v2620, %v2623
        %vm2625 = vweird.f32 %v2619
        %vm2626 = vweird.f32 %v2620
        %vm2627 = vmor %vm2625, %vm2626
        %v2628 = vsel %vm2627, %v2620, %v2624
        %v2629 = vand.u32 2147483647, %v2619
        %vm2630 = vcmp.eq.f32.partialorder %v2629, 8.507059e+37
        %v2631 = vand.u32 %v2619, 2147483648
        %v2632 = vor.u32 1.1754944e-38, %v2631
        %v2633 = vsel %vm2630, %v2632, %v2628
        %v2634 = vmul.f32 %v2609, %v2633
        %v2635 = vmin.f32 %v2634, 1.0
        %v2636 = vmax.f32 %v2635, -1.0
        %v2637 = vmul.f32 %v2512, %v2512
        %v2638 = vmin.f32 16.0, %v2637
        %v2639 = vmul.f32 %v2638, 2.1237322e-06
        %v2640 = vadd.f32 %v2639, 0.00028619796
        %v2641 = vmul.f32 %v2638, %v2640
        %v2642 = vadd.f32 %v2641, 0.0036580483
        %v2643 = vmul.f32 %v2638, %v2642
        %v2644 = vadd.f32 %v2643, 0.05243302
        %v2645 = vmul.f32 %v2638, %v2644
        %v2646 = vadd.f32 %v2645, 0.18741608
        %v2647 = vmul.f32 %v2638, %v2646
        %v2648 = vadd.f32 %v2647, 1.1283791
        %v2649 = vmul.f32 %v2512, %v2648
        %v2650 = vmul.f32 %v2638, 3.8918573e-05
        %v2651 = vadd.f32 %v2650, 0.001143296
        %v2652 = vmul.f32 %v2638, %v2651
        %v2653 = vadd.f32 %v2652, 0.014752088
        %v2654 = vmul.f32 %v2638, %v2653
        %v2655 = vadd.f32 %v2654, 0.112945676
        %v2656 = vmul.f32 %v2638, %v2655
        %v2657 = vadd.f32 %v2656, 0.4994258
        %v2658 = vmul.f32 %v2638, %v2657
        %v2659 = vadd.f32 %v2658, 1.0
        %v2660 = vrcp.pop %v2659
        %v2661 = vmul.f32 %v2659, %v2660
        %v2662 = vsub.f32 1.0, %v2661
        %v2663 = vmul.f32 %v2660, %v2662
        %v2664 = vadd.f32 %v2660, %v2663
        %vm2665 = vweird.f32 %v2659
        %vm2666 = vweird.f32 %v2660
        %vm2667 = vmor %vm2665, %vm2666
        %v2668 = vsel %vm2667, %v2660, %v2664
        %v2669 = vand.u32 2147483647, %v2659
        %vm2670 = vcmp.eq.f32.partialorder %v2669, 8.507059e+37
        %v2671 = vand.u32 %v2659, 2147483648
        %v2672 = vor.u32 1.1754944e-38, %v2671
        %v2673 = vsel %vm2670, %v2672, %v2668
        %v2674 = vmul.f32 %v2649, %v2673
        %v2675 = vmin.f32 %v2674, 1.0
        %v2676 = vmax.f32 %v2675, -1.0
        %v2677 = vmul.f32 %v2513, %v2513
        %v2678 = vmin.f32 16.0, %v2677
        %v2679 = vmul.f32 %v2678, 2.1237322e-06
        %v2680 = vadd.f32 %v2679, 0.00028619796
        %v2681 = vmul.f32 %v2678, %v2680
        %v2682 = vadd.f32 %v2681, 0.0036580483
        %v2683 = vmul.f32 %v2678, %v2682
        %v2684 = vadd.f32 %v2683, 0.05243302
        %v2685 = vmul.f32 %v2678, %v2684
        %v2686 = vadd.f32 %v2685, 0.18741608
        %v2687 = vmul.f32 %v2678, %v2686
        %v2688 = vadd.f32 %v2687, 1.1283791
        %v2689 = vmul.f32 %v2513, %v2688
        %v2690 = vmul.f32 %v2678, 3.8918573e-05
        %v2691 = vadd.f32 %v2690, 0.001143296
        %v2692 = vmul.f32 %v2678, %v2691
        %v2693 = vadd.f32 %v2692, 0.014752088
        %v2694 = vmul.f32 %v2678, %v2693
        %v2695 = vadd.f32 %v2694, 0.112945676
        %v2696 = vmul.f32 %v2678, %v2695
        %v2697 = vadd.f32 %v2696, 0.4994258
        %v2698 = vmul.f32 %v2678, %v2697
        %v2699 = vadd.f32 %v2698, 1.0
        %v2700 = vrcp.pop %v2699
        %v2701 = vmul.f32 %v2699, %v2700
        %v2702 = vsub.f32 1.0, %v2701
        %v2703 = vmul.f32 %v2700, %v2702
        %v2704 = vadd.f32 %v2700, %v2703
        %vm2705 = vweird.f32 %v2699
        %vm2706 = vweird.f32 %v2700
        %vm2707 = vmor %vm2705, %vm2706
        %v2708 = vsel %vm2707, %v2700, %v2704
        %v2709 = vand.u32 2147483647, %v2699
        %vm2710 = vcmp.eq.f32.partialorder %v2709, 8.507059e+37
        %v2711 = vand.u32 %v2699, 2147483648
        %v2712 = vor.u32 1.1754944e-38, %v2711
        %v2713 = vsel %vm2710, %v2712, %v2708
        %v2714 = vmul.f32 %v2689, %v2713
        %v2715 = vmin.f32 %v2714, 1.0
        %v2716 = vmax.f32 %v2715, -1.0
        %v2717 = vmul.f32 %v2514, %v2514
        %v2718 = vmin.f32 16.0, %v2717
        %v2719 = vmul.f32 %v2718, 2.1237322e-06
        %v2720 = vadd.f32 %v2719, 0.00028619796
        %v2721 = vmul.f32 %v2718, %v2720
        %v2722 = vadd.f32 %v2721, 0.0036580483
        %v2723 = vmul.f32 %v2718, %v2722
        %v2724 = vadd.f32 %v2723, 0.05243302
        %v2725 = vmul.f32 %v2718, %v2724
        %v2726 = vadd.f32 %v2725, 0.18741608
        %v2727 = vmul.f32 %v2718, %v2726
        %v2728 = vadd.f32 %v2727, 1.1283791
        %v2729 = vmul.f32 %v2514, %v2728
        %v2730 = vmul.f32 %v2718, 3.8918573e-05
        %v2731 = vadd.f32 %v2730, 0.001143296
        %v2732 = vmul.f32 %v2718, %v2731
        %v2733 = vadd.f32 %v2732, 0.014752088
        %v2734 = vmul.f32 %v2718, %v2733
        %v2735 = vadd.f32 %v2734, 0.112945676
        %v2736 = vmul.f32 %v2718, %v2735
        %v2737 = vadd.f32 %v2736, 0.4994258
        %v2738 = vmul.f32 %v2718, %v2737
        %v2739 = vadd.f32 %v2738, 1.0
        %v2740 = vrcp.pop %v2739
        %v2741 = vmul.f32 %v2739, %v2740
        %v2742 = vsub.f32 1.0, %v2741
        %v2743 = vmul.f32 %v2740, %v2742
        %v2744 = vadd.f32 %v2740, %v2743
        %vm2745 = vweird.f32 %v2739
        %vm2746 = vweird.f32 %v2740
        %vm2747 = vmor %vm2745, %vm2746
        %v2748 = vsel %vm2747, %v2740, %v2744
        %v2749 = vand.u32 2147483647, %v2739
        %vm2750 = vcmp.eq.f32.partialorder %v2749, 8.507059e+37
        %v2751 = vand.u32 %v2739, 2147483648
        %v2752 = vor.u32 1.1754944e-38, %v2751
        %v2753 = vsel %vm2750, %v2752, %v2748
        %v2754 = vmul.f32 %v2729, %v2753
        %v2755 = vmin.f32 %v2754, 1.0
        %v2756 = vmax.f32 %v2755, -1.0
        %v2757 = vmul.f32 %v2515, %v2515
        %v2758 = vmin.f32 16.0, %v2757
        %v2759 = vmul.f32 %v2758, 2.1237322e-06
        %v2760 = vadd.f32 %v2759, 0.00028619796
        %v2761 = vmul.f32 %v2758, %v2760
        %v2762 = vadd.f32 %v2761, 0.0036580483
        %v2763 = vmul.f32 %v2758, %v2762
        %v2764 = vadd.f32 %v2763, 0.05243302
        %v2765 = vmul.f32 %v2758, %v2764
        %v2766 = vadd.f32 %v2765, 0.18741608
        %v2767 = vmul.f32 %v2758, %v2766
        %v2768 = vadd.f32 %v2767, 1.1283791
        %v2769 = vmul.f32 %v2515, %v2768
        %v2770 = vmul.f32 %v2758, 3.8918573e-05
        %v2771 = vadd.f32 %v2770, 0.001143296
        %v2772 = vmul.f32 %v2758, %v2771
        %v2773 = vadd.f32 %v2772, 0.014752088
        %v2774 = vmul.f32 %v2758, %v2773
        %v2775 = vadd.f32 %v2774, 0.112945676
        %v2776 = vmul.f32 %v2758, %v2775
        %v2777 = vadd.f32 %v2776, 0.4994258
        %v2778 = vmul.f32 %v2758, %v2777
        %v2779 = vadd.f32 %v2778, 1.0
        %v2780 = vrcp.pop %v2779
        %v2781 = vmul.f32 %v2779, %v2780
        %v2782 = vsub.f32 1.0, %v2781
        %v2783 = vmul.f32 %v2780, %v2782
        %v2784 = vadd.f32 %v2780, %v2783
        %vm2785 = vweird.f32 %v2779
        %vm2786 = vweird.f32 %v2780
        %vm2787 = vmor %vm2785, %vm2786
        %v2788 = vsel %vm2787, %v2780, %v2784
        %v2789 = vand.u32 2147483647, %v2779
        %vm2790 = vcmp.eq.f32.partialorder %v2789, 8.507059e+37
        %v2791 = vand.u32 %v2779, 2147483648
        %v2792 = vor.u32 1.1754944e-38, %v2791
        %v2793 = vsel %vm2790, %v2792, %v2788
        %v2794 = vmul.f32 %v2769, %v2793
        %v2795 = vmin.f32 %v2794, 1.0
        %v2796 = vmax.f32 %v2795, -1.0
        %v2797 = vmul.f32 %v2516, %v2516
        %v2798 = vmin.f32 16.0, %v2797
        %v2799 = vmul.f32 %v2798, 2.1237322e-06
        %v2800 = vadd.f32 %v2799, 0.00028619796
        %v2801 = vmul.f32 %v2798, %v2800
        %v2802 = vadd.f32 %v2801, 0.0036580483
        %v2803 = vmul.f32 %v2798, %v2802
        %v2804 = vadd.f32 %v2803, 0.05243302
        %v2805 = vmul.f32 %v2798, %v2804
        %v2806 = vadd.f32 %v2805, 0.18741608
        %v2807 = vmul.f32 %v2798, %v2806
        %v2808 = vadd.f32 %v2807, 1.1283791
        %v2809 = vmul.f32 %v2516, %v2808
        %v2810 = vmul.f32 %v2798, 3.8918573e-05
        %v2811 = vadd.f32 %v2810, 0.001143296
        %v2812 = vmul.f32 %v2798, %v2811
        %v2813 = vadd.f32 %v2812, 0.014752088
        %v2814 = vmul.f32 %v2798, %v2813
        %v2815 = vadd.f32 %v2814, 0.112945676
        %v2816 = vmul.f32 %v2798, %v2815
        %v2817 = vadd.f32 %v2816, 0.4994258
        %v2818 = vmul.f32 %v2798, %v2817
        %v2819 = vadd.f32 %v2818, 1.0
        %v2820 = vrcp.pop %v2819
        %v2821 = vmul.f32 %v2819, %v2820
        %v2822 = vsub.f32 1.0, %v2821
        %v2823 = vmul.f32 %v2820, %v2822
        %v2824 = vadd.f32 %v2820, %v2823
        %vm2825 = vweird.f32 %v2819
        %vm2826 = vweird.f32 %v2820
        %vm2827 = vmor %vm2825, %vm2826
        %v2828 = vsel %vm2827, %v2820, %v2824
        %v2829 = vand.u32 2147483647, %v2819
        %vm2830 = vcmp.eq.f32.partialorder %v2829, 8.507059e+37
        %v2831 = vand.u32 %v2819, 2147483648
        %v2832 = vor.u32 1.1754944e-38, %v2831
        %v2833 = vsel %vm2830, %v2832, %v2828
        %v2834 = vmul.f32 %v2809, %v2833
        %v2835 = vmin.f32 %v2834, 1.0
        %v2836 = vmax.f32 %v2835, -1.0
        %v2837 = vadd.f32 %v2556, 1.0
        %v2838 = vadd.f32 %v2596, 1.0
        %v2839 = vadd.f32 %v2636, 1.0
        %v2840 = vadd.f32 %v2676, 1.0
        %v2841 = vadd.f32 %v2716, 1.0
        %v2842 = vadd.f32 %v2756, 1.0
        %v2843 = vadd.f32 %v2796, 1.0
        %v2844 = vadd.f32 %v2836, 1.0
        %v2845 = vmul.f32 %v2501, %v2837
        %v2846 = vmul.f32 %v2502, %v2838
        %v2847 = vmul.f32 %v2503, %v2839
        %v2848 = vmul.f32 %v2504, %v2840
        %v2849 = vmul.f32 %v2505, %v2841
        %v2850 = vmul.f32 %v2506, %v2842
        %v2851 = vmul.f32 %v2507, %v2843
        %v2852 = vmul.f32 %v2508, %v2844
        %2853 = vst [vmem:[%s257] sm:$0xff] %v2845
        %2854 = vst [vmem:[%s257 + $0x8] sm:$0xff] %v2846
        %2855 = vst [vmem:[%s257 + $0x10] sm:$0xff] %v2847
        %2856 = vst [vmem:[%s257 + $0x18] sm:$0xff] %v2848
        %2857 = vst [vmem:[%s257 + $0x20] sm:$0xff] %v2849
        %2858 = vst [vmem:[%s257 + $0x28] sm:$0xff] %v2850
        %2859 = vst [vmem:[%s257 + $0x30] sm:$0xff] %v2851
        %2860 = vst [vmem:[%s257 + $0x38] sm:$0xff] %v2852
        %s2861 = sand.u32 %s141, 1
        %s2862 = scalar_lea.sflag [#allocation5], %s2861
        %s2863 = sand.u32 %s141, 1
        %s2864 = smul.addr %s2863, 64
        %s2865 = scalar_lea.vmem [#allocation8], %s2864
        // Predicated region
        $region49: #{tpu_custom_call.1} parent=39 // pred_check
          %p2866 = pneg %p151
        $region50: #{tpu_custom_call.1} parent=39 // pred_check_branch
          %2868 = sbr.rel (%p2866) target = $region52
        $region51: #{tpu_custom_call.1} parent=39 // pred_region
          %2870 = vsyncadd %s2862, 0
          %s2871 = smul.addr %s23, 8
          %s2872 = smul.addr %s2871, 8
          %s2873 = scalar_lea.hbm %s5, %s2872
          %s2875 = sshll.u32 %s2865, 4
          %s2876 = int_to_ptr.vmem [resolvable:$true] %s2875
          %s2877 = sshll.u32 %s2873, 4
          %s2878 = int_to_ptr.hbm [resolvable:$true] %s2877
          %2880 = dma.vmem_to_hbm [thread:$0]  %s2876, 1024, %s2878, %s2862
        $region52: #{tpu_custom_call.1} parent=39 // pred_fallthru
          _
      $region40: #{tpu_custom_call.1} parent=5 // pred_fallthru
        _
      %p2881 = scmp.le.s32.totalorder 2, %s18
      // Predicated region
      $region53: #{tpu_custom_call.1} parent=5 // pred_check
        %p2882 = pneg %p2881
      $region54: #{tpu_custom_call.1} parent=5 // pred_check_branch
        %2884 = sbr.rel (%p2882) target = $region56
      $region55: #{tpu_custom_call.1} parent=5 // pred_region
        %s2885 = ssub.s32 %s18, 2
        // Predicated region
        $region57: #{tpu_custom_call.1} parent=55 // pred_check
          %p2886 = pneg %p157
        $region58: #{tpu_custom_call.1} parent=55 // pred_check_branch
          %2888 = sbr.rel (%p2886) target = $region60
        $region59: #{tpu_custom_call.1} parent=55 // pred_region
          %s2889 = sand.u32 %s142, 1
          %s2890 = scalar_lea.sflag [#allocation5], %s2889
          %s2891 = sand.u32 %s142, 1
          %s2892 = smul.addr %s2891, 64
          %s2893 = scalar_lea.vmem [#allocation8], %s2892
          %2895 = dma.done %s2890, 1024
        $region60: #{tpu_custom_call.1} parent=55 // pred_fallthru
          _
      $region56: #{tpu_custom_call.1} parent=5 // pred_fallthru
        _
    $region6: #{tpu_custom_call.1} parent=1 // loop_footer
      %s22 = sadd.s32 1, %s18
    $region7: #{tpu_custom_call.1} parent=1 // loop_footer_branch
      %17 = sbr.rel target = $region3
    $region8: #{tpu_custom_call.1} parent=1 // loop_exit
      _
    %2896 = vsyncpa [#allocation4], 1
    %s2897 = scalar_lea.sflag [#allocation4], 1
    %2898 = vsyncpa %s2897, 1
    %2899 = vsyncpa [#allocation7], 1
    %2900 = vsyncpa [#allocation5], 1
    %s2901 = scalar_lea.sflag [#allocation5], 1
    %2902 = vsyncpa %s2901, 1

</llo_original>
